<compile_context>
chip_gen: v7x
topology: tpu7x:2x2x1
jax: 0.10.0
libtpu: 0.0.40
codegen_flags: <defaults>
</compile_context>

<pallas_src>
import jax
import jax.numpy as jnp
from jax.experimental import pallas as pl
from jax.experimental.pallas import tpu as pltpu

IN_FEATS = 2048      # resnet50 pooled feature width
HIDDEN = 1024        # img_linear hidden width
OUT_SIZE = 300       # out_size (LayerNorm width)
OUT_PAD = 384        # 300 padded to a multiple of 128 lanes
NUM_LABEL = 2
HEAD_PAD = 128       # num_label padded to one full lane tile
TK = 512             # K-tile of the 2048 reduction -> 4 grid steps, 1 MiB bf16 w1 block
LN_EPS = 1e-5        # PyTorch nn.LayerNorm default


def _classifier_kernel(x_ref, w1_ref, b1_ref, w2_ref, b2_ref, g_ref, beta_ref,
                       w3_ref, b3_ref, w4_ref, b4_ref, o_ref, acc_ref):
    """K-tiled Linear(2048,1024) accumulate; at the last K step run the rest of the stack:
       ReLU -> Linear(1024,300) -> LayerNorm(300) -> ReLU -> (Dropout=id)
       -> Linear(300,300) -> ReLU -> Linear(300,2)."""
    k = pl.program_id(0)

    @pl.when(k == 0)
    def _init():
        # Fold the first bias into the accumulator init (pl.when skips it afterwards).
        acc_ref[...] = jnp.broadcast_to(b1_ref[...], acc_ref.shape)

    # First matmul, K-tiled: bf16 operands, f32 accumulation on the MXU.
    acc_ref[...] += jnp.dot(x_ref[...], w1_ref[...],
                            preferred_element_type=jnp.float32)

    @pl.when(k == pl.num_programs(0) - 1)
    def _finalize():
        h = jnp.maximum(acc_ref[...], 0.0)                                  # [M, 1024] f32

        # Linear 1024 -> 300 (padded to 384 lanes; pad cols/bias are zero).
        y = jnp.dot(h.astype(jnp.bfloat16), w2_ref[...],
                    preferred_element_type=jnp.float32) + b2_ref[...]       # [M, 384]

        # LayerNorm over the 300 valid lanes of the 384-lane tile (torch biased variance).
        valid = jax.lax.broadcasted_iota(jnp.int32, y.shape, 1) < OUT_SIZE
        inv_n = 1.0 / OUT_SIZE
        mu = jnp.sum(y, axis=-1, keepdims=True) * inv_n                     # pad lanes are 0
        d = jnp.where(valid, y - mu, 0.0)
        var = jnp.sum(d * d, axis=-1, keepdims=True) * inv_n
        yn = d * jax.lax.rsqrt(var + LN_EPS)
        z = jnp.maximum(yn * g_ref[...] + beta_ref[...], 0.0)               # ReLU; Dropout = id

        # cls_layer: Linear(300,300) + ReLU (padded 384x384, zero pad rows/cols).
        f = jnp.maximum(
            jnp.dot(z.astype(jnp.bfloat16), w3_ref[...],
                    preferred_element_type=jnp.float32) + b3_ref[...], 0.0)

        # head: Linear(300, num_label) (padded 384x128, zero pad rows/cols).
        o_ref[...] = (jnp.dot(f.astype(jnp.bfloat16), w4_ref[...],
                              preferred_element_type=jnp.float32)
                      + b4_ref[...]).astype(o_ref.dtype)


def classifier_head(x, packed):
    """x: [B, 2048] f32 -> logits [B, NUM_LABEL] f32 via one fused, K-pipelined pallas_call."""
    w1, b1, w2, b2, g, beta, w3, b3, w4, b4 = packed
    B = x.shape[0]
    M = ((B + 7) // 8) * 8                                 # sublane-aligned row count
    xp = jnp.pad(x.astype(jnp.bfloat16), ((0, M - B), (0, 0)))

    const = lambda shape: pl.BlockSpec(shape, lambda k: (0, 0))  # fetched once (block idx fixed)

    out = pl.pallas_call(
        _classifier_kernel,
        out_shape=jax.ShapeDtypeStruct((M, HEAD_PAD), jnp.float32),
        grid_spec=pltpu.PrefetchScalarGridSpec(
            num_scalar_prefetch=0,
            grid=(IN_FEATS // TK,),
            in_specs=[
                pl.BlockSpec((M, TK), lambda k: (0, k)),       # x      (K-tiled)
                pl.BlockSpec((TK, HIDDEN), lambda k: (k, 0)),  # w1     (K-tiled, double-buffered)
                const((1, HIDDEN)),                            # b1
                const((HIDDEN, OUT_PAD)),                      # w2
                const((1, OUT_PAD)),                           # b2
                const((1, OUT_PAD)),                           # gamma
                const((1, OUT_PAD)),                           # beta
                const((OUT_PAD, OUT_PAD)),                     # w3
                const((1, OUT_PAD)),                           # b3
                const((OUT_PAD, HEAD_PAD)),                    # w4
                const((1, HEAD_PAD)),                          # b4
            ],
            out_specs=pl.BlockSpec((M, HEAD_PAD), lambda k: (0, 0)),
            scratch_shapes=[pltpu.VMEM((M, HIDDEN), jnp.float32)],  # f32 K-accumulator
        ),
        compiler_params=pltpu.CompilerParams(
            dimension_semantics=("arbitrary",)),               # K is a reduction axis
    )(xp, w1, b1, w2, b2, g, beta, w3, b3, w4, b4)
    return out[:B, :NUM_LABEL]


def _linear_init(key, fan_in, fan_out):
    """torch.nn.Linear-style init: U(-1/sqrt(fan_in), 1/sqrt(fan_in))."""
    kw, kb = jax.random.split(key)
    bound = 1.0 / jnp.sqrt(fan_in)
    w = jax.random.uniform(kw, (fan_in, fan_out), jnp.float32, -bound, bound)
    b = jax.random.uniform(kb, (fan_out,), jnp.float32, -bound, bound)
    return w, b


def make_params(key, out_size=OUT_SIZE, num_label=NUM_LABEL):
    """Logical-shape f32 parameters of img_linear / cls_layer / head."""
    ks = jax.random.split(key, 4)
    w1, b1 = _linear_init(ks[0], IN_FEATS, HIDDEN)        # img_linear[0]
    w2, b2 = _linear_init(ks[1], HIDDEN, out_size)        # img_linear[2]
    gamma = jnp.ones((out_size,), jnp.float32)            # img_linear[3] LayerNorm
    beta = jnp.zeros((out_size,), jnp.float32)
    w3, b3 = _linear_init(ks[2], out_size, out_size)      # cls_layer[0]
    w4, b4 = _linear_init(ks[3], out_size, num_label)     # head
    return dict(w1=w1, b1=b1, w2=w2, b2=b2, gamma=gamma, beta=beta,
                w3=w3, b3=b3, w4=w4, b4=b4)


def pack_params(p):
    """One-time prep: lane-pad (300->384, 2->128) with zeros and cast matmul weights to bf16."""
    def pad2(a, r, c):
        return jnp.pad(a, ((0, r - a.shape[0]), (0, c - a.shape[1])))

    def pad1(a, c):
        return jnp.pad(a, ((0, c - a.shape[0]),))[None, :]

    return (
        p["w1"].astype(jnp.bfloat16),                          # (2048, 1024) bf16
        p["b1"][None, :],                                      # (1, 1024)    f32
        pad2(p["w2"], HIDDEN, OUT_PAD).astype(jnp.bfloat16),   # (1024, 384)  bf16
        pad1(p["b2"], OUT_PAD),                                # (1, 384)     f32
        pad1(p["gamma"], OUT_PAD),
        pad1(p["beta"], OUT_PAD),
        pad2(p["w3"], OUT_PAD, OUT_PAD).astype(jnp.bfloat16),  # (384, 384)   bf16
        pad1(p["b3"], OUT_PAD),
        pad2(p["w4"], OUT_PAD, HEAD_PAD).astype(jnp.bfloat16), # (384, 128)   bf16
        pad1(p["b4"], HEAD_PAD),
    )


@jax.jit
def resnet_classifier_forward(packed, pooled_feats_nchw):
    """Mirrors ResNet_Classifier.forward downstream of the frozen backbone.

    pooled_feats_nchw: output of the frozen resnet50 trunk, [B, 2048, 1, 1].
    """
    # TODO(synk): visual_encoder (pretrained resnet50) runs outside; this is `.squeeze()`.
    x = pooled_feats_nchw.reshape(pooled_feats_nchw.shape[0], -1)   # [B, 2048]
    return classifier_head(x, packed)                               # [B, num_label]


def _reference_forward(p, x):
    """Pure-JAX reference using the same bf16-cast weights (tolerance check only)."""
    bf = lambda a: a.astype(jnp.bfloat16).astype(jnp.float32)
    h = jnp.maximum(bf(x) @ bf(p["w1"]) + p["b1"], 0.0)
    y = bf(h) @ bf(p["w2"]) + p["b2"]
    mu = y.mean(-1, keepdims=True)
    var = ((y - mu) ** 2).mean(-1, keepdims=True)
    z = jnp.maximum((y - mu) * jax.lax.rsqrt(var + LN_EPS) * p["gamma"] + p["beta"], 0.0)
    f = jnp.maximum(bf(z) @ bf(p["w3"]) + p["b3"], 0.0)
    return bf(f) @ bf(p["w4"]) + p["b4"]


if __name__ == "__main__":
    key = jax.random.PRNGKey(0)
    kp, kx = jax.random.split(key)

    B = 2
    params = make_params(kp, out_size=OUT_SIZE, num_label=NUM_LABEL)
    packed = pack_params(params)

    # Synthetic frozen-backbone output: resnet50 pooled features, NCHW [B, 2048, 1, 1].
    imgs_pooled = jax.random.normal(kx, (B, IN_FEATS, 1, 1), jnp.float32)

    logits = resnet_classifier_forward(packed, imgs_pooled)
    jax.block_until_ready(logits)

    assert logits.shape == (B, NUM_LABEL)
    ref = _reference_forward(params, imgs_pooled.reshape(B, -1))
    assert jnp.max(jnp.abs(logits - ref)) < 0.1, "mismatch vs pure-JAX reference"
    print("KERNEL_OK")
</pallas_src>

<mosaic_0001>
module attributes {stable_mosaic.version = 11 : i64} {
  func.func @_classifier_kernel(%arg0: i32, %arg1: memref<8x512xbf16, #tpu.memory_space<vmem>>, %arg2: memref<512x1024xbf16, #tpu.memory_space<vmem>>, %arg3: memref<1x1024xf32, #tpu.memory_space<vmem>>, %arg4: memref<1024x384xbf16, #tpu.memory_space<vmem>>, %arg5: memref<1x384xf32, #tpu.memory_space<vmem>>, %arg6: memref<1x384xf32, #tpu.memory_space<vmem>>, %arg7: memref<1x384xf32, #tpu.memory_space<vmem>>, %arg8: memref<384x384xbf16, #tpu.memory_space<vmem>>, %arg9: memref<1x384xf32, #tpu.memory_space<vmem>>, %arg10: memref<384x128xbf16, #tpu.memory_space<vmem>>, %arg11: memref<1x128xf32, #tpu.memory_space<vmem>>, %arg12: memref<8x128xf32, #tpu.memory_space<vmem>>, %arg13: memref<8x1024xf32, #tpu.memory_space<vmem>>) attributes {dimension_semantics = [#tpu.dimension_semantics<arbitrary>], iteration_bounds = array<i64: 4>, scalar_prefetch = 0 : i64, scratch_operands = 1 : i64, tpu.core_type = #tpu.core_type<tc>, window_params = [{transform_indices = @transform_0, window_bounds = array<i64: 8, 512>}, {transform_indices = @transform_1, window_bounds = array<i64: 512, 1024>}, {pipeline_mode = #tpu.pipeline_mode<synchronous>, transform_indices = @transform_2, window_bounds = array<i64: 1, 1024>}, {pipeline_mode = #tpu.pipeline_mode<synchronous>, transform_indices = @transform_3, window_bounds = array<i64: 1024, 384>}, {pipeline_mode = #tpu.pipeline_mode<synchronous>, transform_indices = @transform_4, window_bounds = array<i64: 1, 384>}, {pipeline_mode = #tpu.pipeline_mode<synchronous>, transform_indices = @transform_5, window_bounds = array<i64: 1, 384>}, {pipeline_mode = #tpu.pipeline_mode<synchronous>, transform_indices = @transform_6, window_bounds = array<i64: 1, 384>}, {pipeline_mode = #tpu.pipeline_mode<synchronous>, transform_indices = @transform_7, window_bounds = array<i64: 384, 384>}, {pipeline_mode = #tpu.pipeline_mode<synchronous>, transform_indices = @transform_8, window_bounds = array<i64: 1, 384>}, {pipeline_mode = #tpu.pipeline_mode<synchronous>, transform_indices = @transform_9, window_bounds = array<i64: 384, 128>}, {pipeline_mode = #tpu.pipeline_mode<synchronous>, transform_indices = @transform_10, window_bounds = array<i64: 1, 128>}, {pipeline_mode = #tpu.pipeline_mode<synchronous>, transform_indices = @transform_11, window_bounds = array<i64: 8, 128>}]} {
    %c0_i32 = arith.constant 0 : i32
    %0 = arith.cmpi eq, %arg0, %c0_i32 : i32
    %1 = arith.extui %0 : i1 to i32
    %c0_i32_0 = arith.constant 0 : i32
    %2 = arith.cmpi ne, %1, %c0_i32_0 : i32
    scf.if %2 {
      %c0_9 = arith.constant 0 : index
      %c0_10 = arith.constant 0 : index
      %12 = vector.load %arg3[%c0_9, %c0_10] : memref<1x1024xf32, #tpu.memory_space<vmem>>, vector<1x1024xf32>
      %13 = vector.shape_cast %12 : vector<1x1024xf32> to vector<1x1024xf32>
      %14 = vector.broadcast %13 : vector<1x1024xf32> to vector<8x1024xf32>
      %c0_11 = arith.constant 0 : index
      %c0_12 = arith.constant 0 : index
      %15 = vector.load %arg13[%c0_11, %c0_12] : memref<8x1024xf32, #tpu.memory_space<vmem>>, vector<8x1024xf32>
      tpu.vector_store %arg13[%c0_11, %c0_12], %14 {strides = array<i32>} : memref<8x1024xf32, #tpu.memory_space<vmem>>, vector<8x1024xf32>,
    } else {
    }
    %c0 = arith.constant 0 : index
    %c0_1 = arith.constant 0 : index
    %3 = vector.load %arg13[%c0, %c0_1] : memref<8x1024xf32, #tpu.memory_space<vmem>>, vector<8x1024xf32>
    %c0_2 = arith.constant 0 : index
    %c0_3 = arith.constant 0 : index
    %4 = vector.load %arg1[%c0_2, %c0_3] : memref<8x512xbf16, #tpu.memory_space<vmem>>, vector<8x512xbf16>
    %c0_4 = arith.constant 0 : index
    %c0_5 = arith.constant 0 : index
    %5 = vector.load %arg2[%c0_4, %c0_5] : memref<512x1024xbf16, #tpu.memory_space<vmem>>, vector<512x1024xbf16>
    %cst = arith.constant dense<0.000000e+00> : vector<8x1024xf32>
    %6 = tpu.matmul %4, %5, %cst {dimension_numbers = #tpu.dot_dimension_numbers<[1], [0], [0], [1], [0, 0, 1, 1], [], []>} : vector<8x512xbf16>, vector<512x1024xbf16>, vector<8x1024xf32> -> vector<8x1024xf32>
    %7 = arith.addf %3, %6 : vector<8x1024xf32>
    %c0_6 = arith.constant 0 : index
    %c0_7 = arith.constant 0 : index
    %8 = vector.load %arg13[%c0_6, %c0_7] : memref<8x1024xf32, #tpu.memory_space<vmem>>, vector<8x1024xf32>
    tpu.vector_store %arg13[%c0_6, %c0_7], %7 {strides = array<i32>} : memref<8x1024xf32, #tpu.memory_space<vmem>>, vector<8x1024xf32>,
    %c3_i32 = arith.constant 3 : i32
    %9 = arith.cmpi eq, %arg0, %c3_i32 : i32
    %10 = arith.extui %9 : i1 to i32
    %c0_i32_8 = arith.constant 0 : i32
    %11 = arith.cmpi ne, %10, %c0_i32_8 : i32
    scf.if %11 {
      %c0_9 = arith.constant 0 : index
      %c0_10 = arith.constant 0 : index
      %12 = vector.load %arg13[%c0_9, %c0_10] : memref<8x1024xf32, #tpu.memory_space<vmem>>, vector<8x1024xf32>
      %cst_11 = arith.constant 0.000000e+00 : f32
      %13 = vector.broadcast %cst_11 : f32 to vector<8x1024xf32>
      %14 = arith.maximumf %12, %13 : vector<8x1024xf32>
      %15 = arith.truncf %14 : vector<8x1024xf32> to vector<8x1024xbf16>
      %c0_12 = arith.constant 0 : index
      %c0_13 = arith.constant 0 : index
      %16 = vector.load %arg4[%c0_12, %c0_13] : memref<1024x384xbf16, #tpu.memory_space<vmem>>, vector<1024x384xbf16>
      %cst_14 = arith.constant dense<0.000000e+00> : vector<8x384xf32>
      %17 = tpu.matmul %15, %16, %cst_14 {dimension_numbers = #tpu.dot_dimension_numbers<[1], [0], [0], [1], [0, 0, 1, 1], [], []>} : vector<8x1024xbf16>, vector<1024x384xbf16>, vector<8x384xf32> -> vector<8x384xf32>
      %c0_15 = arith.constant 0 : index
      %c0_16 = arith.constant 0 : index
      %18 = vector.load %arg5[%c0_15, %c0_16] : memref<1x384xf32, #tpu.memory_space<vmem>>, vector<1x384xf32>
      %19 = vector.broadcast %18 : vector<1x384xf32> to vector<8x384xf32>
      %20 = arith.addf %17, %19 : vector<8x384xf32>
      %21 = tpu.iota {dimensions = array<i32: 1>} : vector<8x384xi32>
      %c300_i32 = arith.constant 300 : i32
      %22 = vector.broadcast %c300_i32 : i32 to vector<8x384xi32>
      %23 = arith.cmpi slt, %21, %22 : vector<8x384xi32>
      %cst_17 = arith.constant dense<0.000000e+00> : vector<8xf32>
      %24 = vector.multi_reduction <add>, %20, %cst_17 [1] : vector<8x384xf32> to vector<8xf32>
      %25 = vector.shape_cast %24 : vector<8xf32> to vector<8x1xf32>
      %cst_18 = arith.constant 0.00333333341 : f32
      %26 = vector.broadcast %cst_18 : f32 to vector<8x1xf32>
      %27 = arith.mulf %25, %26 : vector<8x1xf32>
      %28 = vector.broadcast %27 : vector<8x1xf32> to vector<8x384xf32>
      %29 = arith.subf %20, %28 : vector<8x384xf32>
      %cst_19 = arith.constant 0.000000e+00 : f32
      %30 = vector.broadcast %cst_19 : f32 to vector<8x384xf32>
      %31 = arith.select %23, %29, %30 : vector<8x384xi1>, vector<8x384xf32>
      %32 = arith.mulf %31, %31 : vector<8x384xf32>
      %cst_20 = arith.constant dense<0.000000e+00> : vector<8xf32>
      %33 = vector.multi_reduction <add>, %32, %cst_20 [1] : vector<8x384xf32> to vector<8xf32>
      %34 = vector.shape_cast %33 : vector<8xf32> to vector<8x1xf32>
      %cst_21 = arith.constant 0.00333333341 : f32
      %35 = vector.broadcast %cst_21 : f32 to vector<8x1xf32>
      %36 = arith.mulf %34, %35 : vector<8x1xf32>
      %cst_22 = arith.constant 9.99999974E-6 : f32
      %37 = vector.broadcast %cst_22 : f32 to vector<8x1xf32>
      %38 = arith.addf %36, %37 : vector<8x1xf32>
      %39 = math.rsqrt %38 : vector<8x1xf32>
      %40 = vector.broadcast %39 : vector<8x1xf32> to vector<8x384xf32>
      %41 = arith.mulf %31, %40 : vector<8x384xf32>
      %c0_23 = arith.constant 0 : index
      %c0_24 = arith.constant 0 : index
      %42 = vector.load %arg6[%c0_23, %c0_24] : memref<1x384xf32, #tpu.memory_space<vmem>>, vector<1x384xf32>
      %43 = vector.broadcast %42 : vector<1x384xf32> to vector<8x384xf32>
      %44 = arith.mulf %41, %43 : vector<8x384xf32>
      %c0_25 = arith.constant 0 : index
      %c0_26 = arith.constant 0 : index
      %45 = vector.load %arg7[%c0_25, %c0_26] : memref<1x384xf32, #tpu.memory_space<vmem>>, vector<1x384xf32>
      %46 = vector.broadcast %45 : vector<1x384xf32> to vector<8x384xf32>
      %47 = arith.addf %44, %46 : vector<8x384xf32>
      %cst_27 = arith.constant 0.000000e+00 : f32
      %48 = vector.broadcast %cst_27 : f32 to vector<8x384xf32>
      %49 = arith.maximumf %47, %48 : vector<8x384xf32>
      %50 = arith.truncf %49 : vector<8x384xf32> to vector<8x384xbf16>
      %c0_28 = arith.constant 0 : index
      %c0_29 = arith.constant 0 : index
      %51 = vector.load %arg8[%c0_28, %c0_29] : memref<384x384xbf16, #tpu.memory_space<vmem>>, vector<384x384xbf16>
      %cst_30 = arith.constant dense<0.000000e+00> : vector<8x384xf32>
      %52 = tpu.matmul %50, %51, %cst_30 {dimension_numbers = #tpu.dot_dimension_numbers<[1], [0], [0], [1], [0, 0, 1, 1], [], []>} : vector<8x384xbf16>, vector<384x384xbf16>, vector<8x384xf32> -> vector<8x384xf32>
      %c0_31 = arith.constant 0 : index
      %c0_32 = arith.constant 0 : index
      %53 = vector.load %arg9[%c0_31, %c0_32] : memref<1x384xf32, #tpu.memory_space<vmem>>, vector<1x384xf32>
      %54 = vector.broadcast %53 : vector<1x384xf32> to vector<8x384xf32>
      %55 = arith.addf %52, %54 : vector<8x384xf32>
      %cst_33 = arith.constant 0.000000e+00 : f32
      %56 = vector.broadcast %cst_33 : f32 to vector<8x384xf32>
      %57 = arith.maximumf %55, %56 : vector<8x384xf32>
      %58 = arith.truncf %57 : vector<8x384xf32> to vector<8x384xbf16>
      %c0_34 = arith.constant 0 : index
      %c0_35 = arith.constant 0 : index
      %59 = vector.load %arg10[%c0_34, %c0_35] : memref<384x128xbf16, #tpu.memory_space<vmem>>, vector<384x128xbf16>
      %cst_36 = arith.constant dense<0.000000e+00> : vector<8x128xf32>
      %60 = tpu.matmul %58, %59, %cst_36 {dimension_numbers = #tpu.dot_dimension_numbers<[1], [0], [0], [1], [0, 0, 1, 1], [], []>} : vector<8x384xbf16>, vector<384x128xbf16>, vector<8x128xf32> -> vector<8x128xf32>
      %c0_37 = arith.constant 0 : index
      %c0_38 = arith.constant 0 : index
      %61 = vector.load %arg11[%c0_37, %c0_38] : memref<1x128xf32, #tpu.memory_space<vmem>>, vector<1x128xf32>
      %62 = vector.broadcast %61 : vector<1x128xf32> to vector<8x128xf32>
      %63 = arith.addf %60, %62 : vector<8x128xf32>
      %c0_39 = arith.constant 0 : index
      %c0_40 = arith.constant 0 : index
      %64 = vector.load %arg12[%c0_39, %c0_40] : memref<8x128xf32, #tpu.memory_space<vmem>>, vector<8x128xf32>
      tpu.vector_store %arg12[%c0_39, %c0_40], %63 {strides = array<i32>} : memref<8x128xf32, #tpu.memory_space<vmem>>, vector<8x128xf32>,
    } else {
    }
    return
  }
  func.func @transform_0(%arg0: i32) -> (i32, i32) {
    %c0_i32 = arith.constant 0 : i32
    %c0_i32_0 = arith.constant 0 : i32
    return %c0_i32, %arg0 : i32, i32
  }
  func.func @transform_1(%arg0: i32) -> (i32, i32) {
    %c0_i32 = arith.constant 0 : i32
    %c0_i32_0 = arith.constant 0 : i32
    return %arg0, %c0_i32 : i32, i32
  }
  func.func @transform_2(%arg0: i32) -> (i32, i32) {
    %c0_i32 = arith.constant 0 : i32
    %c0_i32_0 = arith.constant 0 : i32
    %c0_i32_1 = arith.constant 0 : i32
    return %c0_i32, %c0_i32_0 : i32, i32
  }
  func.func @transform_3(%arg0: i32) -> (i32, i32) {
    %c0_i32 = arith.constant 0 : i32
    %c0_i32_0 = arith.constant 0 : i32
    %c0_i32_1 = arith.constant 0 : i32
    return %c0_i32, %c0_i32_0 : i32, i32
  }
  func.func @transform_4(%arg0: i32) -> (i32, i32) {
    %c0_i32 = arith.constant 0 : i32
    %c0_i32_0 = arith.constant 0 : i32
    %c0_i32_1 = arith.constant 0 : i32
    return %c0_i32, %c0_i32_0 : i32, i32
  }
  func.func @transform_5(%arg0: i32) -> (i32, i32) {
    %c0_i32 = arith.constant 0 : i32
    %c0_i32_0 = arith.constant 0 : i32
    %c0_i32_1 = arith.constant 0 : i32
    return %c0_i32, %c0_i32_0 : i32, i32
  }
  func.func @transform_6(%arg0: i32) -> (i32, i32) {
    %c0_i32 = arith.constant 0 : i32
    %c0_i32_0 = arith.constant 0 : i32
    %c0_i32_1 = arith.constant 0 : i32
    return %c0_i32, %c0_i32_0 : i32, i32
  }
  func.func @transform_7(%arg0: i32) -> (i32, i32) {
    %c0_i32 = arith.constant 0 : i32
    %c0_i32_0 = arith.constant 0 : i32
    %c0_i32_1 = arith.constant 0 : i32
    return %c0_i32, %c0_i32_0 : i32, i32
  }
  func.func @transform_8(%arg0: i32) -> (i32, i32) {
    %c0_i32 = arith.constant 0 : i32
    %c0_i32_0 = arith.constant 0 : i32
    %c0_i32_1 = arith.constant 0 : i32
    return %c0_i32, %c0_i32_0 : i32, i32
  }
  func.func @transform_9(%arg0: i32) -> (i32, i32) {
    %c0_i32 = arith.constant 0 : i32
    %c0_i32_0 = arith.constant 0 : i32
    %c0_i32_1 = arith.constant 0 : i32
    return %c0_i32, %c0_i32_0 : i32, i32
  }
  func.func @transform_10(%arg0: i32) -> (i32, i32) {
    %c0_i32 = arith.constant 0 : i32
    %c0_i32_0 = arith.constant 0 : i32
    %c0_i32_1 = arith.constant 0 : i32
    return %c0_i32, %c0_i32_0 : i32, i32
  }
  func.func @transform_11(%arg0: i32) -> (i32, i32) {
    %c0_i32 = arith.constant 0 : i32
    %c0_i32_0 = arith.constant 0 : i32
    %c0_i32_1 = arith.constant 0 : i32
    return %c0_i32, %c0_i32_0 : i32, i32
  }
}

</mosaic_0001>

<llo_original>
// kernel: resnet_classifier_forward.1
$region0: #{resnet_classifier_forward.1}
  #allocation0 [shape = 'u32[]', space=smem, size = 0x4, offset = 0x4, fixed_abs, tag = 'smem constant byte address 0x4 - core index']
  #allocation1 [shape = 'u32[144,128]{1,0:T(1,128)}', space=vmem, size = 0x12000, scoped, tag = 'internal scratch']
  #allocation2 [shape = 'f32[8,1024]{1,0:T(8,128)}', space=vmem, size = 0x8000, scoped, tag = 'scratch operand']
  %s0 = inlined_call_operand.vmem [shape: bf16[8,2048], index: 0, kind: input, shape index: {}]
  %s1 = inlined_call_operand.hbm [shape: bf16[2048,1024], index: 1, kind: input, shape index: {}]
  %s2 = inlined_call_operand.hbm [shape: f32[1,1024], index: 2, kind: input, shape index: {}]
  %s3 = inlined_call_operand.hbm [shape: bf16[1024,384], index: 3, kind: input, shape index: {}]
  %s4 = inlined_call_operand.hbm [shape: f32[1,384], index: 4, kind: input, shape index: {}]
  %s5 = inlined_call_operand.hbm [shape: f32[1,384], index: 5, kind: input, shape index: {}]
  %s6 = inlined_call_operand.hbm [shape: f32[1,384], index: 6, kind: input, shape index: {}]
  %s7 = inlined_call_operand.hbm [shape: bf16[384,384], index: 7, kind: input, shape index: {}]
  %s8 = inlined_call_operand.hbm [shape: f32[1,384], index: 8, kind: input, shape index: {}]
  %s9 = inlined_call_operand.hbm [shape: bf16[384,128], index: 9, kind: input, shape index: {}]
  %s10 = inlined_call_operand.hbm [shape: f32[1,128], index: 10, kind: input, shape index: {}]
  %s11 = inlined_call_operand.vmem [shape: f32[8,128], index: 11, kind: output, shape index: {}]
  %s12 = sld [smem:[#allocation0]]
  $region125: #{resnet_classifier_forward.1} parent=0
    _
  %s14 = ssub.s32 1, %s12
  %s15 = scalar_select 0, %s14, %s12
  $region1: #{resnet_classifier_forward.1} parent=0
    #allocation3 [shape = 'u8[2097152]{0}', space=vmem, size = 0x200000, scoped, tag = 'input window, operand 1']
    #allocation4 [shape = 's32[2]{0}', space=sflag, size = 0x8, scoped, tag = 'scoped memory for resnet_classifier_forward.1']
    #allocation5 [shape = 'u8[4096]{0}', space=vmem, size = 0x1000, scoped, tag = 'input window, operand 2, single buffered']
    #allocation6 [shape = 's32[1]{0}', space=sflag, size = 0x4, scoped, tag = 'scoped memory for resnet_classifier_forward.1']
    #allocation7 [shape = 'u8[786432]{0}', space=vmem, size = 0xc0000, scoped, tag = 'input window, operand 3, single buffered']
    #allocation8 [shape = 'u8[1536]{0}', space=vmem, size = 0x800, scoped, tag = 'input window, operand 4, single buffered']
    #allocation9 [shape = 's32[1]{0}', space=sflag, size = 0x4, scoped, tag = 'scoped memory for resnet_classifier_forward.1']
    #allocation10 [shape = 'u8[1536]{0}', space=vmem, size = 0x800, scoped, tag = 'input window, operand 5, single buffered']
    #allocation11 [shape = 'u8[1536]{0}', space=vmem, size = 0x800, scoped, tag = 'input window, operand 6, single buffered']
    #allocation12 [shape = 's32[1]{0}', space=sflag, size = 0x4, scoped, tag = 'scoped memory for resnet_classifier_forward.1']
    #allocation13 [shape = 'u8[294912]{0}', space=vmem, size = 0x48000, scoped, tag = 'input window, operand 7, single buffered']
    #allocation14 [shape = 'u8[1536]{0}', space=vmem, size = 0x800, scoped, tag = 'input window, operand 8, single buffered']
    #allocation15 [shape = 's32[1]{0}', space=sflag, size = 0x4, scoped, tag = 'scoped memory for resnet_classifier_forward.1']
    #allocation16 [shape = 'u8[98304]{0}', space=vmem, size = 0x18000, scoped, tag = 'input window, operand 9, single buffered']
    #allocation17 [shape = 'u8[512]{0}', space=vmem, size = 0x400, scoped, tag = 'input window, operand 10, single buffered']
    #allocation18 [shape = 's32[1]{0}', space=sflag, size = 0x4, scoped, tag = 'scoped memory for resnet_classifier_forward.1']
    %16 = vsyncpa [#allocation4], 0
    %s17 = scalar_lea.sflag [#allocation4], 1
    %18 = vsyncpa %s17, 0
    %19 = vsyncpa [#allocation6], 0
    %20 = vsyncpa [#allocation9], 0
    %21 = vsyncpa [#allocation12], 0
    %22 = vsyncpa [#allocation15], 0
    %23 = vsyncpa [#allocation18], 0
    loop: start=0, step=1, limit=6
    $region2: #{resnet_classifier_forward.1} parent=1 // loop_pre_header
      _
    $region3: #{resnet_classifier_forward.1} parent=1 // loop_header
      %s25 = sphi 0, %s29
      %p26 = scmp.ge.s32.totalorder %s25, 6
      %s35 = sphi 0, %s37
      %s38 = sphi 0, %s35
      %s39 = sphi 0, %s38
      %s55 = sphi 0, %s39
      %s61 = sphi 0, %s63
      %s64 = sphi 0, %s61
      %s65 = sphi 0, %s64
      %s81 = sphi 0, %s65
      %s85 = sphi 0, %s85
      %s87 = sphi 0, %s85
      %s88 = sphi 0, %s87
      %s102 = sphi 0, %s88
      %s106 = sphi 0, %s106
      %s108 = sphi 0, %s106
      %s109 = sphi 0, %s108
      %s123 = sphi 0, %s109
      %s127 = sphi 0, %s127
      %s129 = sphi 0, %s127
      %s130 = sphi 0, %s129
      %s144 = sphi 0, %s130
      %s148 = sphi 0, %s148
      %s150 = sphi 0, %s148
      %s151 = sphi 0, %s150
      %s165 = sphi 0, %s151
      %s169 = sphi 0, %s169
      %s171 = sphi 0, %s169
      %s172 = sphi 0, %s171
      %s186 = sphi 0, %s172
      %s190 = sphi 0, %s190
      %s192 = sphi 0, %s190
      %s193 = sphi 0, %s192
      %s207 = sphi 0, %s193
      %s211 = sphi 0, %s211
      %s213 = sphi 0, %s211
      %s214 = sphi 0, %s213
      %s228 = sphi 0, %s214
      %s232 = sphi 0, %s232
      %s234 = sphi 0, %s232
      %s235 = sphi 0, %s234
      %s249 = sphi 0, %s235
      %s253 = sphi 0, %s253
      %s255 = sphi 0, %s253
      %s256 = sphi 0, %s255
      %s270 = sphi 0, %s256
      %s274 = sphi 0, %s274
      %s276 = sphi 0, %s274
      %s277 = sphi 0, %s276
      %s291 = sphi 0, %s277
    $region4: #{resnet_classifier_forward.1} parent=1 // loop_header_branch
      %28 = sbr.rel (%p26) target = $region8
    $region5: #{resnet_classifier_forward.1} parent=1 // loop_body
      %s30 = ssub.s32 %s25, 1
      %s31 = ssub.s32 %s25, 2
      %s32 = sadd.s32 %s25, 1
      %s33 = ssub.s32 %s25, %s32
      %p34 = scmp.eq.s32.totalorder %s33, 0
      %s36 = sadd.s32 %s35, 1
      %s37 = scalar_select %p34, %s35, %s36
      %p40 = pneg %p34
      %p41 = scmp.eq.s32.totalorder %s25, 3
      %p42 = por %p40, %p41
      %p43 = scmp.ne.s32.totalorder %s35, %s38
      %p44 = scmp.eq.s32.totalorder %s25, 0
      %p45 = por %p43, %p44
      %p46 = scmp.ne.s32.totalorder %s35, %s38
      %p47 = scmp.eq.s32.totalorder %s30, 3
      %p48 = por %p46, %p47
      %p49 = scmp.ne.s32.totalorder %s38, %s39
      %p50 = scmp.eq.s32.totalorder %s30, 0
      %p51 = por %p49, %p50
      %p52 = scmp.ne.s32.totalorder %s38, %s39
      %p53 = scmp.eq.s32.totalorder %s31, 3
      %p54 = por %p52, %p53
      %p56 = scmp.ne.s32.totalorder %s39, %s55
      %p57 = scmp.eq.s32.totalorder %s31, 0
      %p58 = por %p56, %p57
      %s59 = ssub.s32 %s25, %s32
      %p60 = scmp.eq.s32.totalorder %s59, 0
      %s62 = sadd.s32 %s61, 1
      %s63 = scalar_select %p60, %s61, %s62
      %p66 = pneg %p60
      %p67 = scmp.eq.s32.totalorder %s25, 3
      %p68 = por %p66, %p67
      %p69 = scmp.ne.s32.totalorder %s61, %s64
      %p70 = scmp.eq.s32.totalorder %s25, 0
      %p71 = por %p69, %p70
      %p72 = scmp.ne.s32.totalorder %s61, %s64
      %p73 = scmp.eq.s32.totalorder %s30, 3
      %p74 = por %p72, %p73
      %p75 = scmp.ne.s32.totalorder %s64, %s65
      %p76 = scmp.eq.s32.totalorder %s30, 0
      %p77 = por %p75, %p76
      %p78 = scmp.ne.s32.totalorder %s64, %s65
      %p79 = scmp.eq.s32.totalorder %s31, 3
      %p80 = por %p78, %p79
      %p82 = scmp.ne.s32.totalorder %s65, %s81
      %p83 = scmp.eq.s32.totalorder %s31, 0
      %p84 = por %p82, %p83
      %s86 = sadd.s32 %s85, 1
      %p89 = scmp.eq.s32.totalorder %s25, 3
      %p90 = scmp.ne.s32.totalorder %s85, %s87
      %p91 = scmp.eq.s32.totalorder %s25, 0
      %p92 = por %p90, %p91
      %p93 = scmp.ne.s32.totalorder %s85, %s87
      %p94 = scmp.eq.s32.totalorder %s30, 3
      %p95 = por %p93, %p94
      %p96 = scmp.ne.s32.totalorder %s87, %s88
      %p97 = scmp.eq.s32.totalorder %s30, 0
      %p98 = por %p96, %p97
      %p99 = scmp.ne.s32.totalorder %s87, %s88
      %p100 = scmp.eq.s32.totalorder %s31, 3
      %p101 = por %p99, %p100
      %p103 = scmp.ne.s32.totalorder %s88, %s102
      %p104 = scmp.eq.s32.totalorder %s31, 0
      %p105 = por %p103, %p104
      %s107 = sadd.s32 %s106, 1
      %p110 = scmp.eq.s32.totalorder %s25, 3
      %p111 = scmp.ne.s32.totalorder %s106, %s108
      %p112 = scmp.eq.s32.totalorder %s25, 0
      %p113 = por %p111, %p112
      %p114 = scmp.ne.s32.totalorder %s106, %s108
      %p115 = scmp.eq.s32.totalorder %s30, 3
      %p116 = por %p114, %p115
      %p117 = scmp.ne.s32.totalorder %s108, %s109
      %p118 = scmp.eq.s32.totalorder %s30, 0
      %p119 = por %p117, %p118
      %p120 = scmp.ne.s32.totalorder %s108, %s109
      %p121 = scmp.eq.s32.totalorder %s31, 3
      %p122 = por %p120, %p121
      %p124 = scmp.ne.s32.totalorder %s109, %s123
      %p125 = scmp.eq.s32.totalorder %s31, 0
      %p126 = por %p124, %p125
      %s128 = sadd.s32 %s127, 1
      %p131 = scmp.eq.s32.totalorder %s25, 3
      %p132 = scmp.ne.s32.totalorder %s127, %s129
      %p133 = scmp.eq.s32.totalorder %s25, 0
      %p134 = por %p132, %p133
      %p135 = scmp.ne.s32.totalorder %s127, %s129
      %p136 = scmp.eq.s32.totalorder %s30, 3
      %p137 = por %p135, %p136
      %p138 = scmp.ne.s32.totalorder %s129, %s130
      %p139 = scmp.eq.s32.totalorder %s30, 0
      %p140 = por %p138, %p139
      %p141 = scmp.ne.s32.totalorder %s129, %s130
      %p142 = scmp.eq.s32.totalorder %s31, 3
      %p143 = por %p141, %p142
      %p145 = scmp.ne.s32.totalorder %s130, %s144
      %p146 = scmp.eq.s32.totalorder %s31, 0
      %p147 = por %p145, %p146
      %s149 = sadd.s32 %s148, 1
      %p152 = scmp.eq.s32.totalorder %s25, 3
      %p153 = scmp.ne.s32.totalorder %s148, %s150
      %p154 = scmp.eq.s32.totalorder %s25, 0
      %p155 = por %p153, %p154
      %p156 = scmp.ne.s32.totalorder %s148, %s150
      %p157 = scmp.eq.s32.totalorder %s30, 3
      %p158 = por %p156, %p157
      %p159 = scmp.ne.s32.totalorder %s150, %s151
      %p160 = scmp.eq.s32.totalorder %s30, 0
      %p161 = por %p159, %p160
      %p162 = scmp.ne.s32.totalorder %s150, %s151
      %p163 = scmp.eq.s32.totalorder %s31, 3
      %p164 = por %p162, %p163
      %p166 = scmp.ne.s32.totalorder %s151, %s165
      %p167 = scmp.eq.s32.totalorder %s31, 0
      %p168 = por %p166, %p167
      %s170 = sadd.s32 %s169, 1
      %p173 = scmp.eq.s32.totalorder %s25, 3
      %p174 = scmp.ne.s32.totalorder %s169, %s171
      %p175 = scmp.eq.s32.totalorder %s25, 0
      %p176 = por %p174, %p175
      %p177 = scmp.ne.s32.totalorder %s169, %s171
      %p178 = scmp.eq.s32.totalorder %s30, 3
      %p179 = por %p177, %p178
      %p180 = scmp.ne.s32.totalorder %s171, %s172
      %p181 = scmp.eq.s32.totalorder %s30, 0
      %p182 = por %p180, %p181
      %p183 = scmp.ne.s32.totalorder %s171, %s172
      %p184 = scmp.eq.s32.totalorder %s31, 3
      %p185 = por %p183, %p184
      %p187 = scmp.ne.s32.totalorder %s172, %s186
      %p188 = scmp.eq.s32.totalorder %s31, 0
      %p189 = por %p187, %p188
      %s191 = sadd.s32 %s190, 1
      %p194 = scmp.eq.s32.totalorder %s25, 3
      %p195 = scmp.ne.s32.totalorder %s190, %s192
      %p196 = scmp.eq.s32.totalorder %s25, 0
      %p197 = por %p195, %p196
      %p198 = scmp.ne.s32.totalorder %s190, %s192
      %p199 = scmp.eq.s32.totalorder %s30, 3
      %p200 = por %p198, %p199
      %p201 = scmp.ne.s32.totalorder %s192, %s193
      %p202 = scmp.eq.s32.totalorder %s30, 0
      %p203 = por %p201, %p202
      %p204 = scmp.ne.s32.totalorder %s192, %s193
      %p205 = scmp.eq.s32.totalorder %s31, 3
      %p206 = por %p204, %p205
      %p208 = scmp.ne.s32.totalorder %s193, %s207
      %p209 = scmp.eq.s32.totalorder %s31, 0
      %p210 = por %p208, %p209
      %s212 = sadd.s32 %s211, 1
      %p215 = scmp.eq.s32.totalorder %s25, 3
      %p216 = scmp.ne.s32.totalorder %s211, %s213
      %p217 = scmp.eq.s32.totalorder %s25, 0
      %p218 = por %p216, %p217
      %p219 = scmp.ne.s32.totalorder %s211, %s213
      %p220 = scmp.eq.s32.totalorder %s30, 3
      %p221 = por %p219, %p220
      %p222 = scmp.ne.s32.totalorder %s213, %s214
      %p223 = scmp.eq.s32.totalorder %s30, 0
      %p224 = por %p222, %p223
      %p225 = scmp.ne.s32.totalorder %s213, %s214
      %p226 = scmp.eq.s32.totalorder %s31, 3
      %p227 = por %p225, %p226
      %p229 = scmp.ne.s32.totalorder %s214, %s228
      %p230 = scmp.eq.s32.totalorder %s31, 0
      %p231 = por %p229, %p230
      %s233 = sadd.s32 %s232, 1
      %p236 = scmp.eq.s32.totalorder %s25, 3
      %p237 = scmp.ne.s32.totalorder %s232, %s234
      %p238 = scmp.eq.s32.totalorder %s25, 0
      %p239 = por %p237, %p238
      %p240 = scmp.ne.s32.totalorder %s232, %s234
      %p241 = scmp.eq.s32.totalorder %s30, 3
      %p242 = por %p240, %p241
      %p243 = scmp.ne.s32.totalorder %s234, %s235
      %p244 = scmp.eq.s32.totalorder %s30, 0
      %p245 = por %p243, %p244
      %p246 = scmp.ne.s32.totalorder %s234, %s235
      %p247 = scmp.eq.s32.totalorder %s31, 3
      %p248 = por %p246, %p247
      %p250 = scmp.ne.s32.totalorder %s235, %s249
      %p251 = scmp.eq.s32.totalorder %s31, 0
      %p252 = por %p250, %p251
      %s254 = sadd.s32 %s253, 1
      %p257 = scmp.eq.s32.totalorder %s25, 3
      %p258 = scmp.ne.s32.totalorder %s253, %s255
      %p259 = scmp.eq.s32.totalorder %s25, 0
      %p260 = por %p258, %p259
      %p261 = scmp.ne.s32.totalorder %s253, %s255
      %p262 = scmp.eq.s32.totalorder %s30, 3
      %p263 = por %p261, %p262
      %p264 = scmp.ne.s32.totalorder %s255, %s256
      %p265 = scmp.eq.s32.totalorder %s30, 0
      %p266 = por %p264, %p265
      %p267 = scmp.ne.s32.totalorder %s255, %s256
      %p268 = scmp.eq.s32.totalorder %s31, 3
      %p269 = por %p267, %p268
      %p271 = scmp.ne.s32.totalorder %s256, %s270
      %p272 = scmp.eq.s32.totalorder %s31, 0
      %p273 = por %p271, %p272
      %s275 = sadd.s32 %s274, 1
      %p278 = scmp.eq.s32.totalorder %s25, 3
      %p279 = scmp.ne.s32.totalorder %s274, %s276
      %p280 = scmp.eq.s32.totalorder %s25, 0
      %p281 = por %p279, %p280
      %p282 = scmp.ne.s32.totalorder %s274, %s276
      %p283 = scmp.eq.s32.totalorder %s30, 3
      %p284 = por %p282, %p283
      %p285 = scmp.ne.s32.totalorder %s276, %s277
      %p286 = scmp.eq.s32.totalorder %s30, 0
      %p287 = por %p285, %p286
      %p288 = scmp.ne.s32.totalorder %s276, %s277
      %p289 = scmp.eq.s32.totalorder %s31, 3
      %p290 = por %p288, %p289
      %p292 = scmp.ne.s32.totalorder %s277, %s291
      %p293 = scmp.eq.s32.totalorder %s31, 0
      %p294 = por %p292, %p293
      %p295 = scmp.le.s32.totalorder 1, %s25
      %p296 = scmp.lt.s32.totalorder %s25, 5
      %p297 = pnand %p295, %p296
      %p298 = pneg %p297
      // Predicated region
      $region9: #{resnet_classifier_forward.1} parent=5 // pred_check
        _
      $region10: #{resnet_classifier_forward.1} parent=5 // pred_check_branch
        %300 = sbr.rel (%p297) target = $region12
      $region11: #{resnet_classifier_forward.1} parent=5 // pred_region
        %s301 = ssub.s32 %s25, 1
        // Predicated region
        $region13: #{resnet_classifier_forward.1} parent=11 // pred_check
          %p302 = pneg %p98
        $region14: #{resnet_classifier_forward.1} parent=11 // pred_check_branch
          %304 = sbr.rel (%p302) target = $region16
        $region15: #{resnet_classifier_forward.1} parent=11 // pred_region
          %s306 = ssub.s32 128, 128
          %307 = vsyncadd [#allocation6], %s306
          %s309 = sshll.u32 [#allocation5], 4
          %s310 = int_to_ptr.vmem [resolvable:$true] %s309
          %312 = dma.hbm_to_vmem [thread:$0]  %s2, 128, %s310, [#allocation6]
        $region16: #{resnet_classifier_forward.1} parent=11 // pred_fallthru
          _
        // Predicated region
        $region17: #{resnet_classifier_forward.1} parent=11 // pred_check
          %p313 = pneg %p119
        $region18: #{resnet_classifier_forward.1} parent=11 // pred_check_branch
          %315 = sbr.rel (%p313) target = $region20
        $region19: #{resnet_classifier_forward.1} parent=11 // pred_region
          %s317 = ssub.s32 24576, 24576
          %318 = vsyncadd [#allocation6], %s317
          %s319 = sshll.u32 [#allocation7], 4
          %s320 = int_to_ptr.vmem [resolvable:$true] %s319
          %325 = dma.hbm_to_vmem [thread:$0]  %s3, 24576, %s320, [#allocation6], 192, 192, 12
        $region20: #{resnet_classifier_forward.1} parent=11 // pred_fallthru
          _
        // Predicated region
        $region21: #{resnet_classifier_forward.1} parent=11 // pred_check
          %p326 = pneg %p140
        $region22: #{resnet_classifier_forward.1} parent=11 // pred_check_branch
          %328 = sbr.rel (%p326) target = $region24
        $region23: #{resnet_classifier_forward.1} parent=11 // pred_region
          %s330 = ssub.s32 48, 48
          %331 = vsyncadd [#allocation9], %s330
          %s333 = sshll.u32 [#allocation8], 4
          %s334 = int_to_ptr.vmem [resolvable:$true] %s333
          %336 = dma.hbm_to_vmem [thread:$0]  %s4, 48, %s334, [#allocation9]
        $region24: #{resnet_classifier_forward.1} parent=11 // pred_fallthru
          _
        // Predicated region
        $region25: #{resnet_classifier_forward.1} parent=11 // pred_check
          %p337 = pneg %p161
        $region26: #{resnet_classifier_forward.1} parent=11 // pred_check_branch
          %339 = sbr.rel (%p337) target = $region28
        $region27: #{resnet_classifier_forward.1} parent=11 // pred_region
          %s341 = ssub.s32 48, 48
          %342 = vsyncadd [#allocation9], %s341
          %s344 = sshll.u32 [#allocation10], 4
          %s345 = int_to_ptr.vmem [resolvable:$true] %s344
          %347 = dma.hbm_to_vmem [thread:$0]  %s5, 48, %s345, [#allocation9]
        $region28: #{resnet_classifier_forward.1} parent=11 // pred_fallthru
          _
        // Predicated region
        $region29: #{resnet_classifier_forward.1} parent=11 // pred_check
          %p348 = pneg %p182
        $region30: #{resnet_classifier_forward.1} parent=11 // pred_check_branch
          %350 = sbr.rel (%p348) target = $region32
        $region31: #{resnet_classifier_forward.1} parent=11 // pred_region
          %s352 = ssub.s32 48, 48
          %353 = vsyncadd [#allocation12], %s352
          %s355 = sshll.u32 [#allocation11], 4
          %s356 = int_to_ptr.vmem [resolvable:$true] %s355
          %358 = dma.hbm_to_vmem [thread:$0]  %s6, 48, %s356, [#allocation12]
        $region32: #{resnet_classifier_forward.1} parent=11 // pred_fallthru
          _
        // Predicated region
        $region33: #{resnet_classifier_forward.1} parent=11 // pred_check
          %p359 = pneg %p203
        $region34: #{resnet_classifier_forward.1} parent=11 // pred_check_branch
          %361 = sbr.rel (%p359) target = $region36
        $region35: #{resnet_classifier_forward.1} parent=11 // pred_region
          %s363 = ssub.s32 9216, 9216
          %364 = vsyncadd [#allocation12], %s363
          %s365 = sshll.u32 [#allocation13], 4
          %s366 = int_to_ptr.vmem [resolvable:$true] %s365
          %371 = dma.hbm_to_vmem [thread:$0]  %s7, 9216, %s366, [#allocation12], 192, 192, 12
        $region36: #{resnet_classifier_forward.1} parent=11 // pred_fallthru
          _
        // Predicated region
        $region37: #{resnet_classifier_forward.1} parent=11 // pred_check
          %p372 = pneg %p224
        $region38: #{resnet_classifier_forward.1} parent=11 // pred_check_branch
          %374 = sbr.rel (%p372) target = $region40
        $region39: #{resnet_classifier_forward.1} parent=11 // pred_region
          %s376 = ssub.s32 48, 48
          %377 = vsyncadd [#allocation15], %s376
          %s379 = sshll.u32 [#allocation14], 4
          %s380 = int_to_ptr.vmem [resolvable:$true] %s379
          %382 = dma.hbm_to_vmem [thread:$0]  %s8, 48, %s380, [#allocation15]
        $region40: #{resnet_classifier_forward.1} parent=11 // pred_fallthru
          _
        // Predicated region
        $region41: #{resnet_classifier_forward.1} parent=11 // pred_check
          %p383 = pneg %p245
        $region42: #{resnet_classifier_forward.1} parent=11 // pred_check_branch
          %385 = sbr.rel (%p383) target = $region44
        $region43: #{resnet_classifier_forward.1} parent=11 // pred_region
          %s387 = ssub.s32 3072, 3072
          %388 = vsyncadd [#allocation15], %s387
          %s389 = sshll.u32 [#allocation16], 4
          %s390 = int_to_ptr.vmem [resolvable:$true] %s389
          %395 = dma.hbm_to_vmem [thread:$0]  %s9, 3072, %s390, [#allocation15], 64, 64, 4
        $region44: #{resnet_classifier_forward.1} parent=11 // pred_fallthru
          _
        // Predicated region
        $region45: #{resnet_classifier_forward.1} parent=11 // pred_check
          %p396 = pneg %p266
        $region46: #{resnet_classifier_forward.1} parent=11 // pred_check_branch
          %398 = sbr.rel (%p396) target = $region48
        $region47: #{resnet_classifier_forward.1} parent=11 // pred_region
          %s400 = ssub.s32 16, 16
          %401 = vsyncadd [#allocation18], %s400
          %s403 = sshll.u32 [#allocation17], 4
          %s404 = int_to_ptr.vmem [resolvable:$true] %s403
          %406 = dma.hbm_to_vmem [thread:$0]  %s10, 16, %s404, [#allocation18]
        $region48: #{resnet_classifier_forward.1} parent=11 // pred_fallthru
          _
      $region12: #{resnet_classifier_forward.1} parent=5 // pred_fallthru
        _
      %p407 = scmp.lt.s32.totalorder %s25, 4
      // Predicated region
      $region49: #{resnet_classifier_forward.1} parent=5 // pred_check
        %p408 = pneg %p407
      $region50: #{resnet_classifier_forward.1} parent=5 // pred_check_branch
        %410 = sbr.rel (%p408) target = $region52
      $region51: #{resnet_classifier_forward.1} parent=5 // pred_region
        // Predicated region
        $region53: #{resnet_classifier_forward.1} parent=51 // pred_check
          %p411 = pneg %p45
        $region54: #{resnet_classifier_forward.1} parent=51 // pred_check_branch
          %413 = sbr.rel (%p411) target = $region56
        $region55: #{resnet_classifier_forward.1} parent=51 // pred_region
          %s414 = smul.u32 4, %s25
          %p415 = scmp.lt.s32.totalorder %s414, 15
          %s416 = scalar_select %p415, %s414, 15
          %s417 = smul.addr %s416, 4
          %s418 = scalar_lea.vmem %s0, %s417
          %s419 = smul.u32 4, %s25
        $region56: #{resnet_classifier_forward.1} parent=51 // pred_fallthru
          _
        // Predicated region
        $region57: #{resnet_classifier_forward.1} parent=51 // pred_check
          %p420 = pneg %p71
        $region58: #{resnet_classifier_forward.1} parent=51 // pred_check_branch
          %422 = sbr.rel (%p420) target = $region60
        $region59: #{resnet_classifier_forward.1} parent=51 // pred_region
          %s423 = sand.u32 %s61, 1
          %s424 = scalar_lea.sflag [#allocation4], %s423
          %s425 = sand.u32 %s61, 1
          %s426 = smul.addr %s425, 2048
          %s427 = scalar_lea.vmem [#allocation3], %s426
          %s428 = smul.u32 64, %s25
          %s430 = ssub.s32 32768, 32768
          %431 = vsyncadd %s424, %s430
          %s432 = smul.addr %s428, 8
          %s433 = smul.addr %s432, 64
          %s434 = scalar_lea.hbm %s1, %s433
          %s435 = sshll.u32 %s427, 4
          %s436 = int_to_ptr.vmem [resolvable:$true] %s435
          %441 = dma.hbm_to_vmem [thread:$0]  %s434, 32768, %s436, %s424, 512, 512, 32
        $region60: #{resnet_classifier_forward.1} parent=51 // pred_fallthru
          _
      $region52: #{resnet_classifier_forward.1} parent=5 // pred_fallthru
        _
      %p442 = scmp.le.s32.totalorder 1, %s25
      %p443 = scmp.lt.s32.totalorder %s25, 5
      %p444 = pnand %p442, %p443
      %p445 = pneg %p444
      // Predicated region
      $region61: #{resnet_classifier_forward.1} parent=5 // pred_check
        _
      $region62: #{resnet_classifier_forward.1} parent=5 // pred_check_branch
        %447 = sbr.rel (%p444) target = $region64
      $region63: #{resnet_classifier_forward.1} parent=5 // pred_region
        %s448 = ssub.s32 %s25, 1
        %s449 = sand.u32 %s64, 1
        %s450 = scalar_lea.sflag [#allocation4], %s449
        %s451 = sand.u32 %s64, 1
        %s452 = smul.addr %s451, 2048
        %s453 = scalar_lea.vmem [#allocation3], %s452
        // Predicated region
        $region65: #{resnet_classifier_forward.1} parent=63 // pred_check
          %p454 = pneg %p77
        $region66: #{resnet_classifier_forward.1} parent=63 // pred_check_branch
          %456 = sbr.rel (%p454) target = $region68
        $region67: #{resnet_classifier_forward.1} parent=63 // pred_region
          %457 = dma.done %s450, 32768
        $region68: #{resnet_classifier_forward.1} parent=63 // pred_fallthru
          _
        // Predicated region
        $region69: #{resnet_classifier_forward.1} parent=63 // pred_check
          %p458 = pneg %p98
        $region70: #{resnet_classifier_forward.1} parent=63 // pred_check_branch
          %460 = sbr.rel (%p458) target = $region72
        $region71: #{resnet_classifier_forward.1} parent=63 // pred_region
          %461 = dma.done [#allocation6], 128
        $region72: #{resnet_classifier_forward.1} parent=63 // pred_fallthru
          _
        // Predicated region
        $region73: #{resnet_classifier_forward.1} parent=63 // pred_check
          %p462 = pneg %p119
        $region74: #{resnet_classifier_forward.1} parent=63 // pred_check_branch
          %464 = sbr.rel (%p462) target = $region76
        $region75: #{resnet_classifier_forward.1} parent=63 // pred_region
          %465 = dma.done [#allocation6], 24576
        $region76: #{resnet_classifier_forward.1} parent=63 // pred_fallthru
          _
        // Predicated region
        $region77: #{resnet_classifier_forward.1} parent=63 // pred_check
          %p466 = pneg %p140
        $region78: #{resnet_classifier_forward.1} parent=63 // pred_check_branch
          %468 = sbr.rel (%p466) target = $region80
        $region79: #{resnet_classifier_forward.1} parent=63 // pred_region
          %469 = dma.done [#allocation9], 48
        $region80: #{resnet_classifier_forward.1} parent=63 // pred_fallthru
          _
        // Predicated region
        $region81: #{resnet_classifier_forward.1} parent=63 // pred_check
          %p470 = pneg %p161
        $region82: #{resnet_classifier_forward.1} parent=63 // pred_check_branch
          %472 = sbr.rel (%p470) target = $region84
        $region83: #{resnet_classifier_forward.1} parent=63 // pred_region
          %473 = dma.done [#allocation9], 48
        $region84: #{resnet_classifier_forward.1} parent=63 // pred_fallthru
          _
        // Predicated region
        $region85: #{resnet_classifier_forward.1} parent=63 // pred_check
          %p474 = pneg %p182
        $region86: #{resnet_classifier_forward.1} parent=63 // pred_check_branch
          %476 = sbr.rel (%p474) target = $region88
        $region87: #{resnet_classifier_forward.1} parent=63 // pred_region
          %477 = dma.done [#allocation12], 48
        $region88: #{resnet_classifier_forward.1} parent=63 // pred_fallthru
          _
        // Predicated region
        $region89: #{resnet_classifier_forward.1} parent=63 // pred_check
          %p478 = pneg %p203
        $region90: #{resnet_classifier_forward.1} parent=63 // pred_check_branch
          %480 = sbr.rel (%p478) target = $region92
        $region91: #{resnet_classifier_forward.1} parent=63 // pred_region
          %481 = dma.done [#allocation12], 9216
        $region92: #{resnet_classifier_forward.1} parent=63 // pred_fallthru
          _
        // Predicated region
        $region93: #{resnet_classifier_forward.1} parent=63 // pred_check
          %p482 = pneg %p224
        $region94: #{resnet_classifier_forward.1} parent=63 // pred_check_branch
          %484 = sbr.rel (%p482) target = $region96
        $region95: #{resnet_classifier_forward.1} parent=63 // pred_region
          %485 = dma.done [#allocation15], 48
        $region96: #{resnet_classifier_forward.1} parent=63 // pred_fallthru
          _
        // Predicated region
        $region97: #{resnet_classifier_forward.1} parent=63 // pred_check
          %p486 = pneg %p245
        $region98: #{resnet_classifier_forward.1} parent=63 // pred_check_branch
          %488 = sbr.rel (%p486) target = $region100
        $region99: #{resnet_classifier_forward.1} parent=63 // pred_region
          %489 = dma.done [#allocation15], 3072
        $region100: #{resnet_classifier_forward.1} parent=63 // pred_fallthru
          _
        // Predicated region
        $region101: #{resnet_classifier_forward.1} parent=63 // pred_check
          %p490 = pneg %p266
        $region102: #{resnet_classifier_forward.1} parent=63 // pred_check_branch
          %492 = sbr.rel (%p490) target = $region104
        $region103: #{resnet_classifier_forward.1} parent=63 // pred_region
          %493 = dma.done [#allocation18], 16
        $region104: #{resnet_classifier_forward.1} parent=63 // pred_fallthru
          _
        %s494 = smul.u32 4, %s30
        %p495 = scmp.lt.s32.totalorder %s494, 15
        %s496 = scalar_select %p495, %s494, 15
        %s497 = smul.addr %s496, 4
        %s498 = scalar_lea.vmem %s0, %s497
        %p499 = pneg %p51
        %p500 = pneg %p48
        %s501 = sand.u32 %s64, 1
        %s502 = scalar_lea.sflag [#allocation4], %s501
        %s503 = sand.u32 %s64, 1
        %s504 = smul.addr %s503, 2048
        %s505 = scalar_lea.vmem [#allocation3], %s504
        %p506 = pneg %p77
        %p507 = pneg %p74
        %p508 = pneg %p98
        %p509 = pneg %p95
        %p510 = pneg %p119
        %p511 = pneg %p116
        %p512 = pneg %p140
        %p513 = pneg %p137
        %p514 = pneg %p161
        %p515 = pneg %p158
        %p516 = pneg %p182
        %p517 = pneg %p179
        %p518 = pneg %p203
        %p519 = pneg %p200
        %p520 = pneg %p224
        %p521 = pneg %p221
        %p522 = pneg %p245
        %p523 = pneg %p242
        %p524 = pneg %p266
        %p525 = pneg %p263
        %p526 = pneg %p287
        %p527 = pneg %p284
        %s528 = smul.u32 4, %s30
        %p529 = scmp.lt.s32.totalorder %s528, 15
        %s530 = scalar_select %p529, %s528, 15
        %s531 = smul.addr %s530, 4
        %s532 = scalar_lea.vmem %s0, %s531
        %s533 = smul.u32 4, %s30
        %s534 = smul.u32 64, %s30
        %p536 = scmp.eq.s32.totalorder %s30, 0
        // Predicated region
        $region105: #{resnet_classifier_forward.1} parent=63 // pred_check
          %p537 = pneg %p536
        $region106: #{resnet_classifier_forward.1} parent=63 // pred_check_branch
          %539 = sbr.rel (%p537) target = $region108
        $region107: #{resnet_classifier_forward.1} parent=63 // pred_region
          %v540 = vld [vmem:[#allocation5] sm:$0xff]
          %v542 = vlaneseq
          %v543 = vshrl.u32 %v542, 7
          %v544 = vsub.s32 0, %v543
          %v545 = vrot.slane %v540, %v544
          %v546 = vlaneseq
          %v547 = vshrl.u32 %v546, 7
          %v548 = vsub.s32 1, %v547
          %v549 = vrot.slane %v540, %v548
          %v550 = vlaneseq
          %v551 = vshrl.u32 %v550, 7
          %v552 = vsub.s32 2, %v551
          %v553 = vrot.slane %v540, %v552
          %v554 = vlaneseq
          %v555 = vshrl.u32 %v554, 7
          %v556 = vsub.s32 3, %v555
          %v557 = vrot.slane %v540, %v556
          %v558 = vlaneseq
          %v559 = vshrl.u32 %v558, 7
          %v560 = vsub.s32 4, %v559
          %v561 = vrot.slane %v540, %v560
          %v562 = vlaneseq
          %v563 = vshrl.u32 %v562, 7
          %v564 = vsub.s32 5, %v563
          %v565 = vrot.slane %v540, %v564
          %v566 = vlaneseq
          %v567 = vshrl.u32 %v566, 7
          %v568 = vsub.s32 6, %v567
          %v569 = vrot.slane %v540, %v568
          %v570 = vlaneseq
          %v571 = vshrl.u32 %v570, 7
          %v572 = vsub.s32 7, %v571
          %v573 = vrot.slane %v540, %v572
          %582 = vst [vmem:[#allocation2] sm:$0xff] %v545
          %583 = vst [vmem:[#allocation2 + $0x8] sm:$0xff] %v549
          %584 = vst [vmem:[#allocation2 + $0x10] sm:$0xff] %v553
          %585 = vst [vmem:[#allocation2 + $0x18] sm:$0xff] %v557
          %586 = vst [vmem:[#allocation2 + $0x20] sm:$0xff] %v561
          %587 = vst [vmem:[#allocation2 + $0x28] sm:$0xff] %v565
          %588 = vst [vmem:[#allocation2 + $0x30] sm:$0xff] %v569
          %589 = vst [vmem:[#allocation2 + $0x38] sm:$0xff] %v573
        $region108: #{resnet_classifier_forward.1} parent=63 // pred_fallthru
          _
        %v590 = vld [vmem:[#allocation2] sm:$0xff]
        %v591 = vld [vmem:[#allocation2 + $0x8] sm:$0xff]
        %v592 = vld [vmem:[#allocation2 + $0x10] sm:$0xff]
        %v593 = vld [vmem:[#allocation2 + $0x18] sm:$0xff]
        %v594 = vld [vmem:[#allocation2 + $0x20] sm:$0xff]
        %v595 = vld [vmem:[#allocation2 + $0x28] sm:$0xff]
        %v596 = vld [vmem:[#allocation2 + $0x30] sm:$0xff]
        %v597 = vld [vmem:[#allocation2 + $0x38] sm:$0xff]
        %v598 = vld [vmem:[%s532] sm:$0xff]
        %v599 = vld [vmem:[%s532 + $0x8] sm:$0xff]
        %v600 = vld [vmem:[%s453] sm:$0xff]
        %v601 = vld [vmem:[%s453 + $0x8] sm:$0xff]
        %v602 = vld [vmem:[%s453 + $0x10] sm:$0xff]
        %v603 = vld [vmem:[%s453 + $0x18] sm:$0xff]
        %v604 = vld [vmem:[%s453 + $0x20] sm:$0xff]
        %v605 = vld [vmem:[%s453 + $0x28] sm:$0xff]
        %v606 = vld [vmem:[%s453 + $0x30] sm:$0xff]
        %v607 = vld [vmem:[%s453 + $0x38] sm:$0xff]
        %v608 = vld [vmem:[%s453 + $0x40] sm:$0xff]
        %v609 = vld [vmem:[%s453 + $0x48] sm:$0xff]
        %v610 = vld [vmem:[%s453 + $0x50] sm:$0xff]
        %v611 = vld [vmem:[%s453 + $0x58] sm:$0xff]
        %v612 = vld [vmem:[%s453 + $0x60] sm:$0xff]
        %v613 = vld [vmem:[%s453 + $0x68] sm:$0xff]
        %v614 = vld [vmem:[%s453 + $0x70] sm:$0xff]
        %v615 = vld [vmem:[%s453 + $0x78] sm:$0xff]
        %v616 = vld [vmem:[%s453 + $0x80] sm:$0xff]
        %v617 = vld [vmem:[%s453 + $0x88] sm:$0xff]
        %v618 = vld [vmem:[%s453 + $0x90] sm:$0xff]
        %v619 = vld [vmem:[%s453 + $0x98] sm:$0xff]
        %v620 = vld [vmem:[%s453 + $0xa0] sm:$0xff]
        %v621 = vld [vmem:[%s453 + $0xa8] sm:$0xff]
        %v622 = vld [vmem:[%s453 + $0xb0] sm:$0xff]
        %v623 = vld [vmem:[%s453 + $0xb8] sm:$0xff]
        %v624 = vld [vmem:[%s453 + $0xc0] sm:$0xff]
        %v625 = vld [vmem:[%s453 + $0xc8] sm:$0xff]
        %v626 = vld [vmem:[%s453 + $0xd0] sm:$0xff]
        %v627 = vld [vmem:[%s453 + $0xd8] sm:$0xff]
        %v628 = vld [vmem:[%s453 + $0xe0] sm:$0xff]
        %v629 = vld [vmem:[%s453 + $0xe8] sm:$0xff]
        %v630 = vld [vmem:[%s453 + $0xf0] sm:$0xff]
        %v631 = vld [vmem:[%s453 + $0xf8] sm:$0xff]
        %v632 = vld [vmem:[%s453 + $0x100] sm:$0xff]
        %v633 = vld [vmem:[%s453 + $0x108] sm:$0xff]
        %v634 = vld [vmem:[%s453 + $0x110] sm:$0xff]
        %v635 = vld [vmem:[%s453 + $0x118] sm:$0xff]
        %v636 = vld [vmem:[%s453 + $0x120] sm:$0xff]
        %v637 = vld [vmem:[%s453 + $0x128] sm:$0xff]
        %v638 = vld [vmem:[%s453 + $0x130] sm:$0xff]
        %v639 = vld [vmem:[%s453 + $0x138] sm:$0xff]
        %v640 = vld [vmem:[%s453 + $0x140] sm:$0xff]
        %v641 = vld [vmem:[%s453 + $0x148] sm:$0xff]
        %v642 = vld [vmem:[%s453 + $0x150] sm:$0xff]
        %v643 = vld [vmem:[%s453 + $0x158] sm:$0xff]
        %v644 = vld [vmem:[%s453 + $0x160] sm:$0xff]
        %v645 = vld [vmem:[%s453 + $0x168] sm:$0xff]
        %v646 = vld [vmem:[%s453 + $0x170] sm:$0xff]
        %v647 = vld [vmem:[%s453 + $0x178] sm:$0xff]
        %v648 = vld [vmem:[%s453 + $0x180] sm:$0xff]
        %v649 = vld [vmem:[%s453 + $0x188] sm:$0xff]
        %v650 = vld [vmem:[%s453 + $0x190] sm:$0xff]
        %v651 = vld [vmem:[%s453 + $0x198] sm:$0xff]
        %v652 = vld [vmem:[%s453 + $0x1a0] sm:$0xff]
        %v653 = vld [vmem:[%s453 + $0x1a8] sm:$0xff]
        %v654 = vld [vmem:[%s453 + $0x1b0] sm:$0xff]
        %v655 = vld [vmem:[%s453 + $0x1b8] sm:$0xff]
        %v656 = vld [vmem:[%s453 + $0x1c0] sm:$0xff]
        %v657 = vld [vmem:[%s453 + $0x1c8] sm:$0xff]
        %v658 = vld [vmem:[%s453 + $0x1d0] sm:$0xff]
        %v659 = vld [vmem:[%s453 + $0x1d8] sm:$0xff]
        %v660 = vld [vmem:[%s453 + $0x1e0] sm:$0xff]
        %v661 = vld [vmem:[%s453 + $0x1e8] sm:$0xff]
        %v662 = vld [vmem:[%s453 + $0x1f0] sm:$0xff]
        %v663 = vld [vmem:[%s453 + $0x1f8] sm:$0xff]
        %v664 = vld [vmem:[%s453 + $0x200] sm:$0xff]
        %v665 = vld [vmem:[%s453 + $0x208] sm:$0xff]
        %v666 = vld [vmem:[%s453 + $0x210] sm:$0xff]
        %v667 = vld [vmem:[%s453 + $0x218] sm:$0xff]
        %v668 = vld [vmem:[%s453 + $0x220] sm:$0xff]
        %v669 = vld [vmem:[%s453 + $0x228] sm:$0xff]
        %v670 = vld [vmem:[%s453 + $0x230] sm:$0xff]
        %v671 = vld [vmem:[%s453 + $0x238] sm:$0xff]
        %v672 = vld [vmem:[%s453 + $0x240] sm:$0xff]
        %v673 = vld [vmem:[%s453 + $0x248] sm:$0xff]
        %v674 = vld [vmem:[%s453 + $0x250] sm:$0xff]
        %v675 = vld [vmem:[%s453 + $0x258] sm:$0xff]
        %v676 = vld [vmem:[%s453 + $0x260] sm:$0xff]
        %v677 = vld [vmem:[%s453 + $0x268] sm:$0xff]
        %v678 = vld [vmem:[%s453 + $0x270] sm:$0xff]
        %v679 = vld [vmem:[%s453 + $0x278] sm:$0xff]
        %v680 = vld [vmem:[%s453 + $0x280] sm:$0xff]
        %v681 = vld [vmem:[%s453 + $0x288] sm:$0xff]
        %v682 = vld [vmem:[%s453 + $0x290] sm:$0xff]
        %v683 = vld [vmem:[%s453 + $0x298] sm:$0xff]
        %v684 = vld [vmem:[%s453 + $0x2a0] sm:$0xff]
        %v685 = vld [vmem:[%s453 + $0x2a8] sm:$0xff]
        %v686 = vld [vmem:[%s453 + $0x2b0] sm:$0xff]
        %v687 = vld [vmem:[%s453 + $0x2b8] sm:$0xff]
        %v688 = vld [vmem:[%s453 + $0x2c0] sm:$0xff]
        %v689 = vld [vmem:[%s453 + $0x2c8] sm:$0xff]
        %v690 = vld [vmem:[%s453 + $0x2d0] sm:$0xff]
        %v691 = vld [vmem:[%s453 + $0x2d8] sm:$0xff]
        %v692 = vld [vmem:[%s453 + $0x2e0] sm:$0xff]
        %v693 = vld [vmem:[%s453 + $0x2e8] sm:$0xff]
        %v694 = vld [vmem:[%s453 + $0x2f0] sm:$0xff]
        %v695 = vld [vmem:[%s453 + $0x2f8] sm:$0xff]
        %v696 = vld [vmem:[%s453 + $0x300] sm:$0xff]
        %v697 = vld [vmem:[%s453 + $0x308] sm:$0xff]
        %v698 = vld [vmem:[%s453 + $0x310] sm:$0xff]
        %v699 = vld [vmem:[%s453 + $0x318] sm:$0xff]
        %v700 = vld [vmem:[%s453 + $0x320] sm:$0xff]
        %v701 = vld [vmem:[%s453 + $0x328] sm:$0xff]
        %v702 = vld [vmem:[%s453 + $0x330] sm:$0xff]
        %v703 = vld [vmem:[%s453 + $0x338] sm:$0xff]
        %v704 = vld [vmem:[%s453 + $0x340] sm:$0xff]
        %v705 = vld [vmem:[%s453 + $0x348] sm:$0xff]
        %v706 = vld [vmem:[%s453 + $0x350] sm:$0xff]
        %v707 = vld [vmem:[%s453 + $0x358] sm:$0xff]
        %v708 = vld [vmem:[%s453 + $0x360] sm:$0xff]
        %v709 = vld [vmem:[%s453 + $0x368] sm:$0xff]
        %v710 = vld [vmem:[%s453 + $0x370] sm:$0xff]
        %v711 = vld [vmem:[%s453 + $0x378] sm:$0xff]
        %v712 = vld [vmem:[%s453 + $0x380] sm:$0xff]
        %v713 = vld [vmem:[%s453 + $0x388] sm:$0xff]
        %v714 = vld [vmem:[%s453 + $0x390] sm:$0xff]
        %v715 = vld [vmem:[%s453 + $0x398] sm:$0xff]
        %v716 = vld [vmem:[%s453 + $0x3a0] sm:$0xff]
        %v717 = vld [vmem:[%s453 + $0x3a8] sm:$0xff]
        %v718 = vld [vmem:[%s453 + $0x3b0] sm:$0xff]
        %v719 = vld [vmem:[%s453 + $0x3b8] sm:$0xff]
        %v720 = vld [vmem:[%s453 + $0x3c0] sm:$0xff]
        %v721 = vld [vmem:[%s453 + $0x3c8] sm:$0xff]
        %v722 = vld [vmem:[%s453 + $0x3d0] sm:$0xff]
        %v723 = vld [vmem:[%s453 + $0x3d8] sm:$0xff]
        %v724 = vld [vmem:[%s453 + $0x3e0] sm:$0xff]
        %v725 = vld [vmem:[%s453 + $0x3e8] sm:$0xff]
        %v726 = vld [vmem:[%s453 + $0x3f0] sm:$0xff]
        %v727 = vld [vmem:[%s453 + $0x3f8] sm:$0xff]
        %v728 = vld [vmem:[%s453 + $0x400] sm:$0xff]
        %v729 = vld [vmem:[%s453 + $0x408] sm:$0xff]
        %v730 = vld [vmem:[%s453 + $0x410] sm:$0xff]
        %v731 = vld [vmem:[%s453 + $0x418] sm:$0xff]
        %v732 = vld [vmem:[%s453 + $0x420] sm:$0xff]
        %v733 = vld [vmem:[%s453 + $0x428] sm:$0xff]
        %v734 = vld [vmem:[%s453 + $0x430] sm:$0xff]
        %v735 = vld [vmem:[%s453 + $0x438] sm:$0xff]
        %v736 = vld [vmem:[%s453 + $0x440] sm:$0xff]
        %v737 = vld [vmem:[%s453 + $0x448] sm:$0xff]
        %v738 = vld [vmem:[%s453 + $0x450] sm:$0xff]
        %v739 = vld [vmem:[%s453 + $0x458] sm:$0xff]
        %v740 = vld [vmem:[%s453 + $0x460] sm:$0xff]
        %v741 = vld [vmem:[%s453 + $0x468] sm:$0xff]
        %v742 = vld [vmem:[%s453 + $0x470] sm:$0xff]
        %v743 = vld [vmem:[%s453 + $0x478] sm:$0xff]
        %v744 = vld [vmem:[%s453 + $0x480] sm:$0xff]
        %v745 = vld [vmem:[%s453 + $0x488] sm:$0xff]
        %v746 = vld [vmem:[%s453 + $0x490] sm:$0xff]
        %v747 = vld [vmem:[%s453 + $0x498] sm:$0xff]
        %v748 = vld [vmem:[%s453 + $0x4a0] sm:$0xff]
        %v749 = vld [vmem:[%s453 + $0x4a8] sm:$0xff]
        %v750 = vld [vmem:[%s453 + $0x4b0] sm:$0xff]
        %v751 = vld [vmem:[%s453 + $0x4b8] sm:$0xff]
        %v752 = vld [vmem:[%s453 + $0x4c0] sm:$0xff]
        %v753 = vld [vmem:[%s453 + $0x4c8] sm:$0xff]
        %v754 = vld [vmem:[%s453 + $0x4d0] sm:$0xff]
        %v755 = vld [vmem:[%s453 + $0x4d8] sm:$0xff]
        %v756 = vld [vmem:[%s453 + $0x4e0] sm:$0xff]
        %v757 = vld [vmem:[%s453 + $0x4e8] sm:$0xff]
        %v758 = vld [vmem:[%s453 + $0x4f0] sm:$0xff]
        %v759 = vld [vmem:[%s453 + $0x4f8] sm:$0xff]
        %v760 = vld [vmem:[%s453 + $0x500] sm:$0xff]
        %v761 = vld [vmem:[%s453 + $0x508] sm:$0xff]
        %v762 = vld [vmem:[%s453 + $0x510] sm:$0xff]
        %v763 = vld [vmem:[%s453 + $0x518] sm:$0xff]
        %v764 = vld [vmem:[%s453 + $0x520] sm:$0xff]
        %v765 = vld [vmem:[%s453 + $0x528] sm:$0xff]
        %v766 = vld [vmem:[%s453 + $0x530] sm:$0xff]
        %v767 = vld [vmem:[%s453 + $0x538] sm:$0xff]
        %v768 = vld [vmem:[%s453 + $0x540] sm:$0xff]
        %v769 = vld [vmem:[%s453 + $0x548] sm:$0xff]
        %v770 = vld [vmem:[%s453 + $0x550] sm:$0xff]
        %v771 = vld [vmem:[%s453 + $0x558] sm:$0xff]
        %v772 = vld [vmem:[%s453 + $0x560] sm:$0xff]
        %v773 = vld [vmem:[%s453 + $0x568] sm:$0xff]
        %v774 = vld [vmem:[%s453 + $0x570] sm:$0xff]
        %v775 = vld [vmem:[%s453 + $0x578] sm:$0xff]
        %v776 = vld [vmem:[%s453 + $0x580] sm:$0xff]
        %v777 = vld [vmem:[%s453 + $0x588] sm:$0xff]
        %v778 = vld [vmem:[%s453 + $0x590] sm:$0xff]
        %v779 = vld [vmem:[%s453 + $0x598] sm:$0xff]
        %v780 = vld [vmem:[%s453 + $0x5a0] sm:$0xff]
        %v781 = vld [vmem:[%s453 + $0x5a8] sm:$0xff]
        %v782 = vld [vmem:[%s453 + $0x5b0] sm:$0xff]
        %v783 = vld [vmem:[%s453 + $0x5b8] sm:$0xff]
        %v784 = vld [vmem:[%s453 + $0x5c0] sm:$0xff]
        %v785 = vld [vmem:[%s453 + $0x5c8] sm:$0xff]
        %v786 = vld [vmem:[%s453 + $0x5d0] sm:$0xff]
        %v787 = vld [vmem:[%s453 + $0x5d8] sm:$0xff]
        %v788 = vld [vmem:[%s453 + $0x5e0] sm:$0xff]
        %v789 = vld [vmem:[%s453 + $0x5e8] sm:$0xff]
        %v790 = vld [vmem:[%s453 + $0x5f0] sm:$0xff]
        %v791 = vld [vmem:[%s453 + $0x5f8] sm:$0xff]
        %v792 = vld [vmem:[%s453 + $0x600] sm:$0xff]
        %v793 = vld [vmem:[%s453 + $0x608] sm:$0xff]
        %v794 = vld [vmem:[%s453 + $0x610] sm:$0xff]
        %v795 = vld [vmem:[%s453 + $0x618] sm:$0xff]
        %v796 = vld [vmem:[%s453 + $0x620] sm:$0xff]
        %v797 = vld [vmem:[%s453 + $0x628] sm:$0xff]
        %v798 = vld [vmem:[%s453 + $0x630] sm:$0xff]
        %v799 = vld [vmem:[%s453 + $0x638] sm:$0xff]
        %v800 = vld [vmem:[%s453 + $0x640] sm:$0xff]
        %v801 = vld [vmem:[%s453 + $0x648] sm:$0xff]
        %v802 = vld [vmem:[%s453 + $0x650] sm:$0xff]
        %v803 = vld [vmem:[%s453 + $0x658] sm:$0xff]
        %v804 = vld [vmem:[%s453 + $0x660] sm:$0xff]
        %v805 = vld [vmem:[%s453 + $0x668] sm:$0xff]
        %v806 = vld [vmem:[%s453 + $0x670] sm:$0xff]
        %v807 = vld [vmem:[%s453 + $0x678] sm:$0xff]
        %v808 = vld [vmem:[%s453 + $0x680] sm:$0xff]
        %v809 = vld [vmem:[%s453 + $0x688] sm:$0xff]
        %v810 = vld [vmem:[%s453 + $0x690] sm:$0xff]
        %v811 = vld [vmem:[%s453 + $0x698] sm:$0xff]
        %v812 = vld [vmem:[%s453 + $0x6a0] sm:$0xff]
        %v813 = vld [vmem:[%s453 + $0x6a8] sm:$0xff]
        %v814 = vld [vmem:[%s453 + $0x6b0] sm:$0xff]
        %v815 = vld [vmem:[%s453 + $0x6b8] sm:$0xff]
        %v816 = vld [vmem:[%s453 + $0x6c0] sm:$0xff]
        %v817 = vld [vmem:[%s453 + $0x6c8] sm:$0xff]
        %v818 = vld [vmem:[%s453 + $0x6d0] sm:$0xff]
        %v819 = vld [vmem:[%s453 + $0x6d8] sm:$0xff]
        %v820 = vld [vmem:[%s453 + $0x6e0] sm:$0xff]
        %v821 = vld [vmem:[%s453 + $0x6e8] sm:$0xff]
        %v822 = vld [vmem:[%s453 + $0x6f0] sm:$0xff]
        %v823 = vld [vmem:[%s453 + $0x6f8] sm:$0xff]
        %v824 = vld [vmem:[%s453 + $0x700] sm:$0xff]
        %v825 = vld [vmem:[%s453 + $0x708] sm:$0xff]
        %v826 = vld [vmem:[%s453 + $0x710] sm:$0xff]
        %v827 = vld [vmem:[%s453 + $0x718] sm:$0xff]
        %v828 = vld [vmem:[%s453 + $0x720] sm:$0xff]
        %v829 = vld [vmem:[%s453 + $0x728] sm:$0xff]
        %v830 = vld [vmem:[%s453 + $0x730] sm:$0xff]
        %v831 = vld [vmem:[%s453 + $0x738] sm:$0xff]
        %v832 = vld [vmem:[%s453 + $0x740] sm:$0xff]
        %v833 = vld [vmem:[%s453 + $0x748] sm:$0xff]
        %v834 = vld [vmem:[%s453 + $0x750] sm:$0xff]
        %v835 = vld [vmem:[%s453 + $0x758] sm:$0xff]
        %v836 = vld [vmem:[%s453 + $0x760] sm:$0xff]
        %v837 = vld [vmem:[%s453 + $0x768] sm:$0xff]
        %v838 = vld [vmem:[%s453 + $0x770] sm:$0xff]
        %v839 = vld [vmem:[%s453 + $0x778] sm:$0xff]
        %v840 = vld [vmem:[%s453 + $0x780] sm:$0xff]
        %v841 = vld [vmem:[%s453 + $0x788] sm:$0xff]
        %v842 = vld [vmem:[%s453 + $0x790] sm:$0xff]
        %v843 = vld [vmem:[%s453 + $0x798] sm:$0xff]
        %v844 = vld [vmem:[%s453 + $0x7a0] sm:$0xff]
        %v845 = vld [vmem:[%s453 + $0x7a8] sm:$0xff]
        %v846 = vld [vmem:[%s453 + $0x7b0] sm:$0xff]
        %v847 = vld [vmem:[%s453 + $0x7b8] sm:$0xff]
        %v848 = vld [vmem:[%s453 + $0x7c0] sm:$0xff]
        %v849 = vld [vmem:[%s453 + $0x7c8] sm:$0xff]
        %v850 = vld [vmem:[%s453 + $0x7d0] sm:$0xff]
        %v851 = vld [vmem:[%s453 + $0x7d8] sm:$0xff]
        %v852 = vld [vmem:[%s453 + $0x7e0] sm:$0xff]
        %v853 = vld [vmem:[%s453 + $0x7e8] sm:$0xff]
        %v854 = vld [vmem:[%s453 + $0x7f0] sm:$0xff]
        %v855 = vld [vmem:[%s453 + $0x7f8] sm:$0xff]
        %v858 = vunpack.c.l.b16 %v598
        %v859 = vunpack.c.h.b16 %v598
        %v860 = vunpack.c.l.b16 %v599
        %v861 = vunpack.c.h.b16 %v599
        %v862 = vpack.c.b16 %v858, %v858
        %v863 = vpack.c.b16 %v859, %v859
        %v864 = vpack.c.b16 %v860, %v860
        %v865 = vpack.c.b16 %v861, %v861
        %v1126 = vunpack.c.l.b16 %v600
        %v1127 = vunpack.c.h.b16 %v600
        %v1128 = vunpack.c.l.b16 %v601
        %v1129 = vunpack.c.h.b16 %v601
        %v1130 = vunpack.c.l.b16 %v602
        %v1131 = vunpack.c.h.b16 %v602
        %v1132 = vunpack.c.l.b16 %v603
        %v1133 = vunpack.c.h.b16 %v603
        %v1134 = vunpack.c.l.b16 %v604
        %v1135 = vunpack.c.h.b16 %v604
        %v1136 = vunpack.c.l.b16 %v605
        %v1137 = vunpack.c.h.b16 %v605
        %v1138 = vunpack.c.l.b16 %v606
        %v1139 = vunpack.c.h.b16 %v606
        %v1140 = vunpack.c.l.b16 %v607
        %v1141 = vunpack.c.h.b16 %v607
        %v1142 = vunpack.c.l.b16 %v608
        %v1143 = vunpack.c.h.b16 %v608
        %v1144 = vunpack.c.l.b16 %v609
        %v1145 = vunpack.c.h.b16 %v609
        %v1146 = vunpack.c.l.b16 %v610
        %v1147 = vunpack.c.h.b16 %v610
        %v1148 = vunpack.c.l.b16 %v611
        %v1149 = vunpack.c.h.b16 %v611
        %v1150 = vunpack.c.l.b16 %v612
        %v1151 = vunpack.c.h.b16 %v612
        %v1152 = vunpack.c.l.b16 %v613
        %v1153 = vunpack.c.h.b16 %v613
        %v1154 = vunpack.c.l.b16 %v614
        %v1155 = vunpack.c.h.b16 %v614
        %v1156 = vunpack.c.l.b16 %v615
        %v1157 = vunpack.c.h.b16 %v615
        %v1158 = vunpack.c.l.b16 %v616
        %v1159 = vunpack.c.h.b16 %v616
        %v1160 = vunpack.c.l.b16 %v617
        %v1161 = vunpack.c.h.b16 %v617
        %v1162 = vunpack.c.l.b16 %v618
        %v1163 = vunpack.c.h.b16 %v618
        %v1164 = vunpack.c.l.b16 %v619
        %v1165 = vunpack.c.h.b16 %v619
        %v1166 = vunpack.c.l.b16 %v620
        %v1167 = vunpack.c.h.b16 %v620
        %v1168 = vunpack.c.l.b16 %v621
        %v1169 = vunpack.c.h.b16 %v621
        %v1170 = vunpack.c.l.b16 %v622
        %v1171 = vunpack.c.h.b16 %v622
        %v1172 = vunpack.c.l.b16 %v623
        %v1173 = vunpack.c.h.b16 %v623
        %v1174 = vunpack.c.l.b16 %v624
        %v1175 = vunpack.c.h.b16 %v624
        %v1176 = vunpack.c.l.b16 %v625
        %v1177 = vunpack.c.h.b16 %v625
        %v1178 = vunpack.c.l.b16 %v626
        %v1179 = vunpack.c.h.b16 %v626
        %v1180 = vunpack.c.l.b16 %v627
        %v1181 = vunpack.c.h.b16 %v627
        %v1182 = vunpack.c.l.b16 %v628
        %v1183 = vunpack.c.h.b16 %v628
        %v1184 = vunpack.c.l.b16 %v629
        %v1185 = vunpack.c.h.b16 %v629
        %v1186 = vunpack.c.l.b16 %v630
        %v1187 = vunpack.c.h.b16 %v630
        %v1188 = vunpack.c.l.b16 %v631
        %v1189 = vunpack.c.h.b16 %v631
        %v1190 = vunpack.c.l.b16 %v632
        %v1191 = vunpack.c.h.b16 %v632
        %v1192 = vunpack.c.l.b16 %v633
        %v1193 = vunpack.c.h.b16 %v633
        %v1194 = vunpack.c.l.b16 %v634
        %v1195 = vunpack.c.h.b16 %v634
        %v1196 = vunpack.c.l.b16 %v635
        %v1197 = vunpack.c.h.b16 %v635
        %v1198 = vunpack.c.l.b16 %v636
        %v1199 = vunpack.c.h.b16 %v636
        %v1200 = vunpack.c.l.b16 %v637
        %v1201 = vunpack.c.h.b16 %v637
        %v1202 = vunpack.c.l.b16 %v638
        %v1203 = vunpack.c.h.b16 %v638
        %v1204 = vunpack.c.l.b16 %v639
        %v1205 = vunpack.c.h.b16 %v639
        %v1206 = vunpack.c.l.b16 %v640
        %v1207 = vunpack.c.h.b16 %v640
        %v1208 = vunpack.c.l.b16 %v641
        %v1209 = vunpack.c.h.b16 %v641
        %v1210 = vunpack.c.l.b16 %v642
        %v1211 = vunpack.c.h.b16 %v642
        %v1212 = vunpack.c.l.b16 %v643
        %v1213 = vunpack.c.h.b16 %v643
        %v1214 = vunpack.c.l.b16 %v644
        %v1215 = vunpack.c.h.b16 %v644
        %v1216 = vunpack.c.l.b16 %v645
        %v1217 = vunpack.c.h.b16 %v645
        %v1218 = vunpack.c.l.b16 %v646
        %v1219 = vunpack.c.h.b16 %v646
        %v1220 = vunpack.c.l.b16 %v647
        %v1221 = vunpack.c.h.b16 %v647
        %v1222 = vunpack.c.l.b16 %v648
        %v1223 = vunpack.c.h.b16 %v648
        %v1224 = vunpack.c.l.b16 %v649
        %v1225 = vunpack.c.h.b16 %v649
        %v1226 = vunpack.c.l.b16 %v650
        %v1227 = vunpack.c.h.b16 %v650
        %v1228 = vunpack.c.l.b16 %v651
        %v1229 = vunpack.c.h.b16 %v651
        %v1230 = vunpack.c.l.b16 %v652
        %v1231 = vunpack.c.h.b16 %v652
        %v1232 = vunpack.c.l.b16 %v653
        %v1233 = vunpack.c.h.b16 %v653
        %v1234 = vunpack.c.l.b16 %v654
        %v1235 = vunpack.c.h.b16 %v654
        %v1236 = vunpack.c.l.b16 %v655
        %v1237 = vunpack.c.h.b16 %v655
        %v1238 = vunpack.c.l.b16 %v656
        %v1239 = vunpack.c.h.b16 %v656
        %v1240 = vunpack.c.l.b16 %v657
        %v1241 = vunpack.c.h.b16 %v657
        %v1242 = vunpack.c.l.b16 %v658
        %v1243 = vunpack.c.h.b16 %v658
        %v1244 = vunpack.c.l.b16 %v659
        %v1245 = vunpack.c.h.b16 %v659
        %v1246 = vunpack.c.l.b16 %v660
        %v1247 = vunpack.c.h.b16 %v660
        %v1248 = vunpack.c.l.b16 %v661
        %v1249 = vunpack.c.h.b16 %v661
        %v1250 = vunpack.c.l.b16 %v662
        %v1251 = vunpack.c.h.b16 %v662
        %v1252 = vunpack.c.l.b16 %v663
        %v1253 = vunpack.c.h.b16 %v663
        %v1254 = vunpack.c.l.b16 %v664
        %v1255 = vunpack.c.h.b16 %v664
        %v1256 = vunpack.c.l.b16 %v665
        %v1257 = vunpack.c.h.b16 %v665
        %v1258 = vunpack.c.l.b16 %v666
        %v1259 = vunpack.c.h.b16 %v666
        %v1260 = vunpack.c.l.b16 %v667
        %v1261 = vunpack.c.h.b16 %v667
        %v1262 = vunpack.c.l.b16 %v668
        %v1263 = vunpack.c.h.b16 %v668
        %v1264 = vunpack.c.l.b16 %v669
        %v1265 = vunpack.c.h.b16 %v669
        %v1266 = vunpack.c.l.b16 %v670
        %v1267 = vunpack.c.h.b16 %v670
        %v1268 = vunpack.c.l.b16 %v671
        %v1269 = vunpack.c.h.b16 %v671
        %v1270 = vunpack.c.l.b16 %v672
        %v1271 = vunpack.c.h.b16 %v672
        %v1272 = vunpack.c.l.b16 %v673
        %v1273 = vunpack.c.h.b16 %v673
        %v1274 = vunpack.c.l.b16 %v674
        %v1275 = vunpack.c.h.b16 %v674
        %v1276 = vunpack.c.l.b16 %v675
        %v1277 = vunpack.c.h.b16 %v675
        %v1278 = vunpack.c.l.b16 %v676
        %v1279 = vunpack.c.h.b16 %v676
        %v1280 = vunpack.c.l.b16 %v677
        %v1281 = vunpack.c.h.b16 %v677
        %v1282 = vunpack.c.l.b16 %v678
        %v1283 = vunpack.c.h.b16 %v678
        %v1284 = vunpack.c.l.b16 %v679
        %v1285 = vunpack.c.h.b16 %v679
        %v1286 = vunpack.c.l.b16 %v680
        %v1287 = vunpack.c.h.b16 %v680
        %v1288 = vunpack.c.l.b16 %v681
        %v1289 = vunpack.c.h.b16 %v681
        %v1290 = vunpack.c.l.b16 %v682
        %v1291 = vunpack.c.h.b16 %v682
        %v1292 = vunpack.c.l.b16 %v683
        %v1293 = vunpack.c.h.b16 %v683
        %v1294 = vunpack.c.l.b16 %v684
        %v1295 = vunpack.c.h.b16 %v684
        %v1296 = vunpack.c.l.b16 %v685
        %v1297 = vunpack.c.h.b16 %v685
        %v1298 = vunpack.c.l.b16 %v686
        %v1299 = vunpack.c.h.b16 %v686
        %v1300 = vunpack.c.l.b16 %v687
        %v1301 = vunpack.c.h.b16 %v687
        %v1302 = vunpack.c.l.b16 %v688
        %v1303 = vunpack.c.h.b16 %v688
        %v1304 = vunpack.c.l.b16 %v689
        %v1305 = vunpack.c.h.b16 %v689
        %v1306 = vunpack.c.l.b16 %v690
        %v1307 = vunpack.c.h.b16 %v690
        %v1308 = vunpack.c.l.b16 %v691
        %v1309 = vunpack.c.h.b16 %v691
        %v1310 = vunpack.c.l.b16 %v692
        %v1311 = vunpack.c.h.b16 %v692
        %v1312 = vunpack.c.l.b16 %v693
        %v1313 = vunpack.c.h.b16 %v693
        %v1314 = vunpack.c.l.b16 %v694
        %v1315 = vunpack.c.h.b16 %v694
        %v1316 = vunpack.c.l.b16 %v695
        %v1317 = vunpack.c.h.b16 %v695
        %v1318 = vunpack.c.l.b16 %v696
        %v1319 = vunpack.c.h.b16 %v696
        %v1320 = vunpack.c.l.b16 %v697
        %v1321 = vunpack.c.h.b16 %v697
        %v1322 = vunpack.c.l.b16 %v698
        %v1323 = vunpack.c.h.b16 %v698
        %v1324 = vunpack.c.l.b16 %v699
        %v1325 = vunpack.c.h.b16 %v699
        %v1326 = vunpack.c.l.b16 %v700
        %v1327 = vunpack.c.h.b16 %v700
        %v1328 = vunpack.c.l.b16 %v701
        %v1329 = vunpack.c.h.b16 %v701
        %v1330 = vunpack.c.l.b16 %v702
        %v1331 = vunpack.c.h.b16 %v702
        %v1332 = vunpack.c.l.b16 %v703
        %v1333 = vunpack.c.h.b16 %v703
        %v1334 = vunpack.c.l.b16 %v704
        %v1335 = vunpack.c.h.b16 %v704
        %v1336 = vunpack.c.l.b16 %v705
        %v1337 = vunpack.c.h.b16 %v705
        %v1338 = vunpack.c.l.b16 %v706
        %v1339 = vunpack.c.h.b16 %v706
        %v1340 = vunpack.c.l.b16 %v707
        %v1341 = vunpack.c.h.b16 %v707
        %v1342 = vunpack.c.l.b16 %v708
        %v1343 = vunpack.c.h.b16 %v708
        %v1344 = vunpack.c.l.b16 %v709
        %v1345 = vunpack.c.h.b16 %v709
        %v1346 = vunpack.c.l.b16 %v710
        %v1347 = vunpack.c.h.b16 %v710
        %v1348 = vunpack.c.l.b16 %v711
        %v1349 = vunpack.c.h.b16 %v711
        %v1350 = vunpack.c.l.b16 %v712
        %v1351 = vunpack.c.h.b16 %v712
        %v1352 = vunpack.c.l.b16 %v713
        %v1353 = vunpack.c.h.b16 %v713
        %v1354 = vunpack.c.l.b16 %v714
        %v1355 = vunpack.c.h.b16 %v714
        %v1356 = vunpack.c.l.b16 %v715
        %v1357 = vunpack.c.h.b16 %v715
        %v1358 = vunpack.c.l.b16 %v716
        %v1359 = vunpack.c.h.b16 %v716
        %v1360 = vunpack.c.l.b16 %v717
        %v1361 = vunpack.c.h.b16 %v717
        %v1362 = vunpack.c.l.b16 %v718
        %v1363 = vunpack.c.h.b16 %v718
        %v1364 = vunpack.c.l.b16 %v719
        %v1365 = vunpack.c.h.b16 %v719
        %v1366 = vunpack.c.l.b16 %v720
        %v1367 = vunpack.c.h.b16 %v720
        %v1368 = vunpack.c.l.b16 %v721
        %v1369 = vunpack.c.h.b16 %v721
        %v1370 = vunpack.c.l.b16 %v722
        %v1371 = vunpack.c.h.b16 %v722
        %v1372 = vunpack.c.l.b16 %v723
        %v1373 = vunpack.c.h.b16 %v723
        %v1374 = vunpack.c.l.b16 %v724
        %v1375 = vunpack.c.h.b16 %v724
        %v1376 = vunpack.c.l.b16 %v725
        %v1377 = vunpack.c.h.b16 %v725
        %v1378 = vunpack.c.l.b16 %v726
        %v1379 = vunpack.c.h.b16 %v726
        %v1380 = vunpack.c.l.b16 %v727
        %v1381 = vunpack.c.h.b16 %v727
        %v1382 = vunpack.c.l.b16 %v728
        %v1383 = vunpack.c.h.b16 %v728
        %v1384 = vunpack.c.l.b16 %v729
        %v1385 = vunpack.c.h.b16 %v729
        %v1386 = vunpack.c.l.b16 %v730
        %v1387 = vunpack.c.h.b16 %v730
        %v1388 = vunpack.c.l.b16 %v731
        %v1389 = vunpack.c.h.b16 %v731
        %v1390 = vunpack.c.l.b16 %v732
        %v1391 = vunpack.c.h.b16 %v732
        %v1392 = vunpack.c.l.b16 %v733
        %v1393 = vunpack.c.h.b16 %v733
        %v1394 = vunpack.c.l.b16 %v734
        %v1395 = vunpack.c.h.b16 %v734
        %v1396 = vunpack.c.l.b16 %v735
        %v1397 = vunpack.c.h.b16 %v735
        %v1398 = vunpack.c.l.b16 %v736
        %v1399 = vunpack.c.h.b16 %v736
        %v1400 = vunpack.c.l.b16 %v737
        %v1401 = vunpack.c.h.b16 %v737
        %v1402 = vunpack.c.l.b16 %v738
        %v1403 = vunpack.c.h.b16 %v738
        %v1404 = vunpack.c.l.b16 %v739
        %v1405 = vunpack.c.h.b16 %v739
        %v1406 = vunpack.c.l.b16 %v740
        %v1407 = vunpack.c.h.b16 %v740
        %v1408 = vunpack.c.l.b16 %v741
        %v1409 = vunpack.c.h.b16 %v741
        %v1410 = vunpack.c.l.b16 %v742
        %v1411 = vunpack.c.h.b16 %v742
        %v1412 = vunpack.c.l.b16 %v743
        %v1413 = vunpack.c.h.b16 %v743
        %v1414 = vunpack.c.l.b16 %v744
        %v1415 = vunpack.c.h.b16 %v744
        %v1416 = vunpack.c.l.b16 %v745
        %v1417 = vunpack.c.h.b16 %v745
        %v1418 = vunpack.c.l.b16 %v746
        %v1419 = vunpack.c.h.b16 %v746
        %v1420 = vunpack.c.l.b16 %v747
        %v1421 = vunpack.c.h.b16 %v747
        %v1422 = vunpack.c.l.b16 %v748
        %v1423 = vunpack.c.h.b16 %v748
        %v1424 = vunpack.c.l.b16 %v749
        %v1425 = vunpack.c.h.b16 %v749
        %v1426 = vunpack.c.l.b16 %v750
        %v1427 = vunpack.c.h.b16 %v750
        %v1428 = vunpack.c.l.b16 %v751
        %v1429 = vunpack.c.h.b16 %v751
        %v1430 = vunpack.c.l.b16 %v752
        %v1431 = vunpack.c.h.b16 %v752
        %v1432 = vunpack.c.l.b16 %v753
        %v1433 = vunpack.c.h.b16 %v753
        %v1434 = vunpack.c.l.b16 %v754
        %v1435 = vunpack.c.h.b16 %v754
        %v1436 = vunpack.c.l.b16 %v755
        %v1437 = vunpack.c.h.b16 %v755
        %v1438 = vunpack.c.l.b16 %v756
        %v1439 = vunpack.c.h.b16 %v756
        %v1440 = vunpack.c.l.b16 %v757
        %v1441 = vunpack.c.h.b16 %v757
        %v1442 = vunpack.c.l.b16 %v758
        %v1443 = vunpack.c.h.b16 %v758
        %v1444 = vunpack.c.l.b16 %v759
        %v1445 = vunpack.c.h.b16 %v759
        %v1446 = vunpack.c.l.b16 %v760
        %v1447 = vunpack.c.h.b16 %v760
        %v1448 = vunpack.c.l.b16 %v761
        %v1449 = vunpack.c.h.b16 %v761
        %v1450 = vunpack.c.l.b16 %v762
        %v1451 = vunpack.c.h.b16 %v762
        %v1452 = vunpack.c.l.b16 %v763
        %v1453 = vunpack.c.h.b16 %v763
        %v1454 = vunpack.c.l.b16 %v764
        %v1455 = vunpack.c.h.b16 %v764
        %v1456 = vunpack.c.l.b16 %v765
        %v1457 = vunpack.c.h.b16 %v765
        %v1458 = vunpack.c.l.b16 %v766
        %v1459 = vunpack.c.h.b16 %v766
        %v1460 = vunpack.c.l.b16 %v767
        %v1461 = vunpack.c.h.b16 %v767
        %v1462 = vunpack.c.l.b16 %v768
        %v1463 = vunpack.c.h.b16 %v768
        %v1464 = vunpack.c.l.b16 %v769
        %v1465 = vunpack.c.h.b16 %v769
        %v1466 = vunpack.c.l.b16 %v770
        %v1467 = vunpack.c.h.b16 %v770
        %v1468 = vunpack.c.l.b16 %v771
        %v1469 = vunpack.c.h.b16 %v771
        %v1470 = vunpack.c.l.b16 %v772
        %v1471 = vunpack.c.h.b16 %v772
        %v1472 = vunpack.c.l.b16 %v773
        %v1473 = vunpack.c.h.b16 %v773
        %v1474 = vunpack.c.l.b16 %v774
        %v1475 = vunpack.c.h.b16 %v774
        %v1476 = vunpack.c.l.b16 %v775
        %v1477 = vunpack.c.h.b16 %v775
        %v1478 = vunpack.c.l.b16 %v776
        %v1479 = vunpack.c.h.b16 %v776
        %v1480 = vunpack.c.l.b16 %v777
        %v1481 = vunpack.c.h.b16 %v777
        %v1482 = vunpack.c.l.b16 %v778
        %v1483 = vunpack.c.h.b16 %v778
        %v1484 = vunpack.c.l.b16 %v779
        %v1485 = vunpack.c.h.b16 %v779
        %v1486 = vunpack.c.l.b16 %v780
        %v1487 = vunpack.c.h.b16 %v780
        %v1488 = vunpack.c.l.b16 %v781
        %v1489 = vunpack.c.h.b16 %v781
        %v1490 = vunpack.c.l.b16 %v782
        %v1491 = vunpack.c.h.b16 %v782
        %v1492 = vunpack.c.l.b16 %v783
        %v1493 = vunpack.c.h.b16 %v783
        %v1494 = vunpack.c.l.b16 %v784
        %v1495 = vunpack.c.h.b16 %v784
        %v1496 = vunpack.c.l.b16 %v785
        %v1497 = vunpack.c.h.b16 %v785
        %v1498 = vunpack.c.l.b16 %v786
        %v1499 = vunpack.c.h.b16 %v786
        %v1500 = vunpack.c.l.b16 %v787
        %v1501 = vunpack.c.h.b16 %v787
        %v1502 = vunpack.c.l.b16 %v788
        %v1503 = vunpack.c.h.b16 %v788
        %v1504 = vunpack.c.l.b16 %v789
        %v1505 = vunpack.c.h.b16 %v789
        %v1506 = vunpack.c.l.b16 %v790
        %v1507 = vunpack.c.h.b16 %v790
        %v1508 = vunpack.c.l.b16 %v791
        %v1509 = vunpack.c.h.b16 %v791
        %v1510 = vunpack.c.l.b16 %v792
        %v1511 = vunpack.c.h.b16 %v792
        %v1512 = vunpack.c.l.b16 %v793
        %v1513 = vunpack.c.h.b16 %v793
        %v1514 = vunpack.c.l.b16 %v794
        %v1515 = vunpack.c.h.b16 %v794
        %v1516 = vunpack.c.l.b16 %v795
        %v1517 = vunpack.c.h.b16 %v795
        %v1518 = vunpack.c.l.b16 %v796
        %v1519 = vunpack.c.h.b16 %v796
        %v1520 = vunpack.c.l.b16 %v797
        %v1521 = vunpack.c.h.b16 %v797
        %v1522 = vunpack.c.l.b16 %v798
        %v1523 = vunpack.c.h.b16 %v798
        %v1524 = vunpack.c.l.b16 %v799
        %v1525 = vunpack.c.h.b16 %v799
        %v1526 = vunpack.c.l.b16 %v800
        %v1527 = vunpack.c.h.b16 %v800
        %v1528 = vunpack.c.l.b16 %v801
        %v1529 = vunpack.c.h.b16 %v801
        %v1530 = vunpack.c.l.b16 %v802
        %v1531 = vunpack.c.h.b16 %v802
        %v1532 = vunpack.c.l.b16 %v803
        %v1533 = vunpack.c.h.b16 %v803
        %v1534 = vunpack.c.l.b16 %v804
        %v1535 = vunpack.c.h.b16 %v804
        %v1536 = vunpack.c.l.b16 %v805
        %v1537 = vunpack.c.h.b16 %v805
        %v1538 = vunpack.c.l.b16 %v806
        %v1539 = vunpack.c.h.b16 %v806
        %v1540 = vunpack.c.l.b16 %v807
        %v1541 = vunpack.c.h.b16 %v807
        %v1542 = vunpack.c.l.b16 %v808
        %v1543 = vunpack.c.h.b16 %v808
        %v1544 = vunpack.c.l.b16 %v809
        %v1545 = vunpack.c.h.b16 %v809
        %v1546 = vunpack.c.l.b16 %v810
        %v1547 = vunpack.c.h.b16 %v810
        %v1548 = vunpack.c.l.b16 %v811
        %v1549 = vunpack.c.h.b16 %v811
        %v1550 = vunpack.c.l.b16 %v812
        %v1551 = vunpack.c.h.b16 %v812
        %v1552 = vunpack.c.l.b16 %v813
        %v1553 = vunpack.c.h.b16 %v813
        %v1554 = vunpack.c.l.b16 %v814
        %v1555 = vunpack.c.h.b16 %v814
        %v1556 = vunpack.c.l.b16 %v815
        %v1557 = vunpack.c.h.b16 %v815
        %v1558 = vunpack.c.l.b16 %v816
        %v1559 = vunpack.c.h.b16 %v816
        %v1560 = vunpack.c.l.b16 %v817
        %v1561 = vunpack.c.h.b16 %v817
        %v1562 = vunpack.c.l.b16 %v818
        %v1563 = vunpack.c.h.b16 %v818
        %v1564 = vunpack.c.l.b16 %v819
        %v1565 = vunpack.c.h.b16 %v819
        %v1566 = vunpack.c.l.b16 %v820
        %v1567 = vunpack.c.h.b16 %v820
        %v1568 = vunpack.c.l.b16 %v821
        %v1569 = vunpack.c.h.b16 %v821
        %v1570 = vunpack.c.l.b16 %v822
        %v1571 = vunpack.c.h.b16 %v822
        %v1572 = vunpack.c.l.b16 %v823
        %v1573 = vunpack.c.h.b16 %v823
        %v1574 = vunpack.c.l.b16 %v824
        %v1575 = vunpack.c.h.b16 %v824
        %v1576 = vunpack.c.l.b16 %v825
        %v1577 = vunpack.c.h.b16 %v825
        %v1578 = vunpack.c.l.b16 %v826
        %v1579 = vunpack.c.h.b16 %v826
        %v1580 = vunpack.c.l.b16 %v827
        %v1581 = vunpack.c.h.b16 %v827
        %v1582 = vunpack.c.l.b16 %v828
        %v1583 = vunpack.c.h.b16 %v828
        %v1584 = vunpack.c.l.b16 %v829
        %v1585 = vunpack.c.h.b16 %v829
        %v1586 = vunpack.c.l.b16 %v830
        %v1587 = vunpack.c.h.b16 %v830
        %v1588 = vunpack.c.l.b16 %v831
        %v1589 = vunpack.c.h.b16 %v831
        %v1590 = vunpack.c.l.b16 %v832
        %v1591 = vunpack.c.h.b16 %v832
        %v1592 = vunpack.c.l.b16 %v833
        %v1593 = vunpack.c.h.b16 %v833
        %v1594 = vunpack.c.l.b16 %v834
        %v1595 = vunpack.c.h.b16 %v834
        %v1596 = vunpack.c.l.b16 %v835
        %v1597 = vunpack.c.h.b16 %v835
        %v1598 = vunpack.c.l.b16 %v836
        %v1599 = vunpack.c.h.b16 %v836
        %v1600 = vunpack.c.l.b16 %v837
        %v1601 = vunpack.c.h.b16 %v837
        %v1602 = vunpack.c.l.b16 %v838
        %v1603 = vunpack.c.h.b16 %v838
        %v1604 = vunpack.c.l.b16 %v839
        %v1605 = vunpack.c.h.b16 %v839
        %v1606 = vunpack.c.l.b16 %v840
        %v1607 = vunpack.c.h.b16 %v840
        %v1608 = vunpack.c.l.b16 %v841
        %v1609 = vunpack.c.h.b16 %v841
        %v1610 = vunpack.c.l.b16 %v842
        %v1611 = vunpack.c.h.b16 %v842
        %v1612 = vunpack.c.l.b16 %v843
        %v1613 = vunpack.c.h.b16 %v843
        %v1614 = vunpack.c.l.b16 %v844
        %v1615 = vunpack.c.h.b16 %v844
        %v1616 = vunpack.c.l.b16 %v845
        %v1617 = vunpack.c.h.b16 %v845
        %v1618 = vunpack.c.l.b16 %v846
        %v1619 = vunpack.c.h.b16 %v846
        %v1620 = vunpack.c.l.b16 %v847
        %v1621 = vunpack.c.h.b16 %v847
        %v1622 = vunpack.c.l.b16 %v848
        %v1623 = vunpack.c.h.b16 %v848
        %v1624 = vunpack.c.l.b16 %v849
        %v1625 = vunpack.c.h.b16 %v849
        %v1626 = vunpack.c.l.b16 %v850
        %v1627 = vunpack.c.h.b16 %v850
        %v1628 = vunpack.c.l.b16 %v851
        %v1629 = vunpack.c.h.b16 %v851
        %v1630 = vunpack.c.l.b16 %v852
        %v1631 = vunpack.c.h.b16 %v852
        %v1632 = vunpack.c.l.b16 %v853
        %v1633 = vunpack.c.h.b16 %v853
        %v1634 = vunpack.c.l.b16 %v854
        %v1635 = vunpack.c.h.b16 %v854
        %v1636 = vunpack.c.l.b16 %v855
        %v1637 = vunpack.c.h.b16 %v855
        %v1638 = vpack.c.b16 %v1134, %v1126
        %v1639 = vpack.c.b16 %v1135, %v1127
        %v1640 = vpack.c.b16 %v1136, %v1128
        %v1641 = vpack.c.b16 %v1137, %v1129
        %v1642 = vpack.c.b16 %v1138, %v1130
        %v1643 = vpack.c.b16 %v1139, %v1131
        %v1644 = vpack.c.b16 %v1140, %v1132
        %v1645 = vpack.c.b16 %v1141, %v1133
        %v1646 = vpack.c.b16 %v1150, %v1142
        %v1647 = vpack.c.b16 %v1151, %v1143
        %v1648 = vpack.c.b16 %v1152, %v1144
        %v1649 = vpack.c.b16 %v1153, %v1145
        %v1650 = vpack.c.b16 %v1154, %v1146
        %v1651 = vpack.c.b16 %v1155, %v1147
        %v1652 = vpack.c.b16 %v1156, %v1148
        %v1653 = vpack.c.b16 %v1157, %v1149
        %v1654 = vpack.c.b16 %v1166, %v1158
        %v1655 = vpack.c.b16 %v1167, %v1159
        %v1656 = vpack.c.b16 %v1168, %v1160
        %v1657 = vpack.c.b16 %v1169, %v1161
        %v1658 = vpack.c.b16 %v1170, %v1162
        %v1659 = vpack.c.b16 %v1171, %v1163
        %v1660 = vpack.c.b16 %v1172, %v1164
        %v1661 = vpack.c.b16 %v1173, %v1165
        %v1662 = vpack.c.b16 %v1182, %v1174
        %v1663 = vpack.c.b16 %v1183, %v1175
        %v1664 = vpack.c.b16 %v1184, %v1176
        %v1665 = vpack.c.b16 %v1185, %v1177
        %v1666 = vpack.c.b16 %v1186, %v1178
        %v1667 = vpack.c.b16 %v1187, %v1179
        %v1668 = vpack.c.b16 %v1188, %v1180
        %v1669 = vpack.c.b16 %v1189, %v1181
        %v1670 = vpack.c.b16 %v1198, %v1190
        %v1671 = vpack.c.b16 %v1199, %v1191
        %v1672 = vpack.c.b16 %v1200, %v1192
        %v1673 = vpack.c.b16 %v1201, %v1193
        %v1674 = vpack.c.b16 %v1202, %v1194
        %v1675 = vpack.c.b16 %v1203, %v1195
        %v1676 = vpack.c.b16 %v1204, %v1196
        %v1677 = vpack.c.b16 %v1205, %v1197
        %v1678 = vpack.c.b16 %v1214, %v1206
        %v1679 = vpack.c.b16 %v1215, %v1207
        %v1680 = vpack.c.b16 %v1216, %v1208
        %v1681 = vpack.c.b16 %v1217, %v1209
        %v1682 = vpack.c.b16 %v1218, %v1210
        %v1683 = vpack.c.b16 %v1219, %v1211
        %v1684 = vpack.c.b16 %v1220, %v1212
        %v1685 = vpack.c.b16 %v1221, %v1213
        %v1686 = vpack.c.b16 %v1230, %v1222
        %v1687 = vpack.c.b16 %v1231, %v1223
        %v1688 = vpack.c.b16 %v1232, %v1224
        %v1689 = vpack.c.b16 %v1233, %v1225
        %v1690 = vpack.c.b16 %v1234, %v1226
        %v1691 = vpack.c.b16 %v1235, %v1227
        %v1692 = vpack.c.b16 %v1236, %v1228
        %v1693 = vpack.c.b16 %v1237, %v1229
        %v1694 = vpack.c.b16 %v1246, %v1238
        %v1695 = vpack.c.b16 %v1247, %v1239
        %v1696 = vpack.c.b16 %v1248, %v1240
        %v1697 = vpack.c.b16 %v1249, %v1241
        %v1698 = vpack.c.b16 %v1250, %v1242
        %v1699 = vpack.c.b16 %v1251, %v1243
        %v1700 = vpack.c.b16 %v1252, %v1244
        %v1701 = vpack.c.b16 %v1253, %v1245
        %v1702 = vpack.c.b16 %v1262, %v1254
        %v1703 = vpack.c.b16 %v1263, %v1255
        %v1704 = vpack.c.b16 %v1264, %v1256
        %v1705 = vpack.c.b16 %v1265, %v1257
        %v1706 = vpack.c.b16 %v1266, %v1258
        %v1707 = vpack.c.b16 %v1267, %v1259
        %v1708 = vpack.c.b16 %v1268, %v1260
        %v1709 = vpack.c.b16 %v1269, %v1261
        %v1710 = vpack.c.b16 %v1278, %v1270
        %v1711 = vpack.c.b16 %v1279, %v1271
        %v1712 = vpack.c.b16 %v1280, %v1272
        %v1713 = vpack.c.b16 %v1281, %v1273
        %v1714 = vpack.c.b16 %v1282, %v1274
        %v1715 = vpack.c.b16 %v1283, %v1275
        %v1716 = vpack.c.b16 %v1284, %v1276
        %v1717 = vpack.c.b16 %v1285, %v1277
        %v1718 = vpack.c.b16 %v1294, %v1286
        %v1719 = vpack.c.b16 %v1295, %v1287
        %v1720 = vpack.c.b16 %v1296, %v1288
        %v1721 = vpack.c.b16 %v1297, %v1289
        %v1722 = vpack.c.b16 %v1298, %v1290
        %v1723 = vpack.c.b16 %v1299, %v1291
        %v1724 = vpack.c.b16 %v1300, %v1292
        %v1725 = vpack.c.b16 %v1301, %v1293
        %v1726 = vpack.c.b16 %v1310, %v1302
        %v1727 = vpack.c.b16 %v1311, %v1303
        %v1728 = vpack.c.b16 %v1312, %v1304
        %v1729 = vpack.c.b16 %v1313, %v1305
        %v1730 = vpack.c.b16 %v1314, %v1306
        %v1731 = vpack.c.b16 %v1315, %v1307
        %v1732 = vpack.c.b16 %v1316, %v1308
        %v1733 = vpack.c.b16 %v1317, %v1309
        %v1734 = vpack.c.b16 %v1326, %v1318
        %v1735 = vpack.c.b16 %v1327, %v1319
        %v1736 = vpack.c.b16 %v1328, %v1320
        %v1737 = vpack.c.b16 %v1329, %v1321
        %v1738 = vpack.c.b16 %v1330, %v1322
        %v1739 = vpack.c.b16 %v1331, %v1323
        %v1740 = vpack.c.b16 %v1332, %v1324
        %v1741 = vpack.c.b16 %v1333, %v1325
        %v1742 = vpack.c.b16 %v1342, %v1334
        %v1743 = vpack.c.b16 %v1343, %v1335
        %v1744 = vpack.c.b16 %v1344, %v1336
        %v1745 = vpack.c.b16 %v1345, %v1337
        %v1746 = vpack.c.b16 %v1346, %v1338
        %v1747 = vpack.c.b16 %v1347, %v1339
        %v1748 = vpack.c.b16 %v1348, %v1340
        %v1749 = vpack.c.b16 %v1349, %v1341
        %v1750 = vpack.c.b16 %v1358, %v1350
        %v1751 = vpack.c.b16 %v1359, %v1351
        %v1752 = vpack.c.b16 %v1360, %v1352
        %v1753 = vpack.c.b16 %v1361, %v1353
        %v1754 = vpack.c.b16 %v1362, %v1354
        %v1755 = vpack.c.b16 %v1363, %v1355
        %v1756 = vpack.c.b16 %v1364, %v1356
        %v1757 = vpack.c.b16 %v1365, %v1357
        %v1758 = vpack.c.b16 %v1374, %v1366
        %v1759 = vpack.c.b16 %v1375, %v1367
        %v1760 = vpack.c.b16 %v1376, %v1368
        %v1761 = vpack.c.b16 %v1377, %v1369
        %v1762 = vpack.c.b16 %v1378, %v1370
        %v1763 = vpack.c.b16 %v1379, %v1371
        %v1764 = vpack.c.b16 %v1380, %v1372
        %v1765 = vpack.c.b16 %v1381, %v1373
        %v1766 = vpack.c.b16 %v1390, %v1382
        %v1767 = vpack.c.b16 %v1391, %v1383
        %v1768 = vpack.c.b16 %v1392, %v1384
        %v1769 = vpack.c.b16 %v1393, %v1385
        %v1770 = vpack.c.b16 %v1394, %v1386
        %v1771 = vpack.c.b16 %v1395, %v1387
        %v1772 = vpack.c.b16 %v1396, %v1388
        %v1773 = vpack.c.b16 %v1397, %v1389
        %v1774 = vpack.c.b16 %v1406, %v1398
        %v1775 = vpack.c.b16 %v1407, %v1399
        %v1776 = vpack.c.b16 %v1408, %v1400
        %v1777 = vpack.c.b16 %v1409, %v1401
        %v1778 = vpack.c.b16 %v1410, %v1402
        %v1779 = vpack.c.b16 %v1411, %v1403
        %v1780 = vpack.c.b16 %v1412, %v1404
        %v1781 = vpack.c.b16 %v1413, %v1405
        %v1782 = vpack.c.b16 %v1422, %v1414
        %v1783 = vpack.c.b16 %v1423, %v1415
        %v1784 = vpack.c.b16 %v1424, %v1416
        %v1785 = vpack.c.b16 %v1425, %v1417
        %v1786 = vpack.c.b16 %v1426, %v1418
        %v1787 = vpack.c.b16 %v1427, %v1419
        %v1788 = vpack.c.b16 %v1428, %v1420
        %v1789 = vpack.c.b16 %v1429, %v1421
        %v1790 = vpack.c.b16 %v1438, %v1430
        %v1791 = vpack.c.b16 %v1439, %v1431
        %v1792 = vpack.c.b16 %v1440, %v1432
        %v1793 = vpack.c.b16 %v1441, %v1433
        %v1794 = vpack.c.b16 %v1442, %v1434
        %v1795 = vpack.c.b16 %v1443, %v1435
        %v1796 = vpack.c.b16 %v1444, %v1436
        %v1797 = vpack.c.b16 %v1445, %v1437
        %v1798 = vpack.c.b16 %v1454, %v1446
        %v1799 = vpack.c.b16 %v1455, %v1447
        %v1800 = vpack.c.b16 %v1456, %v1448
        %v1801 = vpack.c.b16 %v1457, %v1449
        %v1802 = vpack.c.b16 %v1458, %v1450
        %v1803 = vpack.c.b16 %v1459, %v1451
        %v1804 = vpack.c.b16 %v1460, %v1452
        %v1805 = vpack.c.b16 %v1461, %v1453
        %v1806 = vpack.c.b16 %v1470, %v1462
        %v1807 = vpack.c.b16 %v1471, %v1463
        %v1808 = vpack.c.b16 %v1472, %v1464
        %v1809 = vpack.c.b16 %v1473, %v1465
        %v1810 = vpack.c.b16 %v1474, %v1466
        %v1811 = vpack.c.b16 %v1475, %v1467
        %v1812 = vpack.c.b16 %v1476, %v1468
        %v1813 = vpack.c.b16 %v1477, %v1469
        %v1814 = vpack.c.b16 %v1486, %v1478
        %v1815 = vpack.c.b16 %v1487, %v1479
        %v1816 = vpack.c.b16 %v1488, %v1480
        %v1817 = vpack.c.b16 %v1489, %v1481
        %v1818 = vpack.c.b16 %v1490, %v1482
        %v1819 = vpack.c.b16 %v1491, %v1483
        %v1820 = vpack.c.b16 %v1492, %v1484
        %v1821 = vpack.c.b16 %v1493, %v1485
        %v1822 = vpack.c.b16 %v1502, %v1494
        %v1823 = vpack.c.b16 %v1503, %v1495
        %v1824 = vpack.c.b16 %v1504, %v1496
        %v1825 = vpack.c.b16 %v1505, %v1497
        %v1826 = vpack.c.b16 %v1506, %v1498
        %v1827 = vpack.c.b16 %v1507, %v1499
        %v1828 = vpack.c.b16 %v1508, %v1500
        %v1829 = vpack.c.b16 %v1509, %v1501
        %v1830 = vpack.c.b16 %v1518, %v1510
        %v1831 = vpack.c.b16 %v1519, %v1511
        %v1832 = vpack.c.b16 %v1520, %v1512
        %v1833 = vpack.c.b16 %v1521, %v1513
        %v1834 = vpack.c.b16 %v1522, %v1514
        %v1835 = vpack.c.b16 %v1523, %v1515
        %v1836 = vpack.c.b16 %v1524, %v1516
        %v1837 = vpack.c.b16 %v1525, %v1517
        %v1838 = vpack.c.b16 %v1534, %v1526
        %v1839 = vpack.c.b16 %v1535, %v1527
        %v1840 = vpack.c.b16 %v1536, %v1528
        %v1841 = vpack.c.b16 %v1537, %v1529
        %v1842 = vpack.c.b16 %v1538, %v1530
        %v1843 = vpack.c.b16 %v1539, %v1531
        %v1844 = vpack.c.b16 %v1540, %v1532
        %v1845 = vpack.c.b16 %v1541, %v1533
        %v1846 = vpack.c.b16 %v1550, %v1542
        %v1847 = vpack.c.b16 %v1551, %v1543
        %v1848 = vpack.c.b16 %v1552, %v1544
        %v1849 = vpack.c.b16 %v1553, %v1545
        %v1850 = vpack.c.b16 %v1554, %v1546
        %v1851 = vpack.c.b16 %v1555, %v1547
        %v1852 = vpack.c.b16 %v1556, %v1548
        %v1853 = vpack.c.b16 %v1557, %v1549
        %v1854 = vpack.c.b16 %v1566, %v1558
        %v1855 = vpack.c.b16 %v1567, %v1559
        %v1856 = vpack.c.b16 %v1568, %v1560
        %v1857 = vpack.c.b16 %v1569, %v1561
        %v1858 = vpack.c.b16 %v1570, %v1562
        %v1859 = vpack.c.b16 %v1571, %v1563
        %v1860 = vpack.c.b16 %v1572, %v1564
        %v1861 = vpack.c.b16 %v1573, %v1565
        %v1862 = vpack.c.b16 %v1582, %v1574
        %v1863 = vpack.c.b16 %v1583, %v1575
        %v1864 = vpack.c.b16 %v1584, %v1576
        %v1865 = vpack.c.b16 %v1585, %v1577
        %v1866 = vpack.c.b16 %v1586, %v1578
        %v1867 = vpack.c.b16 %v1587, %v1579
        %v1868 = vpack.c.b16 %v1588, %v1580
        %v1869 = vpack.c.b16 %v1589, %v1581
        %v1870 = vpack.c.b16 %v1598, %v1590
        %v1871 = vpack.c.b16 %v1599, %v1591
        %v1872 = vpack.c.b16 %v1600, %v1592
        %v1873 = vpack.c.b16 %v1601, %v1593
        %v1874 = vpack.c.b16 %v1602, %v1594
        %v1875 = vpack.c.b16 %v1603, %v1595
        %v1876 = vpack.c.b16 %v1604, %v1596
        %v1877 = vpack.c.b16 %v1605, %v1597
        %v1878 = vpack.c.b16 %v1614, %v1606
        %v1879 = vpack.c.b16 %v1615, %v1607
        %v1880 = vpack.c.b16 %v1616, %v1608
        %v1881 = vpack.c.b16 %v1617, %v1609
        %v1882 = vpack.c.b16 %v1618, %v1610
        %v1883 = vpack.c.b16 %v1619, %v1611
        %v1884 = vpack.c.b16 %v1620, %v1612
        %v1885 = vpack.c.b16 %v1621, %v1613
        %v1886 = vpack.c.b16 %v1630, %v1622
        %v1887 = vpack.c.b16 %v1631, %v1623
        %v1888 = vpack.c.b16 %v1632, %v1624
        %v1889 = vpack.c.b16 %v1633, %v1625
        %v1890 = vpack.c.b16 %v1634, %v1626
        %v1891 = vpack.c.b16 %v1635, %v1627
        %v1892 = vpack.c.b16 %v1636, %v1628
        %v1893 = vpack.c.b16 %v1637, %v1629
        %2150 = vmatprep.subr.bf16.mxu0 %v1639
        %2151 = vmatpush1.bf16.msra.mxu0 %v1638
        %2152 = vmatprep.subr.bf16.mxu0 %v1647
        %2153 = vmatpush1.bf16.msra.mxu0 %v1646
        %2154 = vmatprep.subr.bf16.mxu0 %v1655
        %2155 = vmatpush1.bf16.msra.mxu0 %v1654
        %2156 = vmatprep.subr.bf16.mxu0 %v1663
        %2157 = vmatpush1.bf16.msra.mxu0 %v1662
        %2158 = vmatprep.subr.bf16.mxu0 %v1671
        %2159 = vmatpush1.bf16.msra.mxu0 %v1670
        %2160 = vmatprep.subr.bf16.mxu0 %v1679
        %2161 = vmatpush1.bf16.msra.mxu0 %v1678
        %2162 = vmatprep.subr.bf16.mxu0 %v1687
        %2163 = vmatpush1.bf16.msra.mxu0 %v1686
        %2164 = vmatprep.subr.bf16.mxu0 %v1695
        %2165 = vmatpush1.bf16.msra.mxu0 %v1694
        %2166 = vmatprep.subr.bf16.mxu0 %v1703
        %2167 = vmatpush1.bf16.msra.mxu0 %v1702
        %2168 = vmatprep.subr.bf16.mxu0 %v1711
        %2169 = vmatpush1.bf16.msra.mxu0 %v1710
        %2170 = vmatprep.subr.bf16.mxu0 %v1719
        %2171 = vmatpush1.bf16.msra.mxu0 %v1718
        %2172 = vmatprep.subr.bf16.mxu0 %v1727
        %2173 = vmatpush1.bf16.msra.mxu0 %v1726
        %2174 = vmatprep.subr.bf16.mxu0 %v1735
        %2175 = vmatpush1.bf16.msra.mxu0 %v1734
        %2176 = vmatprep.subr.bf16.mxu0 %v1743
        %2177 = vmatpush1.bf16.msra.mxu0 %v1742
        %2178 = vmatprep.subr.bf16.mxu0 %v1751
        %2179 = vmatpush1.bf16.msra.mxu0 %v1750
        %2180 = vmatprep.subr.bf16.mxu0 %v1759
        %2181 = vmatpush1.bf16.msra.mxu0 %v1758
        %2182 = vmatprep.mubr.bf16.mxu0 %v863
        %2183 = vmatmul.mubr.bf16.gmra.mrb[0].mxu0 %v862
        %v2184 = vpop.f32.mrb[0].mxu0
        %v2185 = vadd.f32 0.0, %v2184
        %v2186 = vpop.f32.mrb[0].mxu0
        %v2187 = vadd.f32 0.0, %v2186
        %v2188 = vpop.f32.mrb[0].mxu0
        %v2189 = vpop.f32.mrb[0].mxu0
        %2190 = vdwg.mxu0
        %2191 = vmatprep.subr.bf16.mxu0 %v1767
        %2192 = vmatpush1.bf16.msra.mxu0 %v1766
        %2193 = vmatprep.subr.bf16.mxu0 %v1775
        %2194 = vmatpush1.bf16.msra.mxu0 %v1774
        %2195 = vmatprep.subr.bf16.mxu0 %v1783
        %2196 = vmatpush1.bf16.msra.mxu0 %v1782
        %2197 = vmatprep.subr.bf16.mxu0 %v1791
        %2198 = vmatpush1.bf16.msra.mxu0 %v1790
        %2199 = vmatprep.subr.bf16.mxu0 %v1799
        %2200 = vmatpush1.bf16.msra.mxu0 %v1798
        %2201 = vmatprep.subr.bf16.mxu0 %v1807
        %2202 = vmatpush1.bf16.msra.mxu0 %v1806
        %2203 = vmatprep.subr.bf16.mxu0 %v1815
        %2204 = vmatpush1.bf16.msra.mxu0 %v1814
        %2205 = vmatprep.subr.bf16.mxu0 %v1823
        %2206 = vmatpush1.bf16.msra.mxu0 %v1822
        %2207 = vmatprep.subr.bf16.mxu0 %v1831
        %2208 = vmatpush1.bf16.msra.mxu0 %v1830
        %2209 = vmatprep.subr.bf16.mxu0 %v1839
        %2210 = vmatpush1.bf16.msra.mxu0 %v1838
        %2211 = vmatprep.subr.bf16.mxu0 %v1847
        %2212 = vmatpush1.bf16.msra.mxu0 %v1846
        %2213 = vmatprep.subr.bf16.mxu0 %v1855
        %2214 = vmatpush1.bf16.msra.mxu0 %v1854
        %2215 = vmatprep.subr.bf16.mxu0 %v1863
        %2216 = vmatpush1.bf16.msra.mxu0 %v1862
        %2217 = vmatprep.subr.bf16.mxu0 %v1871
        %2218 = vmatpush1.bf16.msra.mxu0 %v1870
        %2219 = vmatprep.subr.bf16.mxu0 %v1879
        %2220 = vmatpush1.bf16.msra.mxu0 %v1878
        %2221 = vmatprep.subr.bf16.mxu0 %v1887
        %2222 = vmatpush1.bf16.msra.mxu0 %v1886
        %2223 = vmatprep.mubr.bf16.mxu0 %v865
        %2224 = vmatmul.mubr.bf16.gmra.mrb[0].mxu0 %v864
        %v2225 = vpop.f32.mrb[0].mxu0
        %v2226 = vadd.f32 %v2185, %v2225
        %v2227 = vpop.f32.mrb[0].mxu0
        %v2228 = vadd.f32 %v2187, %v2227
        %v2229 = vpop.f32.mrb[0].mxu0
        %v2230 = vpop.f32.mrb[0].mxu0
        %2231 = vdwg.mxu0
        %2232 = vmatprep.subr.bf16.mxu0 %v1641
        %2233 = vmatpush1.bf16.msra.mxu0 %v1640
        %2234 = vmatprep.subr.bf16.mxu0 %v1649
        %2235 = vmatpush1.bf16.msra.mxu0 %v1648
        %2236 = vmatprep.subr.bf16.mxu0 %v1657
        %2237 = vmatpush1.bf16.msra.mxu0 %v1656
        %2238 = vmatprep.subr.bf16.mxu0 %v1665
        %2239 = vmatpush1.bf16.msra.mxu0 %v1664
        %2240 = vmatprep.subr.bf16.mxu0 %v1673
        %2241 = vmatpush1.bf16.msra.mxu0 %v1672
        %2242 = vmatprep.subr.bf16.mxu0 %v1681
        %2243 = vmatpush1.bf16.msra.mxu0 %v1680
        %2244 = vmatprep.subr.bf16.mxu0 %v1689
        %2245 = vmatpush1.bf16.msra.mxu0 %v1688
        %2246 = vmatprep.subr.bf16.mxu0 %v1697
        %2247 = vmatpush1.bf16.msra.mxu0 %v1696
        %2248 = vmatprep.subr.bf16.mxu0 %v1705
        %2249 = vmatpush1.bf16.msra.mxu0 %v1704
        %2250 = vmatprep.subr.bf16.mxu0 %v1713
        %2251 = vmatpush1.bf16.msra.mxu0 %v1712
        %2252 = vmatprep.subr.bf16.mxu0 %v1721
        %2253 = vmatpush1.bf16.msra.mxu0 %v1720
        %2254 = vmatprep.subr.bf16.mxu0 %v1729
        %2255 = vmatpush1.bf16.msra.mxu0 %v1728
        %2256 = vmatprep.subr.bf16.mxu0 %v1737
        %2257 = vmatpush1.bf16.msra.mxu0 %v1736
        %2258 = vmatprep.subr.bf16.mxu0 %v1745
        %2259 = vmatpush1.bf16.msra.mxu0 %v1744
        %2260 = vmatprep.subr.bf16.mxu0 %v1753
        %2261 = vmatpush1.bf16.msra.mxu0 %v1752
        %2262 = vmatprep.subr.bf16.mxu0 %v1761
        %2263 = vmatpush1.bf16.msra.mxu0 %v1760
        %2264 = vmatprep.mubr.bf16.mxu0 %v863
        %2265 = vmatmul.mubr.bf16.gmra.mrb[0].mxu0 %v862
        %v2266 = vpop.f32.mrb[0].mxu0
        %v2267 = vadd.f32 0.0, %v2266
        %v2268 = vpop.f32.mrb[0].mxu0
        %v2269 = vadd.f32 0.0, %v2268
        %v2270 = vpop.f32.mrb[0].mxu0
        %v2271 = vpop.f32.mrb[0].mxu0
        %2272 = vdwg.mxu0
        %2273 = vmatprep.subr.bf16.mxu0 %v1769
        %2274 = vmatpush1.bf16.msra.mxu0 %v1768
        %2275 = vmatprep.subr.bf16.mxu0 %v1777
        %2276 = vmatpush1.bf16.msra.mxu0 %v1776
        %2277 = vmatprep.subr.bf16.mxu0 %v1785
        %2278 = vmatpush1.bf16.msra.mxu0 %v1784
        %2279 = vmatprep.subr.bf16.mxu0 %v1793
        %2280 = vmatpush1.bf16.msra.mxu0 %v1792
        %2281 = vmatprep.subr.bf16.mxu0 %v1801
        %2282 = vmatpush1.bf16.msra.mxu0 %v1800
        %2283 = vmatprep.subr.bf16.mxu0 %v1809
        %2284 = vmatpush1.bf16.msra.mxu0 %v1808
        %2285 = vmatprep.subr.bf16.mxu0 %v1817
        %2286 = vmatpush1.bf16.msra.mxu0 %v1816
        %2287 = vmatprep.subr.bf16.mxu0 %v1825
        %2288 = vmatpush1.bf16.msra.mxu0 %v1824
        %2289 = vmatprep.subr.bf16.mxu0 %v1833
        %2290 = vmatpush1.bf16.msra.mxu0 %v1832
        %2291 = vmatprep.subr.bf16.mxu0 %v1841
        %2292 = vmatpush1.bf16.msra.mxu0 %v1840
        %2293 = vmatprep.subr.bf16.mxu0 %v1849
        %2294 = vmatpush1.bf16.msra.mxu0 %v1848
        %2295 = vmatprep.subr.bf16.mxu0 %v1857
        %2296 = vmatpush1.bf16.msra.mxu0 %v1856
        %2297 = vmatprep.subr.bf16.mxu0 %v1865
        %2298 = vmatpush1.bf16.msra.mxu0 %v1864
        %2299 = vmatprep.subr.bf16.mxu0 %v1873
        %2300 = vmatpush1.bf16.msra.mxu0 %v1872
        %2301 = vmatprep.subr.bf16.mxu0 %v1881
        %2302 = vmatpush1.bf16.msra.mxu0 %v1880
        %2303 = vmatprep.subr.bf16.mxu0 %v1889
        %2304 = vmatpush1.bf16.msra.mxu0 %v1888
        %2305 = vmatprep.mubr.bf16.mxu0 %v865
        %2306 = vmatmul.mubr.bf16.gmra.mrb[0].mxu0 %v864
        %v2307 = vpop.f32.mrb[0].mxu0
        %v2308 = vadd.f32 %v2267, %v2307
        %v2309 = vpop.f32.mrb[0].mxu0
        %v2310 = vadd.f32 %v2269, %v2309
        %v2311 = vpop.f32.mrb[0].mxu0
        %v2312 = vpop.f32.mrb[0].mxu0
        %2313 = vdwg.mxu0
        %2314 = vmatprep.subr.bf16.mxu0 %v1643
        %2315 = vmatpush1.bf16.msra.mxu0 %v1642
        %2316 = vmatprep.subr.bf16.mxu0 %v1651
        %2317 = vmatpush1.bf16.msra.mxu0 %v1650
        %2318 = vmatprep.subr.bf16.mxu0 %v1659
        %2319 = vmatpush1.bf16.msra.mxu0 %v1658
        %2320 = vmatprep.subr.bf16.mxu0 %v1667
        %2321 = vmatpush1.bf16.msra.mxu0 %v1666
        %2322 = vmatprep.subr.bf16.mxu0 %v1675
        %2323 = vmatpush1.bf16.msra.mxu0 %v1674
        %2324 = vmatprep.subr.bf16.mxu0 %v1683
        %2325 = vmatpush1.bf16.msra.mxu0 %v1682
        %2326 = vmatprep.subr.bf16.mxu0 %v1691
        %2327 = vmatpush1.bf16.msra.mxu0 %v1690
        %2328 = vmatprep.subr.bf16.mxu0 %v1699
        %2329 = vmatpush1.bf16.msra.mxu0 %v1698
        %2330 = vmatprep.subr.bf16.mxu0 %v1707
        %2331 = vmatpush1.bf16.msra.mxu0 %v1706
        %2332 = vmatprep.subr.bf16.mxu0 %v1715
        %2333 = vmatpush1.bf16.msra.mxu0 %v1714
        %2334 = vmatprep.subr.bf16.mxu0 %v1723
        %2335 = vmatpush1.bf16.msra.mxu0 %v1722
        %2336 = vmatprep.subr.bf16.mxu0 %v1731
        %2337 = vmatpush1.bf16.msra.mxu0 %v1730
        %2338 = vmatprep.subr.bf16.mxu0 %v1739
        %2339 = vmatpush1.bf16.msra.mxu0 %v1738
        %2340 = vmatprep.subr.bf16.mxu0 %v1747
        %2341 = vmatpush1.bf16.msra.mxu0 %v1746
        %2342 = vmatprep.subr.bf16.mxu0 %v1755
        %2343 = vmatpush1.bf16.msra.mxu0 %v1754
        %2344 = vmatprep.subr.bf16.mxu0 %v1763
        %2345 = vmatpush1.bf16.msra.mxu0 %v1762
        %2346 = vmatprep.mubr.bf16.mxu0 %v863
        %2347 = vmatmul.mubr.bf16.gmra.mrb[0].mxu0 %v862
        %v2348 = vpop.f32.mrb[0].mxu0
        %v2349 = vadd.f32 0.0, %v2348
        %v2350 = vpop.f32.mrb[0].mxu0
        %v2351 = vadd.f32 0.0, %v2350
        %v2352 = vpop.f32.mrb[0].mxu0
        %v2353 = vpop.f32.mrb[0].mxu0
        %2354 = vdwg.mxu0
        %2355 = vmatprep.subr.bf16.mxu0 %v1771
        %2356 = vmatpush1.bf16.msra.mxu0 %v1770
        %2357 = vmatprep.subr.bf16.mxu0 %v1779
        %2358 = vmatpush1.bf16.msra.mxu0 %v1778
        %2359 = vmatprep.subr.bf16.mxu0 %v1787
        %2360 = vmatpush1.bf16.msra.mxu0 %v1786
        %2361 = vmatprep.subr.bf16.mxu0 %v1795
        %2362 = vmatpush1.bf16.msra.mxu0 %v1794
        %2363 = vmatprep.subr.bf16.mxu0 %v1803
        %2364 = vmatpush1.bf16.msra.mxu0 %v1802
        %2365 = vmatprep.subr.bf16.mxu0 %v1811
        %2366 = vmatpush1.bf16.msra.mxu0 %v1810
        %2367 = vmatprep.subr.bf16.mxu0 %v1819
        %2368 = vmatpush1.bf16.msra.mxu0 %v1818
        %2369 = vmatprep.subr.bf16.mxu0 %v1827
        %2370 = vmatpush1.bf16.msra.mxu0 %v1826
        %2371 = vmatprep.subr.bf16.mxu0 %v1835
        %2372 = vmatpush1.bf16.msra.mxu0 %v1834
        %2373 = vmatprep.subr.bf16.mxu0 %v1843
        %2374 = vmatpush1.bf16.msra.mxu0 %v1842
        %2375 = vmatprep.subr.bf16.mxu0 %v1851
        %2376 = vmatpush1.bf16.msra.mxu0 %v1850
        %2377 = vmatprep.subr.bf16.mxu0 %v1859
        %2378 = vmatpush1.bf16.msra.mxu0 %v1858
        %2379 = vmatprep.subr.bf16.mxu0 %v1867
        %2380 = vmatpush1.bf16.msra.mxu0 %v1866
        %2381 = vmatprep.subr.bf16.mxu0 %v1875
        %2382 = vmatpush1.bf16.msra.mxu0 %v1874
        %2383 = vmatprep.subr.bf16.mxu0 %v1883
        %2384 = vmatpush1.bf16.msra.mxu0 %v1882
        %2385 = vmatprep.subr.bf16.mxu0 %v1891
        %2386 = vmatpush1.bf16.msra.mxu0 %v1890
        %2387 = vmatprep.mubr.bf16.mxu0 %v865
        %2388 = vmatmul.mubr.bf16.gmra.mrb[0].mxu0 %v864
        %v2389 = vpop.f32.mrb[0].mxu0
        %v2390 = vadd.f32 %v2349, %v2389
        %v2391 = vpop.f32.mrb[0].mxu0
        %v2392 = vadd.f32 %v2351, %v2391
        %v2393 = vpop.f32.mrb[0].mxu0
        %v2394 = vpop.f32.mrb[0].mxu0
        %2395 = vdwg.mxu0
        %2396 = vmatprep.subr.bf16.mxu0 %v1645
        %2397 = vmatpush1.bf16.msra.mxu0 %v1644
        %2398 = vmatprep.subr.bf16.mxu0 %v1653
        %2399 = vmatpush1.bf16.msra.mxu0 %v1652
        %2400 = vmatprep.subr.bf16.mxu0 %v1661
        %2401 = vmatpush1.bf16.msra.mxu0 %v1660
        %2402 = vmatprep.subr.bf16.mxu0 %v1669
        %2403 = vmatpush1.bf16.msra.mxu0 %v1668
        %2404 = vmatprep.subr.bf16.mxu0 %v1677
        %2405 = vmatpush1.bf16.msra.mxu0 %v1676
        %2406 = vmatprep.subr.bf16.mxu0 %v1685
        %2407 = vmatpush1.bf16.msra.mxu0 %v1684
        %2408 = vmatprep.subr.bf16.mxu0 %v1693
        %2409 = vmatpush1.bf16.msra.mxu0 %v1692
        %2410 = vmatprep.subr.bf16.mxu0 %v1701
        %2411 = vmatpush1.bf16.msra.mxu0 %v1700
        %2412 = vmatprep.subr.bf16.mxu0 %v1709
        %2413 = vmatpush1.bf16.msra.mxu0 %v1708
        %2414 = vmatprep.subr.bf16.mxu0 %v1717
        %2415 = vmatpush1.bf16.msra.mxu0 %v1716
        %2416 = vmatprep.subr.bf16.mxu0 %v1725
        %2417 = vmatpush1.bf16.msra.mxu0 %v1724
        %2418 = vmatprep.subr.bf16.mxu0 %v1733
        %2419 = vmatpush1.bf16.msra.mxu0 %v1732
        %2420 = vmatprep.subr.bf16.mxu0 %v1741
        %2421 = vmatpush1.bf16.msra.mxu0 %v1740
        %2422 = vmatprep.subr.bf16.mxu0 %v1749
        %2423 = vmatpush1.bf16.msra.mxu0 %v1748
        %2424 = vmatprep.subr.bf16.mxu0 %v1757
        %2425 = vmatpush1.bf16.msra.mxu0 %v1756
        %2426 = vmatprep.subr.bf16.mxu0 %v1765
        %2427 = vmatpush1.bf16.msra.mxu0 %v1764
        %2428 = vmatprep.mubr.bf16.mxu0 %v863
        %2429 = vmatmul.mubr.bf16.gmra.mrb[0].mxu0 %v862
        %v2430 = vpop.f32.mrb[0].mxu0
        %v2431 = vadd.f32 0.0, %v2430
        %v2432 = vpop.f32.mrb[0].mxu0
        %v2433 = vadd.f32 0.0, %v2432
        %v2434 = vpop.f32.mrb[0].mxu0
        %v2435 = vpop.f32.mrb[0].mxu0
        %2436 = vdwg.mxu0
        %2437 = vmatprep.subr.bf16.mxu0 %v1773
        %2438 = vmatpush1.bf16.msra.mxu0 %v1772
        %2439 = vmatprep.subr.bf16.mxu0 %v1781
        %2440 = vmatpush1.bf16.msra.mxu0 %v1780
        %2441 = vmatprep.subr.bf16.mxu0 %v1789
        %2442 = vmatpush1.bf16.msra.mxu0 %v1788
        %2443 = vmatprep.subr.bf16.mxu0 %v1797
        %2444 = vmatpush1.bf16.msra.mxu0 %v1796
        %2445 = vmatprep.subr.bf16.mxu0 %v1805
        %2446 = vmatpush1.bf16.msra.mxu0 %v1804
        %2447 = vmatprep.subr.bf16.mxu0 %v1813
        %2448 = vmatpush1.bf16.msra.mxu0 %v1812
        %2449 = vmatprep.subr.bf16.mxu0 %v1821
        %2450 = vmatpush1.bf16.msra.mxu0 %v1820
        %2451 = vmatprep.subr.bf16.mxu0 %v1829
        %2452 = vmatpush1.bf16.msra.mxu0 %v1828
        %2453 = vmatprep.subr.bf16.mxu0 %v1837
        %2454 = vmatpush1.bf16.msra.mxu0 %v1836
        %2455 = vmatprep.subr.bf16.mxu0 %v1845
        %2456 = vmatpush1.bf16.msra.mxu0 %v1844
        %2457 = vmatprep.subr.bf16.mxu0 %v1853
        %2458 = vmatpush1.bf16.msra.mxu0 %v1852
        %2459 = vmatprep.subr.bf16.mxu0 %v1861
        %2460 = vmatpush1.bf16.msra.mxu0 %v1860
        %2461 = vmatprep.subr.bf16.mxu0 %v1869
        %2462 = vmatpush1.bf16.msra.mxu0 %v1868
        %2463 = vmatprep.subr.bf16.mxu0 %v1877
        %2464 = vmatpush1.bf16.msra.mxu0 %v1876
        %2465 = vmatprep.subr.bf16.mxu0 %v1885
        %2466 = vmatpush1.bf16.msra.mxu0 %v1884
        %2467 = vmatprep.subr.bf16.mxu0 %v1893
        %2468 = vmatpush1.bf16.msra.mxu0 %v1892
        %2469 = vmatprep.mubr.bf16.mxu0 %v865
        %2470 = vmatmul.mubr.bf16.gmra.mrb[0].mxu0 %v864
        %v2471 = vpop.f32.mrb[0].mxu0
        %v2472 = vadd.f32 %v2431, %v2471
        %v2473 = vpop.f32.mrb[0].mxu0
        %v2474 = vadd.f32 %v2433, %v2473
        %v2475 = vpop.f32.mrb[0].mxu0
        %v2476 = vpop.f32.mrb[0].mxu0
        %2477 = vdwg.mxu0
        %v2478 = vadd.f32 %v590, %v2226
        %v2479 = vadd.f32 %v591, %v2228
        %v2480 = vadd.f32 %v592, %v2308
        %v2481 = vadd.f32 %v593, %v2310
        %v2482 = vadd.f32 %v594, %v2390
        %v2483 = vadd.f32 %v595, %v2392
        %v2484 = vadd.f32 %v596, %v2472
        %v2485 = vadd.f32 %v597, %v2474
        %2486 = vst [vmem:[#allocation2] sm:$0xff] %v2478
        %2487 = vst [vmem:[#allocation2 + $0x8] sm:$0xff] %v2479
        %2488 = vst [vmem:[#allocation2 + $0x10] sm:$0xff] %v2480
        %2489 = vst [vmem:[#allocation2 + $0x18] sm:$0xff] %v2481
        %2490 = vst [vmem:[#allocation2 + $0x20] sm:$0xff] %v2482
        %2491 = vst [vmem:[#allocation2 + $0x28] sm:$0xff] %v2483
        %2492 = vst [vmem:[#allocation2 + $0x30] sm:$0xff] %v2484
        %2493 = vst [vmem:[#allocation2 + $0x38] sm:$0xff] %v2485
        %p2494 = scmp.eq.s32.totalorder %s30, 3
        // Predicated region
        $region109: #{resnet_classifier_forward.1} parent=63 // pred_check
          %p2495 = pneg %p2494
        $region110: #{resnet_classifier_forward.1} parent=63 // pred_check_branch
          %2497 = sbr.rel (%p2495) target = $region112
        $region111: #{resnet_classifier_forward.1} parent=63 // pred_region
          %v2498 = vld [vmem:[#allocation2] sm:$0xff]
          %v2499 = vld [vmem:[#allocation2 + $0x8] sm:$0xff]
          %v2500 = vld [vmem:[#allocation2 + $0x10] sm:$0xff]
          %v2501 = vld [vmem:[#allocation2 + $0x18] sm:$0xff]
          %v2502 = vld [vmem:[#allocation2 + $0x20] sm:$0xff]
          %v2503 = vld [vmem:[#allocation2 + $0x28] sm:$0xff]
          %v2504 = vld [vmem:[#allocation2 + $0x30] sm:$0xff]
          %v2505 = vld [vmem:[#allocation2 + $0x38] sm:$0xff]
          %v2506 = vmax.f32 %v2498, 0.0
          %v2507 = vmax.f32 %v2499, 0.0
          %v2508 = vmax.f32 %v2500, 0.0
          %v2509 = vmax.f32 %v2501, 0.0
          %v2510 = vmax.f32 %v2502, 0.0
          %v2511 = vmax.f32 %v2503, 0.0
          %v2512 = vmax.f32 %v2504, 0.0
          %v2513 = vmax.f32 %v2505, 0.0
          %v2514 = vpack.c.bf16 %v2506, %v2506
          %v2515 = vpack.c.bf16 %v2507, %v2507
          %v2516 = vpack.c.bf16 %v2508, %v2508
          %v2517 = vpack.c.bf16 %v2509, %v2509
          %v2518 = vpack.c.bf16 %v2510, %v2510
          %v2519 = vpack.c.bf16 %v2511, %v2511
          %v2520 = vpack.c.bf16 %v2512, %v2512
          %v2521 = vpack.c.bf16 %v2513, %v2513
          %v2522 = vld [vmem:[#allocation7] sm:$0xff]
          %v2523 = vld [vmem:[#allocation7 + $0x8] sm:$0xf]
          %v2524 = vld [vmem:[#allocation7 + $0xc] sm:$0xff]
          %v2525 = vld [vmem:[#allocation7 + $0x14] sm:$0xf]
          %v2526 = vld [vmem:[#allocation7 + $0x18] sm:$0xff]
          %v2527 = vld [vmem:[#allocation7 + $0x20] sm:$0xf]
          %v2528 = vld [vmem:[#allocation7 + $0x24] sm:$0xff]
          %v2529 = vld [vmem:[#allocation7 + $0x2c] sm:$0xf]
          %v2530 = vld [vmem:[#allocation7 + $0x30] sm:$0xff]
          %v2531 = vld [vmem:[#allocation7 + $0x38] sm:$0xf]
          %v2532 = vld [vmem:[#allocation7 + $0x3c] sm:$0xff]
          %v2533 = vld [vmem:[#allocation7 + $0x44] sm:$0xf]
          %v2534 = vld [vmem:[#allocation7 + $0x48] sm:$0xff]
          %v2535 = vld [vmem:[#allocation7 + $0x50] sm:$0xf]
          %v2536 = vld [vmem:[#allocation7 + $0x54] sm:$0xff]
          %v2537 = vld [vmem:[#allocation7 + $0x5c] sm:$0xf]
          %v2538 = vld [vmem:[#allocation7 + $0x60] sm:$0xff]
          %v2539 = vld [vmem:[#allocation7 + $0x68] sm:$0xf]
          %v2540 = vld [vmem:[#allocation7 + $0x6c] sm:$0xff]
          %v2541 = vld [vmem:[#allocation7 + $0x74] sm:$0xf]
          %v2542 = vld [vmem:[#allocation7 + $0x78] sm:$0xff]
          %v2543 = vld [vmem:[#allocation7 + $0x80] sm:$0xf]
          %v2544 = vld [vmem:[#allocation7 + $0x84] sm:$0xff]
          %v2545 = vld [vmem:[#allocation7 + $0x8c] sm:$0xf]
          %v2546 = vld [vmem:[#allocation7 + $0x90] sm:$0xff]
          %v2547 = vld [vmem:[#allocation7 + $0x98] sm:$0xf]
          %v2548 = vld [vmem:[#allocation7 + $0x9c] sm:$0xff]
          %v2549 = vld [vmem:[#allocation7 + $0xa4] sm:$0xf]
          %v2550 = vld [vmem:[#allocation7 + $0xa8] sm:$0xff]
          %v2551 = vld [vmem:[#allocation7 + $0xb0] sm:$0xf]
          %v2552 = vld [vmem:[#allocation7 + $0xb4] sm:$0xff]
          %v2553 = vld [vmem:[#allocation7 + $0xbc] sm:$0xf]
          %v2554 = vld [vmem:[#allocation7 + $0xc0] sm:$0xff]
          %v2555 = vld [vmem:[#allocation7 + $0xc8] sm:$0xf]
          %v2556 = vld [vmem:[#allocation7 + $0xcc] sm:$0xff]
          %v2557 = vld [vmem:[#allocation7 + $0xd4] sm:$0xf]
          %v2558 = vld [vmem:[#allocation7 + $0xd8] sm:$0xff]
          %v2559 = vld [vmem:[#allocation7 + $0xe0] sm:$0xf]
          %v2560 = vld [vmem:[#allocation7 + $0xe4] sm:$0xff]
          %v2561 = vld [vmem:[#allocation7 + $0xec] sm:$0xf]
          %v2562 = vld [vmem:[#allocation7 + $0xf0] sm:$0xff]
          %v2563 = vld [vmem:[#allocation7 + $0xf8] sm:$0xf]
          %v2564 = vld [vmem:[#allocation7 + $0xfc] sm:$0xff]
          %v2565 = vld [vmem:[#allocation7 + $0x104] sm:$0xf]
          %v2566 = vld [vmem:[#allocation7 + $0x108] sm:$0xff]
          %v2567 = vld [vmem:[#allocation7 + $0x110] sm:$0xf]
          %v2568 = vld [vmem:[#allocation7 + $0x114] sm:$0xff]
          %v2569 = vld [vmem:[#allocation7 + $0x11c] sm:$0xf]
          %v2570 = vld [vmem:[#allocation7 + $0x120] sm:$0xff]
          %v2571 = vld [vmem:[#allocation7 + $0x128] sm:$0xf]
          %v2572 = vld [vmem:[#allocation7 + $0x12c] sm:$0xff]
          %v2573 = vld [vmem:[#allocation7 + $0x134] sm:$0xf]
          %v2574 = vld [vmem:[#allocation7 + $0x138] sm:$0xff]
          %v2575 = vld [vmem:[#allocation7 + $0x140] sm:$0xf]
          %v2576 = vld [vmem:[#allocation7 + $0x144] sm:$0xff]
          %v2577 = vld [vmem:[#allocation7 + $0x14c] sm:$0xf]
          %v2578 = vld [vmem:[#allocation7 + $0x150] sm:$0xff]
          %v2579 = vld [vmem:[#allocation7 + $0x158] sm:$0xf]
          %v2580 = vld [vmem:[#allocation7 + $0x15c] sm:$0xff]
          %v2581 = vld [vmem:[#allocation7 + $0x164] sm:$0xf]
          %v2582 = vld [vmem:[#allocation7 + $0x168] sm:$0xff]
          %v2583 = vld [vmem:[#allocation7 + $0x170] sm:$0xf]
          %v2584 = vld [vmem:[#allocation7 + $0x174] sm:$0xff]
          %v2585 = vld [vmem:[#allocation7 + $0x17c] sm:$0xf]
          %v2586 = vld [vmem:[#allocation7 + $0x180] sm:$0xff]
          %v2587 = vld [vmem:[#allocation7 + $0x188] sm:$0xf]
          %v2588 = vld [vmem:[#allocation7 + $0x18c] sm:$0xff]
          %v2589 = vld [vmem:[#allocation7 + $0x194] sm:$0xf]
          %v2590 = vld [vmem:[#allocation7 + $0x198] sm:$0xff]
          %v2591 = vld [vmem:[#allocation7 + $0x1a0] sm:$0xf]
          %v2592 = vld [vmem:[#allocation7 + $0x1a4] sm:$0xff]
          %v2593 = vld [vmem:[#allocation7 + $0x1ac] sm:$0xf]
          %v2594 = vld [vmem:[#allocation7 + $0x1b0] sm:$0xff]
          %v2595 = vld [vmem:[#allocation7 + $0x1b8] sm:$0xf]
          %v2596 = vld [vmem:[#allocation7 + $0x1bc] sm:$0xff]
          %v2597 = vld [vmem:[#allocation7 + $0x1c4] sm:$0xf]
          %v2598 = vld [vmem:[#allocation7 + $0x1c8] sm:$0xff]
          %v2599 = vld [vmem:[#allocation7 + $0x1d0] sm:$0xf]
          %v2600 = vld [vmem:[#allocation7 + $0x1d4] sm:$0xff]
          %v2601 = vld [vmem:[#allocation7 + $0x1dc] sm:$0xf]
          %v2602 = vld [vmem:[#allocation7 + $0x1e0] sm:$0xff]
          %v2603 = vld [vmem:[#allocation7 + $0x1e8] sm:$0xf]
          %v2604 = vld [vmem:[#allocation7 + $0x1ec] sm:$0xff]
          %v2605 = vld [vmem:[#allocation7 + $0x1f4] sm:$0xf]
          %v2606 = vld [vmem:[#allocation7 + $0x1f8] sm:$0xff]
          %v2607 = vld [vmem:[#allocation7 + $0x200] sm:$0xf]
          %v2608 = vld [vmem:[#allocation7 + $0x204] sm:$0xff]
          %v2609 = vld [vmem:[#allocation7 + $0x20c] sm:$0xf]
          %v2610 = vld [vmem:[#allocation7 + $0x210] sm:$0xff]
          %v2611 = vld [vmem:[#allocation7 + $0x218] sm:$0xf]
          %v2612 = vld [vmem:[#allocation7 + $0x21c] sm:$0xff]
          %v2613 = vld [vmem:[#allocation7 + $0x224] sm:$0xf]
          %v2614 = vld [vmem:[#allocation7 + $0x228] sm:$0xff]
          %v2615 = vld [vmem:[#allocation7 + $0x230] sm:$0xf]
          %v2616 = vld [vmem:[#allocation7 + $0x234] sm:$0xff]
          %v2617 = vld [vmem:[#allocation7 + $0x23c] sm:$0xf]
          %v2618 = vld [vmem:[#allocation7 + $0x240] sm:$0xff]
          %v2619 = vld [vmem:[#allocation7 + $0x248] sm:$0xf]
          %v2620 = vld [vmem:[#allocation7 + $0x24c] sm:$0xff]
          %v2621 = vld [vmem:[#allocation7 + $0x254] sm:$0xf]
          %v2622 = vld [vmem:[#allocation7 + $0x258] sm:$0xff]
          %v2623 = vld [vmem:[#allocation7 + $0x260] sm:$0xf]
          %v2624 = vld [vmem:[#allocation7 + $0x264] sm:$0xff]
          %v2625 = vld [vmem:[#allocation7 + $0x26c] sm:$0xf]
          %v2626 = vld [vmem:[#allocation7 + $0x270] sm:$0xff]
          %v2627 = vld [vmem:[#allocation7 + $0x278] sm:$0xf]
          %v2628 = vld [vmem:[#allocation7 + $0x27c] sm:$0xff]
          %v2629 = vld [vmem:[#allocation7 + $0x284] sm:$0xf]
          %v2630 = vld [vmem:[#allocation7 + $0x288] sm:$0xff]
          %v2631 = vld [vmem:[#allocation7 + $0x290] sm:$0xf]
          %v2632 = vld [vmem:[#allocation7 + $0x294] sm:$0xff]
          %v2633 = vld [vmem:[#allocation7 + $0x29c] sm:$0xf]
          %v2634 = vld [vmem:[#allocation7 + $0x2a0] sm:$0xff]
          %v2635 = vld [vmem:[#allocation7 + $0x2a8] sm:$0xf]
          %v2636 = vld [vmem:[#allocation7 + $0x2ac] sm:$0xff]
          %v2637 = vld [vmem:[#allocation7 + $0x2b4] sm:$0xf]
          %v2638 = vld [vmem:[#allocation7 + $0x2b8] sm:$0xff]
          %v2639 = vld [vmem:[#allocation7 + $0x2c0] sm:$0xf]
          %v2640 = vld [vmem:[#allocation7 + $0x2c4] sm:$0xff]
          %v2641 = vld [vmem:[#allocation7 + $0x2cc] sm:$0xf]
          %v2642 = vld [vmem:[#allocation7 + $0x2d0] sm:$0xff]
          %v2643 = vld [vmem:[#allocation7 + $0x2d8] sm:$0xf]
          %v2644 = vld [vmem:[#allocation7 + $0x2dc] sm:$0xff]
          %v2645 = vld [vmem:[#allocation7 + $0x2e4] sm:$0xf]
          %v2646 = vld [vmem:[#allocation7 + $0x2e8] sm:$0xff]
          %v2647 = vld [vmem:[#allocation7 + $0x2f0] sm:$0xf]
          %v2648 = vld [vmem:[#allocation7 + $0x2f4] sm:$0xff]
          %v2649 = vld [vmem:[#allocation7 + $0x2fc] sm:$0xf]
          %v2650 = vld [vmem:[#allocation7 + $0x300] sm:$0xff]
          %v2651 = vld [vmem:[#allocation7 + $0x308] sm:$0xf]
          %v2652 = vld [vmem:[#allocation7 + $0x30c] sm:$0xff]
          %v2653 = vld [vmem:[#allocation7 + $0x314] sm:$0xf]
          %v2654 = vld [vmem:[#allocation7 + $0x318] sm:$0xff]
          %v2655 = vld [vmem:[#allocation7 + $0x320] sm:$0xf]
          %v2656 = vld [vmem:[#allocation7 + $0x324] sm:$0xff]
          %v2657 = vld [vmem:[#allocation7 + $0x32c] sm:$0xf]
          %v2658 = vld [vmem:[#allocation7 + $0x330] sm:$0xff]
          %v2659 = vld [vmem:[#allocation7 + $0x338] sm:$0xf]
          %v2660 = vld [vmem:[#allocation7 + $0x33c] sm:$0xff]
          %v2661 = vld [vmem:[#allocation7 + $0x344] sm:$0xf]
          %v2662 = vld [vmem:[#allocation7 + $0x348] sm:$0xff]
          %v2663 = vld [vmem:[#allocation7 + $0x350] sm:$0xf]
          %v2664 = vld [vmem:[#allocation7 + $0x354] sm:$0xff]
          %v2665 = vld [vmem:[#allocation7 + $0x35c] sm:$0xf]
          %v2666 = vld [vmem:[#allocation7 + $0x360] sm:$0xff]
          %v2667 = vld [vmem:[#allocation7 + $0x368] sm:$0xf]
          %v2668 = vld [vmem:[#allocation7 + $0x36c] sm:$0xff]
          %v2669 = vld [vmem:[#allocation7 + $0x374] sm:$0xf]
          %v2670 = vld [vmem:[#allocation7 + $0x378] sm:$0xff]
          %v2671 = vld [vmem:[#allocation7 + $0x380] sm:$0xf]
          %v2672 = vld [vmem:[#allocation7 + $0x384] sm:$0xff]
          %v2673 = vld [vmem:[#allocation7 + $0x38c] sm:$0xf]
          %v2674 = vld [vmem:[#allocation7 + $0x390] sm:$0xff]
          %v2675 = vld [vmem:[#allocation7 + $0x398] sm:$0xf]
          %v2676 = vld [vmem:[#allocation7 + $0x39c] sm:$0xff]
          %v2677 = vld [vmem:[#allocation7 + $0x3a4] sm:$0xf]
          %v2678 = vld [vmem:[#allocation7 + $0x3a8] sm:$0xff]
          %v2679 = vld [vmem:[#allocation7 + $0x3b0] sm:$0xf]
          %v2680 = vld [vmem:[#allocation7 + $0x3b4] sm:$0xff]
          %v2681 = vld [vmem:[#allocation7 + $0x3bc] sm:$0xf]
          %v2682 = vld [vmem:[#allocation7 + $0x3c0] sm:$0xff]
          %v2683 = vld [vmem:[#allocation7 + $0x3c8] sm:$0xf]
          %v2684 = vld [vmem:[#allocation7 + $0x3cc] sm:$0xff]
          %v2685 = vld [vmem:[#allocation7 + $0x3d4] sm:$0xf]
          %v2686 = vld [vmem:[#allocation7 + $0x3d8] sm:$0xff]
          %v2687 = vld [vmem:[#allocation7 + $0x3e0] sm:$0xf]
          %v2688 = vld [vmem:[#allocation7 + $0x3e4] sm:$0xff]
          %v2689 = vld [vmem:[#allocation7 + $0x3ec] sm:$0xf]
          %v2690 = vld [vmem:[#allocation7 + $0x3f0] sm:$0xff]
          %v2691 = vld [vmem:[#allocation7 + $0x3f8] sm:$0xf]
          %v2692 = vld [vmem:[#allocation7 + $0x3fc] sm:$0xff]
          %v2693 = vld [vmem:[#allocation7 + $0x404] sm:$0xf]
          %v2694 = vld [vmem:[#allocation7 + $0x408] sm:$0xff]
          %v2695 = vld [vmem:[#allocation7 + $0x410] sm:$0xf]
          %v2696 = vld [vmem:[#allocation7 + $0x414] sm:$0xff]
          %v2697 = vld [vmem:[#allocation7 + $0x41c] sm:$0xf]
          %v2698 = vld [vmem:[#allocation7 + $0x420] sm:$0xff]
          %v2699 = vld [vmem:[#allocation7 + $0x428] sm:$0xf]
          %v2700 = vld [vmem:[#allocation7 + $0x42c] sm:$0xff]
          %v2701 = vld [vmem:[#allocation7 + $0x434] sm:$0xf]
          %v2702 = vld [vmem:[#allocation7 + $0x438] sm:$0xff]
          %v2703 = vld [vmem:[#allocation7 + $0x440] sm:$0xf]
          %v2704 = vld [vmem:[#allocation7 + $0x444] sm:$0xff]
          %v2705 = vld [vmem:[#allocation7 + $0x44c] sm:$0xf]
          %v2706 = vld [vmem:[#allocation7 + $0x450] sm:$0xff]
          %v2707 = vld [vmem:[#allocation7 + $0x458] sm:$0xf]
          %v2708 = vld [vmem:[#allocation7 + $0x45c] sm:$0xff]
          %v2709 = vld [vmem:[#allocation7 + $0x464] sm:$0xf]
          %v2710 = vld [vmem:[#allocation7 + $0x468] sm:$0xff]
          %v2711 = vld [vmem:[#allocation7 + $0x470] sm:$0xf]
          %v2712 = vld [vmem:[#allocation7 + $0x474] sm:$0xff]
          %v2713 = vld [vmem:[#allocation7 + $0x47c] sm:$0xf]
          %v2714 = vld [vmem:[#allocation7 + $0x480] sm:$0xff]
          %v2715 = vld [vmem:[#allocation7 + $0x488] sm:$0xf]
          %v2716 = vld [vmem:[#allocation7 + $0x48c] sm:$0xff]
          %v2717 = vld [vmem:[#allocation7 + $0x494] sm:$0xf]
          %v2718 = vld [vmem:[#allocation7 + $0x498] sm:$0xff]
          %v2719 = vld [vmem:[#allocation7 + $0x4a0] sm:$0xf]
          %v2720 = vld [vmem:[#allocation7 + $0x4a4] sm:$0xff]
          %v2721 = vld [vmem:[#allocation7 + $0x4ac] sm:$0xf]
          %v2722 = vld [vmem:[#allocation7 + $0x4b0] sm:$0xff]
          %v2723 = vld [vmem:[#allocation7 + $0x4b8] sm:$0xf]
          %v2724 = vld [vmem:[#allocation7 + $0x4bc] sm:$0xff]
          %v2725 = vld [vmem:[#allocation7 + $0x4c4] sm:$0xf]
          %v2726 = vld [vmem:[#allocation7 + $0x4c8] sm:$0xff]
          %v2727 = vld [vmem:[#allocation7 + $0x4d0] sm:$0xf]
          %v2728 = vld [vmem:[#allocation7 + $0x4d4] sm:$0xff]
          %v2729 = vld [vmem:[#allocation7 + $0x4dc] sm:$0xf]
          %v2730 = vld [vmem:[#allocation7 + $0x4e0] sm:$0xff]
          %v2731 = vld [vmem:[#allocation7 + $0x4e8] sm:$0xf]
          %v2732 = vld [vmem:[#allocation7 + $0x4ec] sm:$0xff]
          %v2733 = vld [vmem:[#allocation7 + $0x4f4] sm:$0xf]
          %v2734 = vld [vmem:[#allocation7 + $0x4f8] sm:$0xff]
          %v2735 = vld [vmem:[#allocation7 + $0x500] sm:$0xf]
          %v2736 = vld [vmem:[#allocation7 + $0x504] sm:$0xff]
          %v2737 = vld [vmem:[#allocation7 + $0x50c] sm:$0xf]
          %v2738 = vld [vmem:[#allocation7 + $0x510] sm:$0xff]
          %v2739 = vld [vmem:[#allocation7 + $0x518] sm:$0xf]
          %v2740 = vld [vmem:[#allocation7 + $0x51c] sm:$0xff]
          %v2741 = vld [vmem:[#allocation7 + $0x524] sm:$0xf]
          %v2742 = vld [vmem:[#allocation7 + $0x528] sm:$0xff]
          %v2743 = vld [vmem:[#allocation7 + $0x530] sm:$0xf]
          %v2744 = vld [vmem:[#allocation7 + $0x534] sm:$0xff]
          %v2745 = vld [vmem:[#allocation7 + $0x53c] sm:$0xf]
          %v2746 = vld [vmem:[#allocation7 + $0x540] sm:$0xff]
          %v2747 = vld [vmem:[#allocation7 + $0x548] sm:$0xf]
          %v2748 = vld [vmem:[#allocation7 + $0x54c] sm:$0xff]
          %v2749 = vld [vmem:[#allocation7 + $0x554] sm:$0xf]
          %v2750 = vld [vmem:[#allocation7 + $0x558] sm:$0xff]
          %v2751 = vld [vmem:[#allocation7 + $0x560] sm:$0xf]
          %v2752 = vld [vmem:[#allocation7 + $0x564] sm:$0xff]
          %v2753 = vld [vmem:[#allocation7 + $0x56c] sm:$0xf]
          %v2754 = vld [vmem:[#allocation7 + $0x570] sm:$0xff]
          %v2755 = vld [vmem:[#allocation7 + $0x578] sm:$0xf]
          %v2756 = vld [vmem:[#allocation7 + $0x57c] sm:$0xff]
          %v2757 = vld [vmem:[#allocation7 + $0x584] sm:$0xf]
          %v2758 = vld [vmem:[#allocation7 + $0x588] sm:$0xff]
          %v2759 = vld [vmem:[#allocation7 + $0x590] sm:$0xf]
          %v2760 = vld [vmem:[#allocation7 + $0x594] sm:$0xff]
          %v2761 = vld [vmem:[#allocation7 + $0x59c] sm:$0xf]
          %v2762 = vld [vmem:[#allocation7 + $0x5a0] sm:$0xff]
          %v2763 = vld [vmem:[#allocation7 + $0x5a8] sm:$0xf]
          %v2764 = vld [vmem:[#allocation7 + $0x5ac] sm:$0xff]
          %v2765 = vld [vmem:[#allocation7 + $0x5b4] sm:$0xf]
          %v2766 = vld [vmem:[#allocation7 + $0x5b8] sm:$0xff]
          %v2767 = vld [vmem:[#allocation7 + $0x5c0] sm:$0xf]
          %v2768 = vld [vmem:[#allocation7 + $0x5c4] sm:$0xff]
          %v2769 = vld [vmem:[#allocation7 + $0x5cc] sm:$0xf]
          %v2770 = vld [vmem:[#allocation7 + $0x5d0] sm:$0xff]
          %v2771 = vld [vmem:[#allocation7 + $0x5d8] sm:$0xf]
          %v2772 = vld [vmem:[#allocation7 + $0x5dc] sm:$0xff]
          %v2773 = vld [vmem:[#allocation7 + $0x5e4] sm:$0xf]
          %v2774 = vld [vmem:[#allocation7 + $0x5e8] sm:$0xff]
          %v2775 = vld [vmem:[#allocation7 + $0x5f0] sm:$0xf]
          %v2776 = vld [vmem:[#allocation7 + $0x5f4] sm:$0xff]
          %v2777 = vld [vmem:[#allocation7 + $0x5fc] sm:$0xf]
          %v2778 = vld [vmem:[#allocation8] sm:$0x7]
          %v2780 = vlaneseq
          %v2781 = vshrl.u32 %v2780, 7
          %v2782 = vsub.s32 0, %v2781
          %v2783 = vrot.slane %v2778, %v2782
          %v2784 = vlaneseq
          %v2785 = vshrl.u32 %v2784, 7
          %v2786 = vsub.s32 1, %v2785
          %v2787 = vrot.slane %v2778, %v2786
          %v2788 = vlaneseq
          %v2789 = vshrl.u32 %v2788, 7
          %v2790 = vsub.s32 2, %v2789
          %v2791 = vrot.slane %v2778, %v2790
          %v3051 = vunpack.c.l.b16 %v2522
          %v3052 = vunpack.c.h.b16 %v2522
          %v3053 = vunpack.c.l.b16 %v2523
          %v3054 = vunpack.c.l.b16 %v2524
          %v3055 = vunpack.c.h.b16 %v2524
          %v3056 = vunpack.c.l.b16 %v2525
          %v3057 = vunpack.c.l.b16 %v2526
          %v3058 = vunpack.c.h.b16 %v2526
          %v3059 = vunpack.c.l.b16 %v2527
          %v3060 = vunpack.c.l.b16 %v2528
          %v3061 = vunpack.c.h.b16 %v2528
          %v3062 = vunpack.c.l.b16 %v2529
          %v3063 = vunpack.c.l.b16 %v2530
          %v3064 = vunpack.c.h.b16 %v2530
          %v3065 = vunpack.c.l.b16 %v2531
          %v3066 = vunpack.c.l.b16 %v2532
          %v3067 = vunpack.c.h.b16 %v2532
          %v3068 = vunpack.c.l.b16 %v2533
          %v3069 = vunpack.c.l.b16 %v2534
          %v3070 = vunpack.c.h.b16 %v2534
          %v3071 = vunpack.c.l.b16 %v2535
          %v3072 = vunpack.c.l.b16 %v2536
          %v3073 = vunpack.c.h.b16 %v2536
          %v3074 = vunpack.c.l.b16 %v2537
          %v3075 = vunpack.c.l.b16 %v2538
          %v3076 = vunpack.c.h.b16 %v2538
          %v3077 = vunpack.c.l.b16 %v2539
          %v3078 = vunpack.c.l.b16 %v2540
          %v3079 = vunpack.c.h.b16 %v2540
          %v3080 = vunpack.c.l.b16 %v2541
          %v3081 = vunpack.c.l.b16 %v2542
          %v3082 = vunpack.c.h.b16 %v2542
          %v3083 = vunpack.c.l.b16 %v2543
          %v3084 = vunpack.c.l.b16 %v2544
          %v3085 = vunpack.c.h.b16 %v2544
          %v3086 = vunpack.c.l.b16 %v2545
          %v3087 = vunpack.c.l.b16 %v2546
          %v3088 = vunpack.c.h.b16 %v2546
          %v3089 = vunpack.c.l.b16 %v2547
          %v3090 = vunpack.c.l.b16 %v2548
          %v3091 = vunpack.c.h.b16 %v2548
          %v3092 = vunpack.c.l.b16 %v2549
          %v3093 = vunpack.c.l.b16 %v2550
          %v3094 = vunpack.c.h.b16 %v2550
          %v3095 = vunpack.c.l.b16 %v2551
          %v3096 = vunpack.c.l.b16 %v2552
          %v3097 = vunpack.c.h.b16 %v2552
          %v3098 = vunpack.c.l.b16 %v2553
          %v3099 = vunpack.c.l.b16 %v2554
          %v3100 = vunpack.c.h.b16 %v2554
          %v3101 = vunpack.c.l.b16 %v2555
          %v3102 = vunpack.c.l.b16 %v2556
          %v3103 = vunpack.c.h.b16 %v2556
          %v3104 = vunpack.c.l.b16 %v2557
          %v3105 = vunpack.c.l.b16 %v2558
          %v3106 = vunpack.c.h.b16 %v2558
          %v3107 = vunpack.c.l.b16 %v2559
          %v3108 = vunpack.c.l.b16 %v2560
          %v3109 = vunpack.c.h.b16 %v2560
          %v3110 = vunpack.c.l.b16 %v2561
          %v3111 = vunpack.c.l.b16 %v2562
          %v3112 = vunpack.c.h.b16 %v2562
          %v3113 = vunpack.c.l.b16 %v2563
          %v3114 = vunpack.c.l.b16 %v2564
          %v3115 = vunpack.c.h.b16 %v2564
          %v3116 = vunpack.c.l.b16 %v2565
          %v3117 = vunpack.c.l.b16 %v2566
          %v3118 = vunpack.c.h.b16 %v2566
          %v3119 = vunpack.c.l.b16 %v2567
          %v3120 = vunpack.c.l.b16 %v2568
          %v3121 = vunpack.c.h.b16 %v2568
          %v3122 = vunpack.c.l.b16 %v2569
          %v3123 = vunpack.c.l.b16 %v2570
          %v3124 = vunpack.c.h.b16 %v2570
          %v3125 = vunpack.c.l.b16 %v2571
          %v3126 = vunpack.c.l.b16 %v2572
          %v3127 = vunpack.c.h.b16 %v2572
          %v3128 = vunpack.c.l.b16 %v2573
          %v3129 = vunpack.c.l.b16 %v2574
          %v3130 = vunpack.c.h.b16 %v2574
          %v3131 = vunpack.c.l.b16 %v2575
          %v3132 = vunpack.c.l.b16 %v2576
          %v3133 = vunpack.c.h.b16 %v2576
          %v3134 = vunpack.c.l.b16 %v2577
          %v3135 = vunpack.c.l.b16 %v2578
          %v3136 = vunpack.c.h.b16 %v2578
          %v3137 = vunpack.c.l.b16 %v2579
          %v3138 = vunpack.c.l.b16 %v2580
          %v3139 = vunpack.c.h.b16 %v2580
          %v3140 = vunpack.c.l.b16 %v2581
          %v3141 = vunpack.c.l.b16 %v2582
          %v3142 = vunpack.c.h.b16 %v2582
          %v3143 = vunpack.c.l.b16 %v2583
          %v3144 = vunpack.c.l.b16 %v2584
          %v3145 = vunpack.c.h.b16 %v2584
          %v3146 = vunpack.c.l.b16 %v2585
          %v3147 = vunpack.c.l.b16 %v2586
          %v3148 = vunpack.c.h.b16 %v2586
          %v3149 = vunpack.c.l.b16 %v2587
          %v3150 = vunpack.c.l.b16 %v2588
          %v3151 = vunpack.c.h.b16 %v2588
          %v3152 = vunpack.c.l.b16 %v2589
          %v3153 = vunpack.c.l.b16 %v2590
          %v3154 = vunpack.c.h.b16 %v2590
          %v3155 = vunpack.c.l.b16 %v2591
          %v3156 = vunpack.c.l.b16 %v2592
          %v3157 = vunpack.c.h.b16 %v2592
          %v3158 = vunpack.c.l.b16 %v2593
          %v3159 = vunpack.c.l.b16 %v2594
          %v3160 = vunpack.c.h.b16 %v2594
          %v3161 = vunpack.c.l.b16 %v2595
          %v3162 = vunpack.c.l.b16 %v2596
          %v3163 = vunpack.c.h.b16 %v2596
          %v3164 = vunpack.c.l.b16 %v2597
          %v3165 = vunpack.c.l.b16 %v2598
          %v3166 = vunpack.c.h.b16 %v2598
          %v3167 = vunpack.c.l.b16 %v2599
          %v3168 = vunpack.c.l.b16 %v2600
          %v3169 = vunpack.c.h.b16 %v2600
          %v3170 = vunpack.c.l.b16 %v2601
          %v3171 = vunpack.c.l.b16 %v2602
          %v3172 = vunpack.c.h.b16 %v2602
          %v3173 = vunpack.c.l.b16 %v2603
          %v3174 = vunpack.c.l.b16 %v2604
          %v3175 = vunpack.c.h.b16 %v2604
          %v3176 = vunpack.c.l.b16 %v2605
          %v3177 = vunpack.c.l.b16 %v2606
          %v3178 = vunpack.c.h.b16 %v2606
          %v3179 = vunpack.c.l.b16 %v2607
          %v3180 = vunpack.c.l.b16 %v2608
          %v3181 = vunpack.c.h.b16 %v2608
          %v3182 = vunpack.c.l.b16 %v2609
          %v3183 = vunpack.c.l.b16 %v2610
          %v3184 = vunpack.c.h.b16 %v2610
          %v3185 = vunpack.c.l.b16 %v2611
          %v3186 = vunpack.c.l.b16 %v2612
          %v3187 = vunpack.c.h.b16 %v2612
          %v3188 = vunpack.c.l.b16 %v2613
          %v3189 = vunpack.c.l.b16 %v2614
          %v3190 = vunpack.c.h.b16 %v2614
          %v3191 = vunpack.c.l.b16 %v2615
          %v3192 = vunpack.c.l.b16 %v2616
          %v3193 = vunpack.c.h.b16 %v2616
          %v3194 = vunpack.c.l.b16 %v2617
          %v3195 = vunpack.c.l.b16 %v2618
          %v3196 = vunpack.c.h.b16 %v2618
          %v3197 = vunpack.c.l.b16 %v2619
          %v3198 = vunpack.c.l.b16 %v2620
          %v3199 = vunpack.c.h.b16 %v2620
          %v3200 = vunpack.c.l.b16 %v2621
          %v3201 = vunpack.c.l.b16 %v2622
          %v3202 = vunpack.c.h.b16 %v2622
          %v3203 = vunpack.c.l.b16 %v2623
          %v3204 = vunpack.c.l.b16 %v2624
          %v3205 = vunpack.c.h.b16 %v2624
          %v3206 = vunpack.c.l.b16 %v2625
          %v3207 = vunpack.c.l.b16 %v2626
          %v3208 = vunpack.c.h.b16 %v2626
          %v3209 = vunpack.c.l.b16 %v2627
          %v3210 = vunpack.c.l.b16 %v2628
          %v3211 = vunpack.c.h.b16 %v2628
          %v3212 = vunpack.c.l.b16 %v2629
          %v3213 = vunpack.c.l.b16 %v2630
          %v3214 = vunpack.c.h.b16 %v2630
          %v3215 = vunpack.c.l.b16 %v2631
          %v3216 = vunpack.c.l.b16 %v2632
          %v3217 = vunpack.c.h.b16 %v2632
          %v3218 = vunpack.c.l.b16 %v2633
          %v3219 = vunpack.c.l.b16 %v2634
          %v3220 = vunpack.c.h.b16 %v2634
          %v3221 = vunpack.c.l.b16 %v2635
          %v3222 = vunpack.c.l.b16 %v2636
          %v3223 = vunpack.c.h.b16 %v2636
          %v3224 = vunpack.c.l.b16 %v2637
          %v3225 = vunpack.c.l.b16 %v2638
          %v3226 = vunpack.c.h.b16 %v2638
          %v3227 = vunpack.c.l.b16 %v2639
          %v3228 = vunpack.c.l.b16 %v2640
          %v3229 = vunpack.c.h.b16 %v2640
          %v3230 = vunpack.c.l.b16 %v2641
          %v3231 = vunpack.c.l.b16 %v2642
          %v3232 = vunpack.c.h.b16 %v2642
          %v3233 = vunpack.c.l.b16 %v2643
          %v3234 = vunpack.c.l.b16 %v2644
          %v3235 = vunpack.c.h.b16 %v2644
          %v3236 = vunpack.c.l.b16 %v2645
          %v3237 = vunpack.c.l.b16 %v2646
          %v3238 = vunpack.c.h.b16 %v2646
          %v3239 = vunpack.c.l.b16 %v2647
          %v3240 = vunpack.c.l.b16 %v2648
          %v3241 = vunpack.c.h.b16 %v2648
          %v3242 = vunpack.c.l.b16 %v2649
          %v3243 = vunpack.c.l.b16 %v2650
          %v3244 = vunpack.c.h.b16 %v2650
          %v3245 = vunpack.c.l.b16 %v2651
          %v3246 = vunpack.c.l.b16 %v2652
          %v3247 = vunpack.c.h.b16 %v2652
          %v3248 = vunpack.c.l.b16 %v2653
          %v3249 = vunpack.c.l.b16 %v2654
          %v3250 = vunpack.c.h.b16 %v2654
          %v3251 = vunpack.c.l.b16 %v2655
          %v3252 = vunpack.c.l.b16 %v2656
          %v3253 = vunpack.c.h.b16 %v2656
          %v3254 = vunpack.c.l.b16 %v2657
          %v3255 = vunpack.c.l.b16 %v2658
          %v3256 = vunpack.c.h.b16 %v2658
          %v3257 = vunpack.c.l.b16 %v2659
          %v3258 = vunpack.c.l.b16 %v2660
          %v3259 = vunpack.c.h.b16 %v2660
          %v3260 = vunpack.c.l.b16 %v2661
          %v3261 = vunpack.c.l.b16 %v2662
          %v3262 = vunpack.c.h.b16 %v2662
          %v3263 = vunpack.c.l.b16 %v2663
          %v3264 = vunpack.c.l.b16 %v2664
          %v3265 = vunpack.c.h.b16 %v2664
          %v3266 = vunpack.c.l.b16 %v2665
          %v3267 = vunpack.c.l.b16 %v2666
          %v3268 = vunpack.c.h.b16 %v2666
          %v3269 = vunpack.c.l.b16 %v2667
          %v3270 = vunpack.c.l.b16 %v2668
          %v3271 = vunpack.c.h.b16 %v2668
          %v3272 = vunpack.c.l.b16 %v2669
          %v3273 = vunpack.c.l.b16 %v2670
          %v3274 = vunpack.c.h.b16 %v2670
          %v3275 = vunpack.c.l.b16 %v2671
          %v3276 = vunpack.c.l.b16 %v2672
          %v3277 = vunpack.c.h.b16 %v2672
          %v3278 = vunpack.c.l.b16 %v2673
          %v3279 = vunpack.c.l.b16 %v2674
          %v3280 = vunpack.c.h.b16 %v2674
          %v3281 = vunpack.c.l.b16 %v2675
          %v3282 = vunpack.c.l.b16 %v2676
          %v3283 = vunpack.c.h.b16 %v2676
          %v3284 = vunpack.c.l.b16 %v2677
          %v3285 = vunpack.c.l.b16 %v2678
          %v3286 = vunpack.c.h.b16 %v2678
          %v3287 = vunpack.c.l.b16 %v2679
          %v3288 = vunpack.c.l.b16 %v2680
          %v3289 = vunpack.c.h.b16 %v2680
          %v3290 = vunpack.c.l.b16 %v2681
          %v3291 = vunpack.c.l.b16 %v2682
          %v3292 = vunpack.c.h.b16 %v2682
          %v3293 = vunpack.c.l.b16 %v2683
          %v3294 = vunpack.c.l.b16 %v2684
          %v3295 = vunpack.c.h.b16 %v2684
          %v3296 = vunpack.c.l.b16 %v2685
          %v3297 = vunpack.c.l.b16 %v2686
          %v3298 = vunpack.c.h.b16 %v2686
          %v3299 = vunpack.c.l.b16 %v2687
          %v3300 = vunpack.c.l.b16 %v2688
          %v3301 = vunpack.c.h.b16 %v2688
          %v3302 = vunpack.c.l.b16 %v2689
          %v3303 = vunpack.c.l.b16 %v2690
          %v3304 = vunpack.c.h.b16 %v2690
          %v3305 = vunpack.c.l.b16 %v2691
          %v3306 = vunpack.c.l.b16 %v2692
          %v3307 = vunpack.c.h.b16 %v2692
          %v3308 = vunpack.c.l.b16 %v2693
          %v3309 = vunpack.c.l.b16 %v2694
          %v3310 = vunpack.c.h.b16 %v2694
          %v3311 = vunpack.c.l.b16 %v2695
          %v3312 = vunpack.c.l.b16 %v2696
          %v3313 = vunpack.c.h.b16 %v2696
          %v3314 = vunpack.c.l.b16 %v2697
          %v3315 = vunpack.c.l.b16 %v2698
          %v3316 = vunpack.c.h.b16 %v2698
          %v3317 = vunpack.c.l.b16 %v2699
          %v3318 = vunpack.c.l.b16 %v2700
          %v3319 = vunpack.c.h.b16 %v2700
          %v3320 = vunpack.c.l.b16 %v2701
          %v3321 = vunpack.c.l.b16 %v2702
          %v3322 = vunpack.c.h.b16 %v2702
          %v3323 = vunpack.c.l.b16 %v2703
          %v3324 = vunpack.c.l.b16 %v2704
          %v3325 = vunpack.c.h.b16 %v2704
          %v3326 = vunpack.c.l.b16 %v2705
          %v3327 = vunpack.c.l.b16 %v2706
          %v3328 = vunpack.c.h.b16 %v2706
          %v3329 = vunpack.c.l.b16 %v2707
          %v3330 = vunpack.c.l.b16 %v2708
          %v3331 = vunpack.c.h.b16 %v2708
          %v3332 = vunpack.c.l.b16 %v2709
          %v3333 = vunpack.c.l.b16 %v2710
          %v3334 = vunpack.c.h.b16 %v2710
          %v3335 = vunpack.c.l.b16 %v2711
          %v3336 = vunpack.c.l.b16 %v2712
          %v3337 = vunpack.c.h.b16 %v2712
          %v3338 = vunpack.c.l.b16 %v2713
          %v3339 = vunpack.c.l.b16 %v2714
          %v3340 = vunpack.c.h.b16 %v2714
          %v3341 = vunpack.c.l.b16 %v2715
          %v3342 = vunpack.c.l.b16 %v2716
          %v3343 = vunpack.c.h.b16 %v2716
          %v3344 = vunpack.c.l.b16 %v2717
          %v3345 = vunpack.c.l.b16 %v2718
          %v3346 = vunpack.c.h.b16 %v2718
          %v3347 = vunpack.c.l.b16 %v2719
          %v3348 = vunpack.c.l.b16 %v2720
          %v3349 = vunpack.c.h.b16 %v2720
          %v3350 = vunpack.c.l.b16 %v2721
          %v3351 = vunpack.c.l.b16 %v2722
          %v3352 = vunpack.c.h.b16 %v2722
          %v3353 = vunpack.c.l.b16 %v2723
          %v3354 = vunpack.c.l.b16 %v2724
          %v3355 = vunpack.c.h.b16 %v2724
          %v3356 = vunpack.c.l.b16 %v2725
          %v3357 = vunpack.c.l.b16 %v2726
          %v3358 = vunpack.c.h.b16 %v2726
          %v3359 = vunpack.c.l.b16 %v2727
          %v3360 = vunpack.c.l.b16 %v2728
          %v3361 = vunpack.c.h.b16 %v2728
          %v3362 = vunpack.c.l.b16 %v2729
          %v3363 = vunpack.c.l.b16 %v2730
          %v3364 = vunpack.c.h.b16 %v2730
          %v3365 = vunpack.c.l.b16 %v2731
          %v3366 = vunpack.c.l.b16 %v2732
          %v3367 = vunpack.c.h.b16 %v2732
          %v3368 = vunpack.c.l.b16 %v2733
          %v3369 = vunpack.c.l.b16 %v2734
          %v3370 = vunpack.c.h.b16 %v2734
          %v3371 = vunpack.c.l.b16 %v2735
          %v3372 = vunpack.c.l.b16 %v2736
          %v3373 = vunpack.c.h.b16 %v2736
          %v3374 = vunpack.c.l.b16 %v2737
          %v3375 = vunpack.c.l.b16 %v2738
          %v3376 = vunpack.c.h.b16 %v2738
          %v3377 = vunpack.c.l.b16 %v2739
          %v3378 = vunpack.c.l.b16 %v2740
          %v3379 = vunpack.c.h.b16 %v2740
          %v3380 = vunpack.c.l.b16 %v2741
          %v3381 = vunpack.c.l.b16 %v2742
          %v3382 = vunpack.c.h.b16 %v2742
          %v3383 = vunpack.c.l.b16 %v2743
          %v3384 = vunpack.c.l.b16 %v2744
          %v3385 = vunpack.c.h.b16 %v2744
          %v3386 = vunpack.c.l.b16 %v2745
          %v3387 = vunpack.c.l.b16 %v2746
          %v3388 = vunpack.c.h.b16 %v2746
          %v3389 = vunpack.c.l.b16 %v2747
          %v3390 = vunpack.c.l.b16 %v2748
          %v3391 = vunpack.c.h.b16 %v2748
          %v3392 = vunpack.c.l.b16 %v2749
          %v3393 = vunpack.c.l.b16 %v2750
          %v3394 = vunpack.c.h.b16 %v2750
          %v3395 = vunpack.c.l.b16 %v2751
          %v3396 = vunpack.c.l.b16 %v2752
          %v3397 = vunpack.c.h.b16 %v2752
          %v3398 = vunpack.c.l.b16 %v2753
          %v3399 = vunpack.c.l.b16 %v2754
          %v3400 = vunpack.c.h.b16 %v2754
          %v3401 = vunpack.c.l.b16 %v2755
          %v3402 = vunpack.c.l.b16 %v2756
          %v3403 = vunpack.c.h.b16 %v2756
          %v3404 = vunpack.c.l.b16 %v2757
          %v3405 = vunpack.c.l.b16 %v2758
          %v3406 = vunpack.c.h.b16 %v2758
          %v3407 = vunpack.c.l.b16 %v2759
          %v3408 = vunpack.c.l.b16 %v2760
          %v3409 = vunpack.c.h.b16 %v2760
          %v3410 = vunpack.c.l.b16 %v2761
          %v3411 = vunpack.c.l.b16 %v2762
          %v3412 = vunpack.c.h.b16 %v2762
          %v3413 = vunpack.c.l.b16 %v2763
          %v3414 = vunpack.c.l.b16 %v2764
          %v3415 = vunpack.c.h.b16 %v2764
          %v3416 = vunpack.c.l.b16 %v2765
          %v3417 = vunpack.c.l.b16 %v2766
          %v3418 = vunpack.c.h.b16 %v2766
          %v3419 = vunpack.c.l.b16 %v2767
          %v3420 = vunpack.c.l.b16 %v2768
          %v3421 = vunpack.c.h.b16 %v2768
          %v3422 = vunpack.c.l.b16 %v2769
          %v3423 = vunpack.c.l.b16 %v2770
          %v3424 = vunpack.c.h.b16 %v2770
          %v3425 = vunpack.c.l.b16 %v2771
          %v3426 = vunpack.c.l.b16 %v2772
          %v3427 = vunpack.c.h.b16 %v2772
          %v3428 = vunpack.c.l.b16 %v2773
          %v3429 = vunpack.c.l.b16 %v2774
          %v3430 = vunpack.c.h.b16 %v2774
          %v3431 = vunpack.c.l.b16 %v2775
          %v3432 = vunpack.c.l.b16 %v2776
          %v3433 = vunpack.c.h.b16 %v2776
          %v3434 = vunpack.c.l.b16 %v2777
          %v3435 = vpack.c.b16 %v3054, %v3051
          %v3436 = vpack.c.b16 %v3055, %v3052
          %v3437 = vpack.c.b16 %v3056, %v3053
          %v3438 = vpack.c.b16 %v3060, %v3057
          %v3439 = vpack.c.b16 %v3061, %v3058
          %v3440 = vpack.c.b16 %v3062, %v3059
          %v3441 = vpack.c.b16 %v3066, %v3063
          %v3442 = vpack.c.b16 %v3067, %v3064
          %v3443 = vpack.c.b16 %v3068, %v3065
          %v3444 = vpack.c.b16 %v3072, %v3069
          %v3445 = vpack.c.b16 %v3073, %v3070
          %v3446 = vpack.c.b16 %v3074, %v3071
          %v3447 = vpack.c.b16 %v3078, %v3075
          %v3448 = vpack.c.b16 %v3079, %v3076
          %v3449 = vpack.c.b16 %v3080, %v3077
          %v3450 = vpack.c.b16 %v3084, %v3081
          %v3451 = vpack.c.b16 %v3085, %v3082
          %v3452 = vpack.c.b16 %v3086, %v3083
          %v3453 = vpack.c.b16 %v3090, %v3087
          %v3454 = vpack.c.b16 %v3091, %v3088
          %v3455 = vpack.c.b16 %v3092, %v3089
          %v3456 = vpack.c.b16 %v3096, %v3093
          %v3457 = vpack.c.b16 %v3097, %v3094
          %v3458 = vpack.c.b16 %v3098, %v3095
          %v3459 = vpack.c.b16 %v3102, %v3099
          %v3460 = vpack.c.b16 %v3103, %v3100
          %v3461 = vpack.c.b16 %v3104, %v3101
          %v3462 = vpack.c.b16 %v3108, %v3105
          %v3463 = vpack.c.b16 %v3109, %v3106
          %v3464 = vpack.c.b16 %v3110, %v3107
          %v3465 = vpack.c.b16 %v3114, %v3111
          %v3466 = vpack.c.b16 %v3115, %v3112
          %v3467 = vpack.c.b16 %v3116, %v3113
          %v3468 = vpack.c.b16 %v3120, %v3117
          %v3469 = vpack.c.b16 %v3121, %v3118
          %v3470 = vpack.c.b16 %v3122, %v3119
          %v3471 = vpack.c.b16 %v3126, %v3123
          %v3472 = vpack.c.b16 %v3127, %v3124
          %v3473 = vpack.c.b16 %v3128, %v3125
          %v3474 = vpack.c.b16 %v3132, %v3129
          %v3475 = vpack.c.b16 %v3133, %v3130
          %v3476 = vpack.c.b16 %v3134, %v3131
          %v3477 = vpack.c.b16 %v3138, %v3135
          %v3478 = vpack.c.b16 %v3139, %v3136
          %v3479 = vpack.c.b16 %v3140, %v3137
          %v3480 = vpack.c.b16 %v3144, %v3141
          %v3481 = vpack.c.b16 %v3145, %v3142
          %v3482 = vpack.c.b16 %v3146, %v3143
          %v3483 = vpack.c.b16 %v3150, %v3147
          %v3484 = vpack.c.b16 %v3151, %v3148
          %v3485 = vpack.c.b16 %v3152, %v3149
          %v3486 = vpack.c.b16 %v3156, %v3153
          %v3487 = vpack.c.b16 %v3157, %v3154
          %v3488 = vpack.c.b16 %v3158, %v3155
          %v3489 = vpack.c.b16 %v3162, %v3159
          %v3490 = vpack.c.b16 %v3163, %v3160
          %v3491 = vpack.c.b16 %v3164, %v3161
          %v3492 = vpack.c.b16 %v3168, %v3165
          %v3493 = vpack.c.b16 %v3169, %v3166
          %v3494 = vpack.c.b16 %v3170, %v3167
          %v3495 = vpack.c.b16 %v3174, %v3171
          %v3496 = vpack.c.b16 %v3175, %v3172
          %v3497 = vpack.c.b16 %v3176, %v3173
          %v3498 = vpack.c.b16 %v3180, %v3177
          %v3499 = vpack.c.b16 %v3181, %v3178
          %v3500 = vpack.c.b16 %v3182, %v3179
          %v3501 = vpack.c.b16 %v3186, %v3183
          %v3502 = vpack.c.b16 %v3187, %v3184
          %v3503 = vpack.c.b16 %v3188, %v3185
          %v3504 = vpack.c.b16 %v3192, %v3189
          %v3505 = vpack.c.b16 %v3193, %v3190
          %v3506 = vpack.c.b16 %v3194, %v3191
          %v3507 = vpack.c.b16 %v3198, %v3195
          %v3508 = vpack.c.b16 %v3199, %v3196
          %v3509 = vpack.c.b16 %v3200, %v3197
          %v3510 = vpack.c.b16 %v3204, %v3201
          %v3511 = vpack.c.b16 %v3205, %v3202
          %v3512 = vpack.c.b16 %v3206, %v3203
          %v3513 = vpack.c.b16 %v3210, %v3207
          %v3514 = vpack.c.b16 %v3211, %v3208
          %v3515 = vpack.c.b16 %v3212, %v3209
          %v3516 = vpack.c.b16 %v3216, %v3213
          %v3517 = vpack.c.b16 %v3217, %v3214
          %v3518 = vpack.c.b16 %v3218, %v3215
          %v3519 = vpack.c.b16 %v3222, %v3219
          %v3520 = vpack.c.b16 %v3223, %v3220
          %v3521 = vpack.c.b16 %v3224, %v3221
          %v3522 = vpack.c.b16 %v3228, %v3225
          %v3523 = vpack.c.b16 %v3229, %v3226
          %v3524 = vpack.c.b16 %v3230, %v3227
          %v3525 = vpack.c.b16 %v3234, %v3231
          %v3526 = vpack.c.b16 %v3235, %v3232
          %v3527 = vpack.c.b16 %v3236, %v3233
          %v3528 = vpack.c.b16 %v3240, %v3237
          %v3529 = vpack.c.b16 %v3241, %v3238
          %v3530 = vpack.c.b16 %v3242, %v3239
          %v3531 = vpack.c.b16 %v3246, %v3243
          %v3532 = vpack.c.b16 %v3247, %v3244
          %v3533 = vpack.c.b16 %v3248, %v3245
          %v3534 = vpack.c.b16 %v3252, %v3249
          %v3535 = vpack.c.b16 %v3253, %v3250
          %v3536 = vpack.c.b16 %v3254, %v3251
          %v3537 = vpack.c.b16 %v3258, %v3255
          %v3538 = vpack.c.b16 %v3259, %v3256
          %v3539 = vpack.c.b16 %v3260, %v3257
          %v3540 = vpack.c.b16 %v3264, %v3261
          %v3541 = vpack.c.b16 %v3265, %v3262
          %v3542 = vpack.c.b16 %v3266, %v3263
          %v3543 = vpack.c.b16 %v3270, %v3267
          %v3544 = vpack.c.b16 %v3271, %v3268
          %v3545 = vpack.c.b16 %v3272, %v3269
          %v3546 = vpack.c.b16 %v3276, %v3273
          %v3547 = vpack.c.b16 %v3277, %v3274
          %v3548 = vpack.c.b16 %v3278, %v3275
          %v3549 = vpack.c.b16 %v3282, %v3279
          %v3550 = vpack.c.b16 %v3283, %v3280
          %v3551 = vpack.c.b16 %v3284, %v3281
          %v3552 = vpack.c.b16 %v3288, %v3285
          %v3553 = vpack.c.b16 %v3289, %v3286
          %v3554 = vpack.c.b16 %v3290, %v3287
          %v3555 = vpack.c.b16 %v3294, %v3291
          %v3556 = vpack.c.b16 %v3295, %v3292
          %v3557 = vpack.c.b16 %v3296, %v3293
          %v3558 = vpack.c.b16 %v3300, %v3297
          %v3559 = vpack.c.b16 %v3301, %v3298
          %v3560 = vpack.c.b16 %v3302, %v3299
          %v3561 = vpack.c.b16 %v3306, %v3303
          %v3562 = vpack.c.b16 %v3307, %v3304
          %v3563 = vpack.c.b16 %v3308, %v3305
          %v3564 = vpack.c.b16 %v3312, %v3309
          %v3565 = vpack.c.b16 %v3313, %v3310
          %v3566 = vpack.c.b16 %v3314, %v3311
          %v3567 = vpack.c.b16 %v3318, %v3315
          %v3568 = vpack.c.b16 %v3319, %v3316
          %v3569 = vpack.c.b16 %v3320, %v3317
          %v3570 = vpack.c.b16 %v3324, %v3321
          %v3571 = vpack.c.b16 %v3325, %v3322
          %v3572 = vpack.c.b16 %v3326, %v3323
          %v3573 = vpack.c.b16 %v3330, %v3327
          %v3574 = vpack.c.b16 %v3331, %v3328
          %v3575 = vpack.c.b16 %v3332, %v3329
          %v3576 = vpack.c.b16 %v3336, %v3333
          %v3577 = vpack.c.b16 %v3337, %v3334
          %v3578 = vpack.c.b16 %v3338, %v3335
          %v3579 = vpack.c.b16 %v3342, %v3339
          %v3580 = vpack.c.b16 %v3343, %v3340
          %v3581 = vpack.c.b16 %v3344, %v3341
          %v3582 = vpack.c.b16 %v3348, %v3345
          %v3583 = vpack.c.b16 %v3349, %v3346
          %v3584 = vpack.c.b16 %v3350, %v3347
          %v3585 = vpack.c.b16 %v3354, %v3351
          %v3586 = vpack.c.b16 %v3355, %v3352
          %v3587 = vpack.c.b16 %v3356, %v3353
          %v3588 = vpack.c.b16 %v3360, %v3357
          %v3589 = vpack.c.b16 %v3361, %v3358
          %v3590 = vpack.c.b16 %v3362, %v3359
          %v3591 = vpack.c.b16 %v3366, %v3363
          %v3592 = vpack.c.b16 %v3367, %v3364
          %v3593 = vpack.c.b16 %v3368, %v3365
          %v3594 = vpack.c.b16 %v3372, %v3369
          %v3595 = vpack.c.b16 %v3373, %v3370
          %v3596 = vpack.c.b16 %v3374, %v3371
          %v3597 = vpack.c.b16 %v3378, %v3375
          %v3598 = vpack.c.b16 %v3379, %v3376
          %v3599 = vpack.c.b16 %v3380, %v3377
          %v3600 = vpack.c.b16 %v3384, %v3381
          %v3601 = vpack.c.b16 %v3385, %v3382
          %v3602 = vpack.c.b16 %v3386, %v3383
          %v3603 = vpack.c.b16 %v3390, %v3387
          %v3604 = vpack.c.b16 %v3391, %v3388
          %v3605 = vpack.c.b16 %v3392, %v3389
          %v3606 = vpack.c.b16 %v3396, %v3393
          %v3607 = vpack.c.b16 %v3397, %v3394
          %v3608 = vpack.c.b16 %v3398, %v3395
          %v3609 = vpack.c.b16 %v3402, %v3399
          %v3610 = vpack.c.b16 %v3403, %v3400
          %v3611 = vpack.c.b16 %v3404, %v3401
          %v3612 = vpack.c.b16 %v3408, %v3405
          %v3613 = vpack.c.b16 %v3409, %v3406
          %v3614 = vpack.c.b16 %v3410, %v3407
          %v3615 = vpack.c.b16 %v3414, %v3411
          %v3616 = vpack.c.b16 %v3415, %v3412
          %v3617 = vpack.c.b16 %v3416, %v3413
          %v3618 = vpack.c.b16 %v3420, %v3417
          %v3619 = vpack.c.b16 %v3421, %v3418
          %v3620 = vpack.c.b16 %v3422, %v3419
          %v3621 = vpack.c.b16 %v3426, %v3423
          %v3622 = vpack.c.b16 %v3427, %v3424
          %v3623 = vpack.c.b16 %v3428, %v3425
          %v3624 = vpack.c.b16 %v3432, %v3429
          %v3625 = vpack.c.b16 %v3433, %v3430
          %v3626 = vpack.c.b16 %v3434, %v3431
          %3819 = vmatprep.subr.bf16.mxu0 %v3436
          %3820 = vmatpush1.bf16.msra.mxu0 %v3435
          %3821 = vmatprep.subr.bf16.mxu0 %v3439
          %3822 = vmatpush1.bf16.msra.mxu0 %v3438
          %3823 = vmatprep.subr.bf16.mxu0 %v3442
          %3824 = vmatpush1.bf16.msra.mxu0 %v3441
          %3825 = vmatprep.subr.bf16.mxu0 %v3445
          %3826 = vmatpush1.bf16.msra.mxu0 %v3444
          %3827 = vmatprep.subr.bf16.mxu0 %v3448
          %3828 = vmatpush1.bf16.msra.mxu0 %v3447
          %3829 = vmatprep.subr.bf16.mxu0 %v3451
          %3830 = vmatpush1.bf16.msra.mxu0 %v3450
          %3831 = vmatprep.subr.bf16.mxu0 %v3454
          %3832 = vmatpush1.bf16.msra.mxu0 %v3453
          %3833 = vmatprep.subr.bf16.mxu0 %v3457
          %3834 = vmatpush1.bf16.msra.mxu0 %v3456
          %3835 = vmatprep.subr.bf16.mxu0 %v3460
          %3836 = vmatpush1.bf16.msra.mxu0 %v3459
          %3837 = vmatprep.subr.bf16.mxu0 %v3463
          %3838 = vmatpush1.bf16.msra.mxu0 %v3462
          %3839 = vmatprep.subr.bf16.mxu0 %v3466
          %3840 = vmatpush1.bf16.msra.mxu0 %v3465
          %3841 = vmatprep.subr.bf16.mxu0 %v3469
          %3842 = vmatpush1.bf16.msra.mxu0 %v3468
          %3843 = vmatprep.subr.bf16.mxu0 %v3472
          %3844 = vmatpush1.bf16.msra.mxu0 %v3471
          %3845 = vmatprep.subr.bf16.mxu0 %v3475
          %3846 = vmatpush1.bf16.msra.mxu0 %v3474
          %3847 = vmatprep.subr.bf16.mxu0 %v3478
          %3848 = vmatpush1.bf16.msra.mxu0 %v3477
          %3849 = vmatprep.subr.bf16.mxu0 %v3481
          %3850 = vmatpush1.bf16.msra.mxu0 %v3480
          %3851 = vmatprep.mubr.bf16.mxu0 %v2515
          %3852 = vmatmul.mubr.bf16.gmra.mrb[0].mxu0 %v2514
          %v3853 = vpop.f32.mrb[0].mxu0
          %v3854 = vadd.f32 %v2783, %v3853
          %v3855 = vpop.f32.mrb[0].mxu0
          %v3856 = vadd.f32 %v2787, %v3855
          %v3857 = vpop.f32.mrb[0].mxu0
          %v3858 = vpop.f32.mrb[0].mxu0
          %3859 = vdwg.mxu0
          %3860 = vmatprep.subr.bf16.mxu0 %v3484
          %3861 = vmatpush1.bf16.msra.mxu0 %v3483
          %3862 = vmatprep.subr.bf16.mxu0 %v3487
          %3863 = vmatpush1.bf16.msra.mxu0 %v3486
          %3864 = vmatprep.subr.bf16.mxu0 %v3490
          %3865 = vmatpush1.bf16.msra.mxu0 %v3489
          %3866 = vmatprep.subr.bf16.mxu0 %v3493
          %3867 = vmatpush1.bf16.msra.mxu0 %v3492
          %3868 = vmatprep.subr.bf16.mxu0 %v3496
          %3869 = vmatpush1.bf16.msra.mxu0 %v3495
          %3870 = vmatprep.subr.bf16.mxu0 %v3499
          %3871 = vmatpush1.bf16.msra.mxu0 %v3498
          %3872 = vmatprep.subr.bf16.mxu0 %v3502
          %3873 = vmatpush1.bf16.msra.mxu0 %v3501
          %3874 = vmatprep.subr.bf16.mxu0 %v3505
          %3875 = vmatpush1.bf16.msra.mxu0 %v3504
          %3876 = vmatprep.subr.bf16.mxu0 %v3508
          %3877 = vmatpush1.bf16.msra.mxu0 %v3507
          %3878 = vmatprep.subr.bf16.mxu0 %v3511
          %3879 = vmatpush1.bf16.msra.mxu0 %v3510
          %3880 = vmatprep.subr.bf16.mxu0 %v3514
          %3881 = vmatpush1.bf16.msra.mxu0 %v3513
          %3882 = vmatprep.subr.bf16.mxu0 %v3517
          %3883 = vmatpush1.bf16.msra.mxu0 %v3516
          %3884 = vmatprep.subr.bf16.mxu0 %v3520
          %3885 = vmatpush1.bf16.msra.mxu0 %v3519
          %3886 = vmatprep.subr.bf16.mxu0 %v3523
          %3887 = vmatpush1.bf16.msra.mxu0 %v3522
          %3888 = vmatprep.subr.bf16.mxu0 %v3526
          %3889 = vmatpush1.bf16.msra.mxu0 %v3525
          %3890 = vmatprep.subr.bf16.mxu0 %v3529
          %3891 = vmatpush1.bf16.msra.mxu0 %v3528
          %3892 = vmatprep.mubr.bf16.mxu0 %v2517
          %3893 = vmatmul.mubr.bf16.gmra.mrb[0].mxu0 %v2516
          %v3894 = vpop.f32.mrb[0].mxu0
          %v3895 = vadd.f32 %v3854, %v3894
          %v3896 = vpop.f32.mrb[0].mxu0
          %v3897 = vadd.f32 %v3856, %v3896
          %v3898 = vpop.f32.mrb[0].mxu0
          %v3899 = vpop.f32.mrb[0].mxu0
          %3900 = vdwg.mxu0
          %3901 = vmatprep.subr.bf16.mxu0 %v3532
          %3902 = vmatpush1.bf16.msra.mxu0 %v3531
          %3903 = vmatprep.subr.bf16.mxu0 %v3535
          %3904 = vmatpush1.bf16.msra.mxu0 %v3534
          %3905 = vmatprep.subr.bf16.mxu0 %v3538
          %3906 = vmatpush1.bf16.msra.mxu0 %v3537
          %3907 = vmatprep.subr.bf16.mxu0 %v3541
          %3908 = vmatpush1.bf16.msra.mxu0 %v3540
          %3909 = vmatprep.subr.bf16.mxu0 %v3544
          %3910 = vmatpush1.bf16.msra.mxu0 %v3543
          %3911 = vmatprep.subr.bf16.mxu0 %v3547
          %3912 = vmatpush1.bf16.msra.mxu0 %v3546
          %3913 = vmatprep.subr.bf16.mxu0 %v3550
          %3914 = vmatpush1.bf16.msra.mxu0 %v3549
          %3915 = vmatprep.subr.bf16.mxu0 %v3553
          %3916 = vmatpush1.bf16.msra.mxu0 %v3552
          %3917 = vmatprep.subr.bf16.mxu0 %v3556
          %3918 = vmatpush1.bf16.msra.mxu0 %v3555
          %3919 = vmatprep.subr.bf16.mxu0 %v3559
          %3920 = vmatpush1.bf16.msra.mxu0 %v3558
          %3921 = vmatprep.subr.bf16.mxu0 %v3562
          %3922 = vmatpush1.bf16.msra.mxu0 %v3561
          %3923 = vmatprep.subr.bf16.mxu0 %v3565
          %3924 = vmatpush1.bf16.msra.mxu0 %v3564
          %3925 = vmatprep.subr.bf16.mxu0 %v3568
          %3926 = vmatpush1.bf16.msra.mxu0 %v3567
          %3927 = vmatprep.subr.bf16.mxu0 %v3571
          %3928 = vmatpush1.bf16.msra.mxu0 %v3570
          %3929 = vmatprep.subr.bf16.mxu0 %v3574
          %3930 = vmatpush1.bf16.msra.mxu0 %v3573
          %3931 = vmatprep.subr.bf16.mxu0 %v3577
          %3932 = vmatpush1.bf16.msra.mxu0 %v3576
          %3933 = vmatprep.mubr.bf16.mxu0 %v2519
          %3934 = vmatmul.mubr.bf16.gmra.mrb[0].mxu0 %v2518
          %v3935 = vpop.f32.mrb[0].mxu0
          %v3936 = vadd.f32 %v3895, %v3935
          %v3937 = vpop.f32.mrb[0].mxu0
          %v3938 = vadd.f32 %v3897, %v3937
          %v3939 = vpop.f32.mrb[0].mxu0
          %v3940 = vpop.f32.mrb[0].mxu0
          %3941 = vdwg.mxu0
          %3942 = vmatprep.subr.bf16.mxu0 %v3580
          %3943 = vmatpush1.bf16.msra.mxu0 %v3579
          %3944 = vmatprep.subr.bf16.mxu0 %v3583
          %3945 = vmatpush1.bf16.msra.mxu0 %v3582
          %3946 = vmatprep.subr.bf16.mxu0 %v3586
          %3947 = vmatpush1.bf16.msra.mxu0 %v3585
          %3948 = vmatprep.subr.bf16.mxu0 %v3589
          %3949 = vmatpush1.bf16.msra.mxu0 %v3588
          %3950 = vmatprep.subr.bf16.mxu0 %v3592
          %3951 = vmatpush1.bf16.msra.mxu0 %v3591
          %3952 = vmatprep.subr.bf16.mxu0 %v3595
          %3953 = vmatpush1.bf16.msra.mxu0 %v3594
          %3954 = vmatprep.subr.bf16.mxu0 %v3598
          %3955 = vmatpush1.bf16.msra.mxu0 %v3597
          %3956 = vmatprep.subr.bf16.mxu0 %v3601
          %3957 = vmatpush1.bf16.msra.mxu0 %v3600
          %3958 = vmatprep.subr.bf16.mxu0 %v3604
          %3959 = vmatpush1.bf16.msra.mxu0 %v3603
          %3960 = vmatprep.subr.bf16.mxu0 %v3607
          %3961 = vmatpush1.bf16.msra.mxu0 %v3606
          %3962 = vmatprep.subr.bf16.mxu0 %v3610
          %3963 = vmatpush1.bf16.msra.mxu0 %v3609
          %3964 = vmatprep.subr.bf16.mxu0 %v3613
          %3965 = vmatpush1.bf16.msra.mxu0 %v3612
          %3966 = vmatprep.subr.bf16.mxu0 %v3616
          %3967 = vmatpush1.bf16.msra.mxu0 %v3615
          %3968 = vmatprep.subr.bf16.mxu0 %v3619
          %3969 = vmatpush1.bf16.msra.mxu0 %v3618
          %3970 = vmatprep.subr.bf16.mxu0 %v3622
          %3971 = vmatpush1.bf16.msra.mxu0 %v3621
          %3972 = vmatprep.subr.bf16.mxu0 %v3625
          %3973 = vmatpush1.bf16.msra.mxu0 %v3624
          %3974 = vmatprep.mubr.bf16.mxu0 %v2521
          %3975 = vmatmul.mubr.bf16.gmra.mrb[0].mxu0 %v2520
          %v3976 = vpop.f32.mrb[0].mxu0
          %v3977 = vadd.f32 %v3936, %v3976
          %v3978 = vpop.f32.mrb[0].mxu0
          %v3979 = vadd.f32 %v3938, %v3978
          %v3980 = vpop.f32.mrb[0].mxu0
          %v3981 = vpop.f32.mrb[0].mxu0
          %3982 = vdwg.mxu0
          %3983 = vmatprep.subr.bf16.mxu0 0
          %3984 = vmatpush1.bf16.msra.mxu0 %v3437
          %3985 = vmatprep.subr.bf16.mxu0 0
          %3986 = vmatpush1.bf16.msra.mxu0 %v3440
          %3987 = vmatprep.subr.bf16.mxu0 0
          %3988 = vmatpush1.bf16.msra.mxu0 %v3443
          %3989 = vmatprep.subr.bf16.mxu0 0
          %3990 = vmatpush1.bf16.msra.mxu0 %v3446
          %3991 = vmatprep.subr.bf16.mxu0 0
          %3992 = vmatpush1.bf16.msra.mxu0 %v3449
          %3993 = vmatprep.subr.bf16.mxu0 0
          %3994 = vmatpush1.bf16.msra.mxu0 %v3452
          %3995 = vmatprep.subr.bf16.mxu0 0
          %3996 = vmatpush1.bf16.msra.mxu0 %v3455
          %3997 = vmatprep.subr.bf16.mxu0 0
          %3998 = vmatpush1.bf16.msra.mxu0 %v3458
          %3999 = vmatprep.subr.bf16.mxu0 0
          %4000 = vmatpush1.bf16.msra.mxu0 %v3461
          %4001 = vmatprep.subr.bf16.mxu0 0
          %4002 = vmatpush1.bf16.msra.mxu0 %v3464
          %4003 = vmatprep.subr.bf16.mxu0 0
          %4004 = vmatpush1.bf16.msra.mxu0 %v3467
          %4005 = vmatprep.subr.bf16.mxu0 0
          %4006 = vmatpush1.bf16.msra.mxu0 %v3470
          %4007 = vmatprep.subr.bf16.mxu0 0
          %4008 = vmatpush1.bf16.msra.mxu0 %v3473
          %4009 = vmatprep.subr.bf16.mxu0 0
          %4010 = vmatpush1.bf16.msra.mxu0 %v3476
          %4011 = vmatprep.subr.bf16.mxu0 0
          %4012 = vmatpush1.bf16.msra.mxu0 %v3479
          %4013 = vmatprep.subr.bf16.mxu0 0
          %4014 = vmatpush1.bf16.msra.mxu0 %v3482
          %4015 = vmatprep.mubr.bf16.mxu0 %v2515
          %4016 = vmatmul.mubr.bf16.gmra.mrb[0].mxu0 %v2514
          %v4017 = vpop.f32.mrb[0].mxu0
          %v4018 = vadd.f32 %v2791, %v4017
          %v4019 = vpop.f32.mrb[0].mxu0
          %v4020 = vpop.f32.mrb[0].mxu0
          %v4021 = vpop.f32.mrb[0].mxu0
          %4022 = vdwg.mxu0
          %4023 = vmatprep.subr.bf16.mxu0 0
          %4024 = vmatpush1.bf16.msra.mxu0 %v3485
          %4025 = vmatprep.subr.bf16.mxu0 0
          %4026 = vmatpush1.bf16.msra.mxu0 %v3488
          %4027 = vmatprep.subr.bf16.mxu0 0
          %4028 = vmatpush1.bf16.msra.mxu0 %v3491
          %4029 = vmatprep.subr.bf16.mxu0 0
          %4030 = vmatpush1.bf16.msra.mxu0 %v3494
          %4031 = vmatprep.subr.bf16.mxu0 0
          %4032 = vmatpush1.bf16.msra.mxu0 %v3497
          %4033 = vmatprep.subr.bf16.mxu0 0
          %4034 = vmatpush1.bf16.msra.mxu0 %v3500
          %4035 = vmatprep.subr.bf16.mxu0 0
          %4036 = vmatpush1.bf16.msra.mxu0 %v3503
          %4037 = vmatprep.subr.bf16.mxu0 0
          %4038 = vmatpush1.bf16.msra.mxu0 %v3506
          %4039 = vmatprep.subr.bf16.mxu0 0
          %4040 = vmatpush1.bf16.msra.mxu0 %v3509
          %4041 = vmatprep.subr.bf16.mxu0 0
          %4042 = vmatpush1.bf16.msra.mxu0 %v3512
          %4043 = vmatprep.subr.bf16.mxu0 0
          %4044 = vmatpush1.bf16.msra.mxu0 %v3515
          %4045 = vmatprep.subr.bf16.mxu0 0
          %4046 = vmatpush1.bf16.msra.mxu0 %v3518
          %4047 = vmatprep.subr.bf16.mxu0 0
          %4048 = vmatpush1.bf16.msra.mxu0 %v3521
          %4049 = vmatprep.subr.bf16.mxu0 0
          %4050 = vmatpush1.bf16.msra.mxu0 %v3524
          %4051 = vmatprep.subr.bf16.mxu0 0
          %4052 = vmatpush1.bf16.msra.mxu0 %v3527
          %4053 = vmatprep.subr.bf16.mxu0 0
          %4054 = vmatpush1.bf16.msra.mxu0 %v3530
          %4055 = vmatprep.mubr.bf16.mxu0 %v2517
          %4056 = vmatmul.mubr.bf16.gmra.mrb[0].mxu0 %v2516
          %v4057 = vpop.f32.mrb[0].mxu0
          %v4058 = vadd.f32 %v4018, %v4057
          %v4059 = vpop.f32.mrb[0].mxu0
          %v4060 = vpop.f32.mrb[0].mxu0
          %v4061 = vpop.f32.mrb[0].mxu0
          %4062 = vdwg.mxu0
          %4063 = vmatprep.subr.bf16.mxu0 0
          %4064 = vmatpush1.bf16.msra.mxu0 %v3533
          %4065 = vmatprep.subr.bf16.mxu0 0
          %4066 = vmatpush1.bf16.msra.mxu0 %v3536
          %4067 = vmatprep.subr.bf16.mxu0 0
          %4068 = vmatpush1.bf16.msra.mxu0 %v3539
          %4069 = vmatprep.subr.bf16.mxu0 0
          %4070 = vmatpush1.bf16.msra.mxu0 %v3542
          %4071 = vmatprep.subr.bf16.mxu0 0
          %4072 = vmatpush1.bf16.msra.mxu0 %v3545
          %4073 = vmatprep.subr.bf16.mxu0 0
          %4074 = vmatpush1.bf16.msra.mxu0 %v3548
          %4075 = vmatprep.subr.bf16.mxu0 0
          %4076 = vmatpush1.bf16.msra.mxu0 %v3551
          %4077 = vmatprep.subr.bf16.mxu0 0
          %4078 = vmatpush1.bf16.msra.mxu0 %v3554
          %4079 = vmatprep.subr.bf16.mxu0 0
          %4080 = vmatpush1.bf16.msra.mxu0 %v3557
          %4081 = vmatprep.subr.bf16.mxu0 0
          %4082 = vmatpush1.bf16.msra.mxu0 %v3560
          %4083 = vmatprep.subr.bf16.mxu0 0
          %4084 = vmatpush1.bf16.msra.mxu0 %v3563
          %4085 = vmatprep.subr.bf16.mxu0 0
          %4086 = vmatpush1.bf16.msra.mxu0 %v3566
          %4087 = vmatprep.subr.bf16.mxu0 0
          %4088 = vmatpush1.bf16.msra.mxu0 %v3569
          %4089 = vmatprep.subr.bf16.mxu0 0
          %4090 = vmatpush1.bf16.msra.mxu0 %v3572
          %4091 = vmatprep.subr.bf16.mxu0 0
          %4092 = vmatpush1.bf16.msra.mxu0 %v3575
          %4093 = vmatprep.subr.bf16.mxu0 0
          %4094 = vmatpush1.bf16.msra.mxu0 %v3578
          %4095 = vmatprep.mubr.bf16.mxu0 %v2519
          %4096 = vmatmul.mubr.bf16.gmra.mrb[0].mxu0 %v2518
          %v4097 = vpop.f32.mrb[0].mxu0
          %v4098 = vadd.f32 %v4058, %v4097
          %v4099 = vpop.f32.mrb[0].mxu0
          %v4100 = vpop.f32.mrb[0].mxu0
          %v4101 = vpop.f32.mrb[0].mxu0
          %4102 = vdwg.mxu0
          %4103 = vmatprep.subr.bf16.mxu0 0
          %4104 = vmatpush1.bf16.msra.mxu0 %v3581
          %4105 = vmatprep.subr.bf16.mxu0 0
          %4106 = vmatpush1.bf16.msra.mxu0 %v3584
          %4107 = vmatprep.subr.bf16.mxu0 0
          %4108 = vmatpush1.bf16.msra.mxu0 %v3587
          %4109 = vmatprep.subr.bf16.mxu0 0
          %4110 = vmatpush1.bf16.msra.mxu0 %v3590
          %4111 = vmatprep.subr.bf16.mxu0 0
          %4112 = vmatpush1.bf16.msra.mxu0 %v3593
          %4113 = vmatprep.subr.bf16.mxu0 0
          %4114 = vmatpush1.bf16.msra.mxu0 %v3596
          %4115 = vmatprep.subr.bf16.mxu0 0
          %4116 = vmatpush1.bf16.msra.mxu0 %v3599
          %4117 = vmatprep.subr.bf16.mxu0 0
          %4118 = vmatpush1.bf16.msra.mxu0 %v3602
          %4119 = vmatprep.subr.bf16.mxu0 0
          %4120 = vmatpush1.bf16.msra.mxu0 %v3605
          %4121 = vmatprep.subr.bf16.mxu0 0
          %4122 = vmatpush1.bf16.msra.mxu0 %v3608
          %4123 = vmatprep.subr.bf16.mxu0 0
          %4124 = vmatpush1.bf16.msra.mxu0 %v3611
          %4125 = vmatprep.subr.bf16.mxu0 0
          %4126 = vmatpush1.bf16.msra.mxu0 %v3614
          %4127 = vmatprep.subr.bf16.mxu0 0
          %4128 = vmatpush1.bf16.msra.mxu0 %v3617
          %4129 = vmatprep.subr.bf16.mxu0 0
          %4130 = vmatpush1.bf16.msra.mxu0 %v3620
          %4131 = vmatprep.subr.bf16.mxu0 0
          %4132 = vmatpush1.bf16.msra.mxu0 %v3623
          %4133 = vmatprep.subr.bf16.mxu0 0
          %4134 = vmatpush1.bf16.msra.mxu0 %v3626
          %4135 = vmatprep.mubr.bf16.mxu0 %v2521
          %4136 = vmatmul.mubr.bf16.gmra.mrb[0].mxu0 %v2520
          %v4137 = vpop.f32.mrb[0].mxu0
          %v4138 = vadd.f32 %v4098, %v4137
          %v4139 = vpop.f32.mrb[0].mxu0
          %v4140 = vpop.f32.mrb[0].mxu0
          %v4141 = vpop.f32.mrb[0].mxu0
          %4142 = vdwg.mxu0
          %v4143 = vlaneseq
          %v4144 = vand.u32 %v4143, 127
          %v4145 = vadd.s32 %v4144, 128
          %v4146 = vadd.s32 %v4144, 256
          %vm4147 = vcmp.lt.s32.totalorder %v4144, 300
          %vm4148 = vcmp.lt.s32.totalorder %v4145, 300
          %vm4149 = vcmp.lt.s32.totalorder %v4146, 300
          %v4150 = vadd.f32 %v3977, %v3979
          %v4151 = vadd.f32 %v4150, %v4138
          %4152 = vadd.xlane.f32.xlu0 %v4151
          %v4153 = vpop.xlane.xlu0 %4152
          %v4154 = vmul.f32 %v4153, 0.0033333334
          %v4155 = vsub.f32 %v3977, %v4154
          %v4156 = vsub.f32 %v3979, %v4154
          %v4157 = vsub.f32 %v4138, %v4154
          %v4158 = vsel %vm4147, %v4155, 0.0
          %v4159 = vsel %vm4148, %v4156, 0.0
          %v4160 = vsel %vm4149, %v4157, 0.0
          %v4161 = vmul.f32 %v4158, %v4158
          %v4162 = vmul.f32 %v4159, %v4159
          %v4163 = vmul.f32 %v4160, %v4160
          %v4164 = vadd.f32 %v4161, %v4162
          %v4165 = vadd.f32 %v4164, %v4163
          %4166 = vadd.xlane.f32.xlu0 %v4165
          %v4167 = vpop.xlane.xlu0 %4166
          %v4168 = vmul.f32 %v4167, 0.0033333334
          %v4169 = vadd.f32 %v4168, 1e-05
          %v4170 = vrsqrt.pop %v4169
          %v4171 = vmul.f32 %v4158, %v4170
          %v4172 = vmul.f32 %v4159, %v4170
          %v4173 = vmul.f32 %v4160, %v4170
          %v4174 = vld [vmem:[#allocation10] sm:$0x7]
          %v4176 = vlaneseq
          %v4177 = vshrl.u32 %v4176, 7
          %v4178 = vsub.s32 0, %v4177
          %v4179 = vrot.slane %v4174, %v4178
          %v4180 = vlaneseq
          %v4181 = vshrl.u32 %v4180, 7
          %v4182 = vsub.s32 1, %v4181
          %v4183 = vrot.slane %v4174, %v4182
          %v4184 = vlaneseq
          %v4185 = vshrl.u32 %v4184, 7
          %v4186 = vsub.s32 2, %v4185
          %v4187 = vrot.slane %v4174, %v4186
          %v4191 = vmul.f32 %v4171, %v4179
          %v4192 = vmul.f32 %v4172, %v4183
          %v4193 = vmul.f32 %v4173, %v4187
          %v4194 = vld [vmem:[#allocation11] sm:$0x7]
          %v4196 = vlaneseq
          %v4197 = vshrl.u32 %v4196, 7
          %v4198 = vsub.s32 0, %v4197
          %v4199 = vrot.slane %v4194, %v4198
          %v4200 = vlaneseq
          %v4201 = vshrl.u32 %v4200, 7
          %v4202 = vsub.s32 1, %v4201
          %v4203 = vrot.slane %v4194, %v4202
          %v4204 = vlaneseq
          %v4205 = vshrl.u32 %v4204, 7
          %v4206 = vsub.s32 2, %v4205
          %v4207 = vrot.slane %v4194, %v4206
          %v4211 = vadd.f32 %v4191, %v4199
          %v4212 = vadd.f32 %v4192, %v4203
          %v4213 = vadd.f32 %v4193, %v4207
          %v4214 = vmax.f32 %v4211, 0.0
          %v4215 = vmax.f32 %v4212, 0.0
          %v4216 = vmax.f32 %v4213, 0.0
          %v4217 = vpack.c.bf16 %v4214, %v4214
          %v4218 = vpack.c.bf16 %v4215, %v4215
          %v4219 = vpack.c.bf16 %v4216, %v4216
          %v4220 = vld [vmem:[#allocation13] sm:$0xff]
          %v4221 = vld [vmem:[#allocation13 + $0x8] sm:$0xf]
          %v4222 = vld [vmem:[#allocation13 + $0xc] sm:$0xff]
          %v4223 = vld [vmem:[#allocation13 + $0x14] sm:$0xf]
          %v4224 = vld [vmem:[#allocation13 + $0x18] sm:$0xff]
          %v4225 = vld [vmem:[#allocation13 + $0x20] sm:$0xf]
          %v4226 = vld [vmem:[#allocation13 + $0x24] sm:$0xff]
          %v4227 = vld [vmem:[#allocation13 + $0x2c] sm:$0xf]
          %v4228 = vld [vmem:[#allocation13 + $0x30] sm:$0xff]
          %v4229 = vld [vmem:[#allocation13 + $0x38] sm:$0xf]
          %v4230 = vld [vmem:[#allocation13 + $0x3c] sm:$0xff]
          %v4231 = vld [vmem:[#allocation13 + $0x44] sm:$0xf]
          %v4232 = vld [vmem:[#allocation13 + $0x48] sm:$0xff]
          %v4233 = vld [vmem:[#allocation13 + $0x50] sm:$0xf]
          %v4234 = vld [vmem:[#allocation13 + $0x54] sm:$0xff]
          %v4235 = vld [vmem:[#allocation13 + $0x5c] sm:$0xf]
          %v4236 = vld [vmem:[#allocation13 + $0x60] sm:$0xff]
          %v4237 = vld [vmem:[#allocation13 + $0x68] sm:$0xf]
          %v4238 = vld [vmem:[#allocation13 + $0x6c] sm:$0xff]
          %v4239 = vld [vmem:[#allocation13 + $0x74] sm:$0xf]
          %v4240 = vld [vmem:[#allocation13 + $0x78] sm:$0xff]
          %v4241 = vld [vmem:[#allocation13 + $0x80] sm:$0xf]
          %v4242 = vld [vmem:[#allocation13 + $0x84] sm:$0xff]
          %v4243 = vld [vmem:[#allocation13 + $0x8c] sm:$0xf]
          %v4244 = vld [vmem:[#allocation13 + $0x90] sm:$0xff]
          %v4245 = vld [vmem:[#allocation13 + $0x98] sm:$0xf]
          %v4246 = vld [vmem:[#allocation13 + $0x9c] sm:$0xff]
          %v4247 = vld [vmem:[#allocation13 + $0xa4] sm:$0xf]
          %v4248 = vld [vmem:[#allocation13 + $0xa8] sm:$0xff]
          %v4249 = vld [vmem:[#allocation13 + $0xb0] sm:$0xf]
          %v4250 = vld [vmem:[#allocation13 + $0xb4] sm:$0xff]
          %v4251 = vld [vmem:[#allocation13 + $0xbc] sm:$0xf]
          %v4252 = vld [vmem:[#allocation13 + $0xc0] sm:$0xff]
          %v4253 = vld [vmem:[#allocation13 + $0xc8] sm:$0xf]
          %v4254 = vld [vmem:[#allocation13 + $0xcc] sm:$0xff]
          %v4255 = vld [vmem:[#allocation13 + $0xd4] sm:$0xf]
          %v4256 = vld [vmem:[#allocation13 + $0xd8] sm:$0xff]
          %v4257 = vld [vmem:[#allocation13 + $0xe0] sm:$0xf]
          %v4258 = vld [vmem:[#allocation13 + $0xe4] sm:$0xff]
          %v4259 = vld [vmem:[#allocation13 + $0xec] sm:$0xf]
          %v4260 = vld [vmem:[#allocation13 + $0xf0] sm:$0xff]
          %v4261 = vld [vmem:[#allocation13 + $0xf8] sm:$0xf]
          %v4262 = vld [vmem:[#allocation13 + $0xfc] sm:$0xff]
          %v4263 = vld [vmem:[#allocation13 + $0x104] sm:$0xf]
          %v4264 = vld [vmem:[#allocation13 + $0x108] sm:$0xff]
          %v4265 = vld [vmem:[#allocation13 + $0x110] sm:$0xf]
          %v4266 = vld [vmem:[#allocation13 + $0x114] sm:$0xff]
          %v4267 = vld [vmem:[#allocation13 + $0x11c] sm:$0xf]
          %v4268 = vld [vmem:[#allocation13 + $0x120] sm:$0xff]
          %v4269 = vld [vmem:[#allocation13 + $0x128] sm:$0xf]
          %v4270 = vld [vmem:[#allocation13 + $0x12c] sm:$0xff]
          %v4271 = vld [vmem:[#allocation13 + $0x134] sm:$0xf]
          %v4272 = vld [vmem:[#allocation13 + $0x138] sm:$0xff]
          %v4273 = vld [vmem:[#allocation13 + $0x140] sm:$0xf]
          %v4274 = vld [vmem:[#allocation13 + $0x144] sm:$0xff]
          %v4275 = vld [vmem:[#allocation13 + $0x14c] sm:$0xf]
          %v4276 = vld [vmem:[#allocation13 + $0x150] sm:$0xff]
          %v4277 = vld [vmem:[#allocation13 + $0x158] sm:$0xf]
          %v4278 = vld [vmem:[#allocation13 + $0x15c] sm:$0xff]
          %v4279 = vld [vmem:[#allocation13 + $0x164] sm:$0xf]
          %v4280 = vld [vmem:[#allocation13 + $0x168] sm:$0xff]
          %v4281 = vld [vmem:[#allocation13 + $0x170] sm:$0xf]
          %v4282 = vld [vmem:[#allocation13 + $0x174] sm:$0xff]
          %v4283 = vld [vmem:[#allocation13 + $0x17c] sm:$0xf]
          %v4284 = vld [vmem:[#allocation13 + $0x180] sm:$0xff]
          %v4285 = vld [vmem:[#allocation13 + $0x188] sm:$0xf]
          %v4286 = vld [vmem:[#allocation13 + $0x18c] sm:$0xff]
          %v4287 = vld [vmem:[#allocation13 + $0x194] sm:$0xf]
          %v4288 = vld [vmem:[#allocation13 + $0x198] sm:$0xff]
          %v4289 = vld [vmem:[#allocation13 + $0x1a0] sm:$0xf]
          %v4290 = vld [vmem:[#allocation13 + $0x1a4] sm:$0xff]
          %v4291 = vld [vmem:[#allocation13 + $0x1ac] sm:$0xf]
          %v4292 = vld [vmem:[#allocation13 + $0x1b0] sm:$0xff]
          %v4293 = vld [vmem:[#allocation13 + $0x1b8] sm:$0xf]
          %v4294 = vld [vmem:[#allocation13 + $0x1bc] sm:$0xff]
          %v4295 = vld [vmem:[#allocation13 + $0x1c4] sm:$0xf]
          %v4296 = vld [vmem:[#allocation13 + $0x1c8] sm:$0xff]
          %v4297 = vld [vmem:[#allocation13 + $0x1d0] sm:$0xf]
          %v4298 = vld [vmem:[#allocation13 + $0x1d4] sm:$0xff]
          %v4299 = vld [vmem:[#allocation13 + $0x1dc] sm:$0xf]
          %v4300 = vld [vmem:[#allocation13 + $0x1e0] sm:$0xff]
          %v4301 = vld [vmem:[#allocation13 + $0x1e8] sm:$0xf]
          %v4302 = vld [vmem:[#allocation13 + $0x1ec] sm:$0xff]
          %v4303 = vld [vmem:[#allocation13 + $0x1f4] sm:$0xf]
          %v4304 = vld [vmem:[#allocation13 + $0x1f8] sm:$0xff]
          %v4305 = vld [vmem:[#allocation13 + $0x200] sm:$0xf]
          %v4306 = vld [vmem:[#allocation13 + $0x204] sm:$0xff]
          %v4307 = vld [vmem:[#allocation13 + $0x20c] sm:$0xf]
          %v4308 = vld [vmem:[#allocation13 + $0x210] sm:$0xff]
          %v4309 = vld [vmem:[#allocation13 + $0x218] sm:$0xf]
          %v4310 = vld [vmem:[#allocation13 + $0x21c] sm:$0xff]
          %v4311 = vld [vmem:[#allocation13 + $0x224] sm:$0xf]
          %v4312 = vld [vmem:[#allocation13 + $0x228] sm:$0xff]
          %v4313 = vld [vmem:[#allocation13 + $0x230] sm:$0xf]
          %v4314 = vld [vmem:[#allocation13 + $0x234] sm:$0xff]
          %v4315 = vld [vmem:[#allocation13 + $0x23c] sm:$0xf]
          %v4316 = vld [vmem:[#allocation14] sm:$0x7]
          %v4318 = vlaneseq
          %v4319 = vshrl.u32 %v4318, 7
          %v4320 = vsub.s32 0, %v4319
          %v4321 = vrot.slane %v4316, %v4320
          %v4322 = vlaneseq
          %v4323 = vshrl.u32 %v4322, 7
          %v4324 = vsub.s32 1, %v4323
          %v4325 = vrot.slane %v4316, %v4324
          %v4326 = vlaneseq
          %v4327 = vshrl.u32 %v4326, 7
          %v4328 = vsub.s32 2, %v4327
          %v4329 = vrot.slane %v4316, %v4328
          %v4429 = vunpack.c.l.b16 %v4220
          %v4430 = vunpack.c.h.b16 %v4220
          %v4431 = vunpack.c.l.b16 %v4221
          %v4432 = vunpack.c.l.b16 %v4222
          %v4433 = vunpack.c.h.b16 %v4222
          %v4434 = vunpack.c.l.b16 %v4223
          %v4435 = vunpack.c.l.b16 %v4224
          %v4436 = vunpack.c.h.b16 %v4224
          %v4437 = vunpack.c.l.b16 %v4225
          %v4438 = vunpack.c.l.b16 %v4226
          %v4439 = vunpack.c.h.b16 %v4226
          %v4440 = vunpack.c.l.b16 %v4227
          %v4441 = vunpack.c.l.b16 %v4228
          %v4442 = vunpack.c.h.b16 %v4228
          %v4443 = vunpack.c.l.b16 %v4229
          %v4444 = vunpack.c.l.b16 %v4230
          %v4445 = vunpack.c.h.b16 %v4230
          %v4446 = vunpack.c.l.b16 %v4231
          %v4447 = vunpack.c.l.b16 %v4232
          %v4448 = vunpack.c.h.b16 %v4232
          %v4449 = vunpack.c.l.b16 %v4233
          %v4450 = vunpack.c.l.b16 %v4234
          %v4451 = vunpack.c.h.b16 %v4234
          %v4452 = vunpack.c.l.b16 %v4235
          %v4453 = vunpack.c.l.b16 %v4236
          %v4454 = vunpack.c.h.b16 %v4236
          %v4455 = vunpack.c.l.b16 %v4237
          %v4456 = vunpack.c.l.b16 %v4238
          %v4457 = vunpack.c.h.b16 %v4238
          %v4458 = vunpack.c.l.b16 %v4239
          %v4459 = vunpack.c.l.b16 %v4240
          %v4460 = vunpack.c.h.b16 %v4240
          %v4461 = vunpack.c.l.b16 %v4241
          %v4462 = vunpack.c.l.b16 %v4242
          %v4463 = vunpack.c.h.b16 %v4242
          %v4464 = vunpack.c.l.b16 %v4243
          %v4465 = vunpack.c.l.b16 %v4244
          %v4466 = vunpack.c.h.b16 %v4244
          %v4467 = vunpack.c.l.b16 %v4245
          %v4468 = vunpack.c.l.b16 %v4246
          %v4469 = vunpack.c.h.b16 %v4246
          %v4470 = vunpack.c.l.b16 %v4247
          %v4471 = vunpack.c.l.b16 %v4248
          %v4472 = vunpack.c.h.b16 %v4248
          %v4473 = vunpack.c.l.b16 %v4249
          %v4474 = vunpack.c.l.b16 %v4250
          %v4475 = vunpack.c.h.b16 %v4250
          %v4476 = vunpack.c.l.b16 %v4251
          %v4477 = vunpack.c.l.b16 %v4252
          %v4478 = vunpack.c.h.b16 %v4252
          %v4479 = vunpack.c.l.b16 %v4253
          %v4480 = vunpack.c.l.b16 %v4254
          %v4481 = vunpack.c.h.b16 %v4254
          %v4482 = vunpack.c.l.b16 %v4255
          %v4483 = vunpack.c.l.b16 %v4256
          %v4484 = vunpack.c.h.b16 %v4256
          %v4485 = vunpack.c.l.b16 %v4257
          %v4486 = vunpack.c.l.b16 %v4258
          %v4487 = vunpack.c.h.b16 %v4258
          %v4488 = vunpack.c.l.b16 %v4259
          %v4489 = vunpack.c.l.b16 %v4260
          %v4490 = vunpack.c.h.b16 %v4260
          %v4491 = vunpack.c.l.b16 %v4261
          %v4492 = vunpack.c.l.b16 %v4262
          %v4493 = vunpack.c.h.b16 %v4262
          %v4494 = vunpack.c.l.b16 %v4263
          %v4495 = vunpack.c.l.b16 %v4264
          %v4496 = vunpack.c.h.b16 %v4264
          %v4497 = vunpack.c.l.b16 %v4265
          %v4498 = vunpack.c.l.b16 %v4266
          %v4499 = vunpack.c.h.b16 %v4266
          %v4500 = vunpack.c.l.b16 %v4267
          %v4501 = vunpack.c.l.b16 %v4268
          %v4502 = vunpack.c.h.b16 %v4268
          %v4503 = vunpack.c.l.b16 %v4269
          %v4504 = vunpack.c.l.b16 %v4270
          %v4505 = vunpack.c.h.b16 %v4270
          %v4506 = vunpack.c.l.b16 %v4271
          %v4507 = vunpack.c.l.b16 %v4272
          %v4508 = vunpack.c.h.b16 %v4272
          %v4509 = vunpack.c.l.b16 %v4273
          %v4510 = vunpack.c.l.b16 %v4274
          %v4511 = vunpack.c.h.b16 %v4274
          %v4512 = vunpack.c.l.b16 %v4275
          %v4513 = vunpack.c.l.b16 %v4276
          %v4514 = vunpack.c.h.b16 %v4276
          %v4515 = vunpack.c.l.b16 %v4277
          %v4516 = vunpack.c.l.b16 %v4278
          %v4517 = vunpack.c.h.b16 %v4278
          %v4518 = vunpack.c.l.b16 %v4279
          %v4519 = vunpack.c.l.b16 %v4280
          %v4520 = vunpack.c.h.b16 %v4280
          %v4521 = vunpack.c.l.b16 %v4281
          %v4522 = vunpack.c.l.b16 %v4282
          %v4523 = vunpack.c.h.b16 %v4282
          %v4524 = vunpack.c.l.b16 %v4283
          %v4525 = vunpack.c.l.b16 %v4284
          %v4526 = vunpack.c.h.b16 %v4284
          %v4527 = vunpack.c.l.b16 %v4285
          %v4528 = vunpack.c.l.b16 %v4286
          %v4529 = vunpack.c.h.b16 %v4286
          %v4530 = vunpack.c.l.b16 %v4287
          %v4531 = vunpack.c.l.b16 %v4288
          %v4532 = vunpack.c.h.b16 %v4288
          %v4533 = vunpack.c.l.b16 %v4289
          %v4534 = vunpack.c.l.b16 %v4290
          %v4535 = vunpack.c.h.b16 %v4290
          %v4536 = vunpack.c.l.b16 %v4291
          %v4537 = vunpack.c.l.b16 %v4292
          %v4538 = vunpack.c.h.b16 %v4292
          %v4539 = vunpack.c.l.b16 %v4293
          %v4540 = vunpack.c.l.b16 %v4294
          %v4541 = vunpack.c.h.b16 %v4294
          %v4542 = vunpack.c.l.b16 %v4295
          %v4543 = vunpack.c.l.b16 %v4296
          %v4544 = vunpack.c.h.b16 %v4296
          %v4545 = vunpack.c.l.b16 %v4297
          %v4546 = vunpack.c.l.b16 %v4298
          %v4547 = vunpack.c.h.b16 %v4298
          %v4548 = vunpack.c.l.b16 %v4299
          %v4549 = vunpack.c.l.b16 %v4300
          %v4550 = vunpack.c.h.b16 %v4300
          %v4551 = vunpack.c.l.b16 %v4301
          %v4552 = vunpack.c.l.b16 %v4302
          %v4553 = vunpack.c.h.b16 %v4302
          %v4554 = vunpack.c.l.b16 %v4303
          %v4555 = vunpack.c.l.b16 %v4304
          %v4556 = vunpack.c.h.b16 %v4304
          %v4557 = vunpack.c.l.b16 %v4305
          %v4558 = vunpack.c.l.b16 %v4306
          %v4559 = vunpack.c.h.b16 %v4306
          %v4560 = vunpack.c.l.b16 %v4307
          %v4561 = vunpack.c.l.b16 %v4308
          %v4562 = vunpack.c.h.b16 %v4308
          %v4563 = vunpack.c.l.b16 %v4309
          %v4564 = vunpack.c.l.b16 %v4310
          %v4565 = vunpack.c.h.b16 %v4310
          %v4566 = vunpack.c.l.b16 %v4311
          %v4567 = vunpack.c.l.b16 %v4312
          %v4568 = vunpack.c.h.b16 %v4312
          %v4569 = vunpack.c.l.b16 %v4313
          %v4570 = vunpack.c.l.b16 %v4314
          %v4571 = vunpack.c.h.b16 %v4314
          %v4572 = vunpack.c.l.b16 %v4315
          %v4573 = vpack.c.b16 %v4432, %v4429
          %v4574 = vpack.c.b16 %v4433, %v4430
          %v4575 = vpack.c.b16 %v4434, %v4431
          %v4576 = vpack.c.b16 %v4438, %v4435
          %v4577 = vpack.c.b16 %v4439, %v4436
          %v4578 = vpack.c.b16 %v4440, %v4437
          %v4579 = vpack.c.b16 %v4444, %v4441
          %v4580 = vpack.c.b16 %v4445, %v4442
          %v4581 = vpack.c.b16 %v4446, %v4443
          %v4582 = vpack.c.b16 %v4450, %v4447
          %v4583 = vpack.c.b16 %v4451, %v4448
          %v4584 = vpack.c.b16 %v4452, %v4449
          %v4585 = vpack.c.b16 %v4456, %v4453
          %v4586 = vpack.c.b16 %v4457, %v4454
          %v4587 = vpack.c.b16 %v4458, %v4455
          %v4588 = vpack.c.b16 %v4462, %v4459
          %v4589 = vpack.c.b16 %v4463, %v4460
          %v4590 = vpack.c.b16 %v4464, %v4461
          %v4591 = vpack.c.b16 %v4468, %v4465
          %v4592 = vpack.c.b16 %v4469, %v4466
          %v4593 = vpack.c.b16 %v4470, %v4467
          %v4594 = vpack.c.b16 %v4474, %v4471
          %v4595 = vpack.c.b16 %v4475, %v4472
          %v4596 = vpack.c.b16 %v4476, %v4473
          %v4597 = vpack.c.b16 %v4480, %v4477
          %v4598 = vpack.c.b16 %v4481, %v4478
          %v4599 = vpack.c.b16 %v4482, %v4479
          %v4600 = vpack.c.b16 %v4486, %v4483
          %v4601 = vpack.c.b16 %v4487, %v4484
          %v4602 = vpack.c.b16 %v4488, %v4485
          %v4603 = vpack.c.b16 %v4492, %v4489
          %v4604 = vpack.c.b16 %v4493, %v4490
          %v4605 = vpack.c.b16 %v4494, %v4491
          %v4606 = vpack.c.b16 %v4498, %v4495
          %v4607 = vpack.c.b16 %v4499, %v4496
          %v4608 = vpack.c.b16 %v4500, %v4497
          %v4609 = vpack.c.b16 %v4504, %v4501
          %v4610 = vpack.c.b16 %v4505, %v4502
          %v4611 = vpack.c.b16 %v4506, %v4503
          %v4612 = vpack.c.b16 %v4510, %v4507
          %v4613 = vpack.c.b16 %v4511, %v4508
          %v4614 = vpack.c.b16 %v4512, %v4509
          %v4615 = vpack.c.b16 %v4516, %v4513
          %v4616 = vpack.c.b16 %v4517, %v4514
          %v4617 = vpack.c.b16 %v4518, %v4515
          %v4618 = vpack.c.b16 %v4522, %v4519
          %v4619 = vpack.c.b16 %v4523, %v4520
          %v4620 = vpack.c.b16 %v4524, %v4521
          %v4621 = vpack.c.b16 %v4528, %v4525
          %v4622 = vpack.c.b16 %v4529, %v4526
          %v4623 = vpack.c.b16 %v4530, %v4527
          %v4624 = vpack.c.b16 %v4534, %v4531
          %v4625 = vpack.c.b16 %v4535, %v4532
          %v4626 = vpack.c.b16 %v4536, %v4533
          %v4627 = vpack.c.b16 %v4540, %v4537
          %v4628 = vpack.c.b16 %v4541, %v4538
          %v4629 = vpack.c.b16 %v4542, %v4539
          %v4630 = vpack.c.b16 %v4546, %v4543
          %v4631 = vpack.c.b16 %v4547, %v4544
          %v4632 = vpack.c.b16 %v4548, %v4545
          %v4633 = vpack.c.b16 %v4552, %v4549
          %v4634 = vpack.c.b16 %v4553, %v4550
          %v4635 = vpack.c.b16 %v4554, %v4551
          %v4636 = vpack.c.b16 %v4558, %v4555
          %v4637 = vpack.c.b16 %v4559, %v4556
          %v4638 = vpack.c.b16 %v4560, %v4557
          %v4639 = vpack.c.b16 %v4564, %v4561
          %v4640 = vpack.c.b16 %v4565, %v4562
          %v4641 = vpack.c.b16 %v4566, %v4563
          %v4642 = vpack.c.b16 %v4570, %v4567
          %v4643 = vpack.c.b16 %v4571, %v4568
          %v4644 = vpack.c.b16 %v4572, %v4569
          %4717 = vmatprep.subr.bf16.mxu0 %v4574
          %4718 = vmatpush1.bf16.msra.mxu0 %v4573
          %4719 = vmatprep.subr.bf16.mxu0 %v4577
          %4720 = vmatpush1.bf16.msra.mxu0 %v4576
          %4721 = vmatprep.subr.bf16.mxu0 %v4580
          %4722 = vmatpush1.bf16.msra.mxu0 %v4579
          %4723 = vmatprep.subr.bf16.mxu0 %v4583
          %4724 = vmatpush1.bf16.msra.mxu0 %v4582
          %4725 = vmatprep.subr.bf16.mxu0 %v4586
          %4726 = vmatpush1.bf16.msra.mxu0 %v4585
          %4727 = vmatprep.subr.bf16.mxu0 %v4589
          %4728 = vmatpush1.bf16.msra.mxu0 %v4588
          %4729 = vmatprep.subr.bf16.mxu0 %v4592
          %4730 = vmatpush1.bf16.msra.mxu0 %v4591
          %4731 = vmatprep.subr.bf16.mxu0 %v4595
          %4732 = vmatpush1.bf16.msra.mxu0 %v4594
          %4733 = vmatprep.subr.bf16.mxu0 %v4598
          %4734 = vmatpush1.bf16.msra.mxu0 %v4597
          %4735 = vmatprep.subr.bf16.mxu0 %v4601
          %4736 = vmatpush1.bf16.msra.mxu0 %v4600
          %4737 = vmatprep.subr.bf16.mxu0 %v4604
          %4738 = vmatpush1.bf16.msra.mxu0 %v4603
          %4739 = vmatprep.subr.bf16.mxu0 %v4607
          %4740 = vmatpush1.bf16.msra.mxu0 %v4606
          %4741 = vmatprep.subr.bf16.mxu0 %v4610
          %4742 = vmatpush1.bf16.msra.mxu0 %v4609
          %4743 = vmatprep.subr.bf16.mxu0 %v4613
          %4744 = vmatpush1.bf16.msra.mxu0 %v4612
          %4745 = vmatprep.subr.bf16.mxu0 %v4616
          %4746 = vmatpush1.bf16.msra.mxu0 %v4615
          %4747 = vmatprep.subr.bf16.mxu0 %v4619
          %4748 = vmatpush1.bf16.msra.mxu0 %v4618
          %4749 = vmatprep.mubr.bf16.mxu0 %v4218
          %4750 = vmatmul.mubr.bf16.gmra.mrb[0].mxu0 %v4217
          %v4751 = vpop.f32.mrb[0].mxu0
          %v4752 = vadd.f32 %v4321, %v4751
          %v4753 = vpop.f32.mrb[0].mxu0
          %v4754 = vadd.f32 %v4325, %v4753
          %v4755 = vpop.f32.mrb[0].mxu0
          %v4756 = vpop.f32.mrb[0].mxu0
          %4757 = vdwg.mxu0
          %4758 = vmatprep.subr.bf16.mxu0 %v4622
          %4759 = vmatpush1.bf16.msra.mxu0 %v4621
          %4760 = vmatprep.subr.bf16.mxu0 %v4625
          %4761 = vmatpush1.bf16.msra.mxu0 %v4624
          %4762 = vmatprep.subr.bf16.mxu0 %v4628
          %4763 = vmatpush1.bf16.msra.mxu0 %v4627
          %4764 = vmatprep.subr.bf16.mxu0 %v4631
          %4765 = vmatpush1.bf16.msra.mxu0 %v4630
          %4766 = vmatprep.subr.bf16.mxu0 %v4634
          %4767 = vmatpush1.bf16.msra.mxu0 %v4633
          %4768 = vmatprep.subr.bf16.mxu0 %v4637
          %4769 = vmatpush1.bf16.msra.mxu0 %v4636
          %4770 = vmatprep.subr.bf16.mxu0 %v4640
          %4771 = vmatpush1.bf16.msra.mxu0 %v4639
          %4772 = vmatprep.subr.bf16.mxu0 %v4643
          %4773 = vmatpush1.bf16.msra.mxu0 %v4642
          %4774 = vmatprep.subr.bf16.mxu0 0
          %4775 = vmatpush1.bf16.msra.mxu0 0
          %4776 = vmatprep.subr.bf16.mxu0 0
          %4777 = vmatpush1.bf16.msra.mxu0 0
          %4778 = vmatprep.subr.bf16.mxu0 0
          %4779 = vmatpush1.bf16.msra.mxu0 0
          %4780 = vmatprep.subr.bf16.mxu0 0
          %4781 = vmatpush1.bf16.msra.mxu0 0
          %4782 = vmatprep.subr.bf16.mxu0 0
          %4783 = vmatpush1.bf16.msra.mxu0 0
          %4784 = vmatprep.subr.bf16.mxu0 0
          %4785 = vmatpush1.bf16.msra.mxu0 0
          %4786 = vmatprep.subr.bf16.mxu0 0
          %4787 = vmatpush1.bf16.msra.mxu0 0
          %4788 = vmatprep.subr.bf16.mxu0 0
          %4789 = vmatpush1.bf16.msra.mxu0 0
          %4790 = vmatprep.mubr.bf16.mxu0 0
          %4791 = vmatmul.mubr.bf16.gmra.mrb[0].mxu0 %v4219
          %v4792 = vpop.f32.mrb[0].mxu0
          %v4793 = vadd.f32 %v4752, %v4792
          %v4794 = vpop.f32.mrb[0].mxu0
          %v4795 = vadd.f32 %v4754, %v4794
          %v4796 = vpop.f32.mrb[0].mxu0
          %v4797 = vpop.f32.mrb[0].mxu0
          %4798 = vdwg.mxu0
          %4799 = vmatprep.subr.bf16.mxu0 0
          %4800 = vmatpush1.bf16.msra.mxu0 %v4575
          %4801 = vmatprep.subr.bf16.mxu0 0
          %4802 = vmatpush1.bf16.msra.mxu0 %v4578
          %4803 = vmatprep.subr.bf16.mxu0 0
          %4804 = vmatpush1.bf16.msra.mxu0 %v4581
          %4805 = vmatprep.subr.bf16.mxu0 0
          %4806 = vmatpush1.bf16.msra.mxu0 %v4584
          %4807 = vmatprep.subr.bf16.mxu0 0
          %4808 = vmatpush1.bf16.msra.mxu0 %v4587
          %4809 = vmatprep.subr.bf16.mxu0 0
          %4810 = vmatpush1.bf16.msra.mxu0 %v4590
          %4811 = vmatprep.subr.bf16.mxu0 0
          %4812 = vmatpush1.bf16.msra.mxu0 %v4593
          %4813 = vmatprep.subr.bf16.mxu0 0
          %4814 = vmatpush1.bf16.msra.mxu0 %v4596
          %4815 = vmatprep.subr.bf16.mxu0 0
          %4816 = vmatpush1.bf16.msra.mxu0 %v4599
          %4817 = vmatprep.subr.bf16.mxu0 0
          %4818 = vmatpush1.bf16.msra.mxu0 %v4602
          %4819 = vmatprep.subr.bf16.mxu0 0
          %4820 = vmatpush1.bf16.msra.mxu0 %v4605
          %4821 = vmatprep.subr.bf16.mxu0 0
          %4822 = vmatpush1.bf16.msra.mxu0 %v4608
          %4823 = vmatprep.subr.bf16.mxu0 0
          %4824 = vmatpush1.bf16.msra.mxu0 %v4611
          %4825 = vmatprep.subr.bf16.mxu0 0
          %4826 = vmatpush1.bf16.msra.mxu0 %v4614
          %4827 = vmatprep.subr.bf16.mxu0 0
          %4828 = vmatpush1.bf16.msra.mxu0 %v4617
          %4829 = vmatprep.subr.bf16.mxu0 0
          %4830 = vmatpush1.bf16.msra.mxu0 %v4620
          %4831 = vmatprep.mubr.bf16.mxu0 %v4218
          %4832 = vmatmul.mubr.bf16.gmra.mrb[0].mxu0 %v4217
          %v4833 = vpop.f32.mrb[0].mxu0
          %v4834 = vadd.f32 %v4329, %v4833
          %v4835 = vpop.f32.mrb[0].mxu0
          %v4836 = vpop.f32.mrb[0].mxu0
          %v4837 = vpop.f32.mrb[0].mxu0
          %4838 = vdwg.mxu0
          %4839 = vmatprep.subr.bf16.mxu0 0
          %4840 = vmatpush1.bf16.msra.mxu0 %v4623
          %4841 = vmatprep.subr.bf16.mxu0 0
          %4842 = vmatpush1.bf16.msra.mxu0 %v4626
          %4843 = vmatprep.subr.bf16.mxu0 0
          %4844 = vmatpush1.bf16.msra.mxu0 %v4629
          %4845 = vmatprep.subr.bf16.mxu0 0
          %4846 = vmatpush1.bf16.msra.mxu0 %v4632
          %4847 = vmatprep.subr.bf16.mxu0 0
          %4848 = vmatpush1.bf16.msra.mxu0 %v4635
          %4849 = vmatprep.subr.bf16.mxu0 0
          %4850 = vmatpush1.bf16.msra.mxu0 %v4638
          %4851 = vmatprep.subr.bf16.mxu0 0
          %4852 = vmatpush1.bf16.msra.mxu0 %v4641
          %4853 = vmatprep.subr.bf16.mxu0 0
          %4854 = vmatpush1.bf16.msra.mxu0 %v4644
          %4855 = vmatprep.subr.bf16.mxu0 0
          %4856 = vmatpush1.bf16.msra.mxu0 0
          %4857 = vmatprep.subr.bf16.mxu0 0
          %4858 = vmatpush1.bf16.msra.mxu0 0
          %4859 = vmatprep.subr.bf16.mxu0 0
          %4860 = vmatpush1.bf16.msra.mxu0 0
          %4861 = vmatprep.subr.bf16.mxu0 0
          %4862 = vmatpush1.bf16.msra.mxu0 0
          %4863 = vmatprep.subr.bf16.mxu0 0
          %4864 = vmatpush1.bf16.msra.mxu0 0
          %4865 = vmatprep.subr.bf16.mxu0 0
          %4866 = vmatpush1.bf16.msra.mxu0 0
          %4867 = vmatprep.subr.bf16.mxu0 0
          %4868 = vmatpush1.bf16.msra.mxu0 0
          %4869 = vmatprep.subr.bf16.mxu0 0
          %4870 = vmatpush1.bf16.msra.mxu0 0
          %4871 = vmatprep.mubr.bf16.mxu0 0
          %4872 = vmatmul.mubr.bf16.gmra.mrb[0].mxu0 %v4219
          %v4873 = vpop.f32.mrb[0].mxu0
          %v4874 = vadd.f32 %v4834, %v4873
          %v4875 = vpop.f32.mrb[0].mxu0
          %v4876 = vpop.f32.mrb[0].mxu0
          %v4877 = vpop.f32.mrb[0].mxu0
          %4878 = vdwg.mxu0
          %v4879 = vmax.f32 %v4793, 0.0
          %v4880 = vmax.f32 %v4795, 0.0
          %v4881 = vmax.f32 %v4874, 0.0
          %v4882 = vpack.c.bf16 %v4879, %v4879
          %v4883 = vpack.c.bf16 %v4880, %v4880
          %v4884 = vpack.c.bf16 %v4881, %v4881
          %v4885 = vld [vmem:[#allocation16] sm:$0xf]
          %v4886 = vld [vmem:[#allocation16 + $0x4] sm:$0xf]
          %v4887 = vld [vmem:[#allocation16 + $0x8] sm:$0xf]
          %v4888 = vld [vmem:[#allocation16 + $0xc] sm:$0xf]
          %v4889 = vld [vmem:[#allocation16 + $0x10] sm:$0xf]
          %v4890 = vld [vmem:[#allocation16 + $0x14] sm:$0xf]
          %v4891 = vld [vmem:[#allocation16 + $0x18] sm:$0xf]
          %v4892 = vld [vmem:[#allocation16 + $0x1c] sm:$0xf]
          %v4893 = vld [vmem:[#allocation16 + $0x20] sm:$0xf]
          %v4894 = vld [vmem:[#allocation16 + $0x24] sm:$0xf]
          %v4895 = vld [vmem:[#allocation16 + $0x28] sm:$0xf]
          %v4896 = vld [vmem:[#allocation16 + $0x2c] sm:$0xf]
          %v4897 = vld [vmem:[#allocation16 + $0x30] sm:$0xf]
          %v4898 = vld [vmem:[#allocation16 + $0x34] sm:$0xf]
          %v4899 = vld [vmem:[#allocation16 + $0x38] sm:$0xf]
          %v4900 = vld [vmem:[#allocation16 + $0x3c] sm:$0xf]
          %v4901 = vld [vmem:[#allocation16 + $0x40] sm:$0xf]
          %v4902 = vld [vmem:[#allocation16 + $0x44] sm:$0xf]
          %v4903 = vld [vmem:[#allocation16 + $0x48] sm:$0xf]
          %v4904 = vld [vmem:[#allocation16 + $0x4c] sm:$0xf]
          %v4905 = vld [vmem:[#allocation16 + $0x50] sm:$0xf]
          %v4906 = vld [vmem:[#allocation16 + $0x54] sm:$0xf]
          %v4907 = vld [vmem:[#allocation16 + $0x58] sm:$0xf]
          %v4908 = vld [vmem:[#allocation16 + $0x5c] sm:$0xf]
          %v4909 = vld [vmem:[#allocation16 + $0x60] sm:$0xf]
          %v4910 = vld [vmem:[#allocation16 + $0x64] sm:$0xf]
          %v4911 = vld [vmem:[#allocation16 + $0x68] sm:$0xf]
          %v4912 = vld [vmem:[#allocation16 + $0x6c] sm:$0xf]
          %v4913 = vld [vmem:[#allocation16 + $0x70] sm:$0xf]
          %v4914 = vld [vmem:[#allocation16 + $0x74] sm:$0xf]
          %v4915 = vld [vmem:[#allocation16 + $0x78] sm:$0xf]
          %v4916 = vld [vmem:[#allocation16 + $0x7c] sm:$0xf]
          %v4917 = vld [vmem:[#allocation16 + $0x80] sm:$0xf]
          %v4918 = vld [vmem:[#allocation16 + $0x84] sm:$0xf]
          %v4919 = vld [vmem:[#allocation16 + $0x88] sm:$0xf]
          %v4920 = vld [vmem:[#allocation16 + $0x8c] sm:$0xf]
          %v4921 = vld [vmem:[#allocation16 + $0x90] sm:$0xf]
          %v4922 = vld [vmem:[#allocation16 + $0x94] sm:$0xf]
          %v4923 = vld [vmem:[#allocation16 + $0x98] sm:$0xf]
          %v4924 = vld [vmem:[#allocation16 + $0x9c] sm:$0xf]
          %v4925 = vld [vmem:[#allocation16 + $0xa0] sm:$0xf]
          %v4926 = vld [vmem:[#allocation16 + $0xa4] sm:$0xf]
          %v4927 = vld [vmem:[#allocation16 + $0xa8] sm:$0xf]
          %v4928 = vld [vmem:[#allocation16 + $0xac] sm:$0xf]
          %v4929 = vld [vmem:[#allocation16 + $0xb0] sm:$0xf]
          %v4930 = vld [vmem:[#allocation16 + $0xb4] sm:$0xf]
          %v4931 = vld [vmem:[#allocation16 + $0xb8] sm:$0xf]
          %v4932 = vld [vmem:[#allocation16 + $0xbc] sm:$0xf]
          %v4933 = vld [vmem:[#allocation17] sm:$0x1]
          %v4935 = vlaneseq
          %v4936 = vshrl.u32 %v4935, 7
          %v4937 = vsub.s32 0, %v4936
          %v4938 = vrot.slane %v4933, %v4937
          %v4988 = vunpack.c.l.b16 %v4885
          %v4989 = vunpack.c.l.b16 %v4886
          %v4990 = vunpack.c.l.b16 %v4887
          %v4991 = vunpack.c.l.b16 %v4888
          %v4992 = vunpack.c.l.b16 %v4889
          %v4993 = vunpack.c.l.b16 %v4890
          %v4994 = vunpack.c.l.b16 %v4891
          %v4995 = vunpack.c.l.b16 %v4892
          %v4996 = vunpack.c.l.b16 %v4893
          %v4997 = vunpack.c.l.b16 %v4894
          %v4998 = vunpack.c.l.b16 %v4895
          %v4999 = vunpack.c.l.b16 %v4896
          %v5000 = vunpack.c.l.b16 %v4897
          %v5001 = vunpack.c.l.b16 %v4898
          %v5002 = vunpack.c.l.b16 %v4899
          %v5003 = vunpack.c.l.b16 %v4900
          %v5004 = vunpack.c.l.b16 %v4901
          %v5005 = vunpack.c.l.b16 %v4902
          %v5006 = vunpack.c.l.b16 %v4903
          %v5007 = vunpack.c.l.b16 %v4904
          %v5008 = vunpack.c.l.b16 %v4905
          %v5009 = vunpack.c.l.b16 %v4906
          %v5010 = vunpack.c.l.b16 %v4907
          %v5011 = vunpack.c.l.b16 %v4908
          %v5012 = vunpack.c.l.b16 %v4909
          %v5013 = vunpack.c.l.b16 %v4910
          %v5014 = vunpack.c.l.b16 %v4911
          %v5015 = vunpack.c.l.b16 %v4912
          %v5016 = vunpack.c.l.b16 %v4913
          %v5017 = vunpack.c.l.b16 %v4914
          %v5018 = vunpack.c.l.b16 %v4915
          %v5019 = vunpack.c.l.b16 %v4916
          %v5020 = vunpack.c.l.b16 %v4917
          %v5021 = vunpack.c.l.b16 %v4918
          %v5022 = vunpack.c.l.b16 %v4919
          %v5023 = vunpack.c.l.b16 %v4920
          %v5024 = vunpack.c.l.b16 %v4921
          %v5025 = vunpack.c.l.b16 %v4922
          %v5026 = vunpack.c.l.b16 %v4923
          %v5027 = vunpack.c.l.b16 %v4924
          %v5028 = vunpack.c.l.b16 %v4925
          %v5029 = vunpack.c.l.b16 %v4926
          %v5030 = vunpack.c.l.b16 %v4927
          %v5031 = vunpack.c.l.b16 %v4928
          %v5032 = vunpack.c.l.b16 %v4929
          %v5033 = vunpack.c.l.b16 %v4930
          %v5034 = vunpack.c.l.b16 %v4931
          %v5035 = vunpack.c.l.b16 %v4932
          %v5036 = vpack.c.b16 %v4989, %v4988
          %v5037 = vpack.c.b16 %v4991, %v4990
          %v5038 = vpack.c.b16 %v4993, %v4992
          %v5039 = vpack.c.b16 %v4995, %v4994
          %v5040 = vpack.c.b16 %v4997, %v4996
          %v5041 = vpack.c.b16 %v4999, %v4998
          %v5042 = vpack.c.b16 %v5001, %v5000
          %v5043 = vpack.c.b16 %v5003, %v5002
          %v5044 = vpack.c.b16 %v5005, %v5004
          %v5045 = vpack.c.b16 %v5007, %v5006
          %v5046 = vpack.c.b16 %v5009, %v5008
          %v5047 = vpack.c.b16 %v5011, %v5010
          %v5048 = vpack.c.b16 %v5013, %v5012
          %v5049 = vpack.c.b16 %v5015, %v5014
          %v5050 = vpack.c.b16 %v5017, %v5016
          %v5051 = vpack.c.b16 %v5019, %v5018
          %v5052 = vpack.c.b16 %v5021, %v5020
          %v5053 = vpack.c.b16 %v5023, %v5022
          %v5054 = vpack.c.b16 %v5025, %v5024
          %v5055 = vpack.c.b16 %v5027, %v5026
          %v5056 = vpack.c.b16 %v5029, %v5028
          %v5057 = vpack.c.b16 %v5031, %v5030
          %v5058 = vpack.c.b16 %v5033, %v5032
          %v5059 = vpack.c.b16 %v5035, %v5034
          %5084 = vmatprep.subr.bf16.mxu0 0
          %5085 = vmatpush1.bf16.msra.mxu0 %v5036
          %5086 = vmatprep.subr.bf16.mxu0 0
          %5087 = vmatpush1.bf16.msra.mxu0 %v5037
          %5088 = vmatprep.subr.bf16.mxu0 0
          %5089 = vmatpush1.bf16.msra.mxu0 %v5038
          %5090 = vmatprep.subr.bf16.mxu0 0
          %5091 = vmatpush1.bf16.msra.mxu0 %v5039
          %5092 = vmatprep.subr.bf16.mxu0 0
          %5093 = vmatpush1.bf16.msra.mxu0 %v5040
          %5094 = vmatprep.subr.bf16.mxu0 0
          %5095 = vmatpush1.bf16.msra.mxu0 %v5041
          %5096 = vmatprep.subr.bf16.mxu0 0
          %5097 = vmatpush1.bf16.msra.mxu0 %v5042
          %5098 = vmatprep.subr.bf16.mxu0 0
          %5099 = vmatpush1.bf16.msra.mxu0 %v5043
          %5100 = vmatprep.subr.bf16.mxu0 0
          %5101 = vmatpush1.bf16.msra.mxu0 %v5044
          %5102 = vmatprep.subr.bf16.mxu0 0
          %5103 = vmatpush1.bf16.msra.mxu0 %v5045
          %5104 = vmatprep.subr.bf16.mxu0 0
          %5105 = vmatpush1.bf16.msra.mxu0 %v5046
          %5106 = vmatprep.subr.bf16.mxu0 0
          %5107 = vmatpush1.bf16.msra.mxu0 %v5047
          %5108 = vmatprep.subr.bf16.mxu0 0
          %5109 = vmatpush1.bf16.msra.mxu0 %v5048
          %5110 = vmatprep.subr.bf16.mxu0 0
          %5111 = vmatpush1.bf16.msra.mxu0 %v5049
          %5112 = vmatprep.subr.bf16.mxu0 0
          %5113 = vmatpush1.bf16.msra.mxu0 %v5050
          %5114 = vmatprep.subr.bf16.mxu0 0
          %5115 = vmatpush1.bf16.msra.mxu0 %v5051
          %5116 = vmatprep.mubr.bf16.mxu0 %v4883
          %5117 = vmatmul.mubr.bf16.gmra.mrb[0].mxu0 %v4882
          %v5118 = vpop.f32.mrb[0].mxu0
          %v5119 = vadd.f32 %v4938, %v5118
          %v5120 = vpop.f32.mrb[0].mxu0
          %v5121 = vpop.f32.mrb[0].mxu0
          %v5122 = vpop.f32.mrb[0].mxu0
          %5123 = vdwg.mxu0
          %5124 = vmatprep.subr.bf16.mxu0 0
          %5125 = vmatpush1.bf16.msra.mxu0 %v5052
          %5126 = vmatprep.subr.bf16.mxu0 0
          %5127 = vmatpush1.bf16.msra.mxu0 %v5053
          %5128 = vmatprep.subr.bf16.mxu0 0
          %5129 = vmatpush1.bf16.msra.mxu0 %v5054
          %5130 = vmatprep.subr.bf16.mxu0 0
          %5131 = vmatpush1.bf16.msra.mxu0 %v5055
          %5132 = vmatprep.subr.bf16.mxu0 0
          %5133 = vmatpush1.bf16.msra.mxu0 %v5056
          %5134 = vmatprep.subr.bf16.mxu0 0
          %5135 = vmatpush1.bf16.msra.mxu0 %v5057
          %5136 = vmatprep.subr.bf16.mxu0 0
          %5137 = vmatpush1.bf16.msra.mxu0 %v5058
          %5138 = vmatprep.subr.bf16.mxu0 0
          %5139 = vmatpush1.bf16.msra.mxu0 %v5059
          %5140 = vmatprep.subr.bf16.mxu0 0
          %5141 = vmatpush1.bf16.msra.mxu0 0
          %5142 = vmatprep.subr.bf16.mxu0 0
          %5143 = vmatpush1.bf16.msra.mxu0 0
          %5144 = vmatprep.subr.bf16.mxu0 0
          %5145 = vmatpush1.bf16.msra.mxu0 0
          %5146 = vmatprep.subr.bf16.mxu0 0
          %5147 = vmatpush1.bf16.msra.mxu0 0
          %5148 = vmatprep.subr.bf16.mxu0 0
          %5149 = vmatpush1.bf16.msra.mxu0 0
          %5150 = vmatprep.subr.bf16.mxu0 0
          %5151 = vmatpush1.bf16.msra.mxu0 0
          %5152 = vmatprep.subr.bf16.mxu0 0
          %5153 = vmatpush1.bf16.msra.mxu0 0
          %5154 = vmatprep.subr.bf16.mxu0 0
          %5155 = vmatpush1.bf16.msra.mxu0 0
          %5156 = vmatprep.mubr.bf16.mxu0 0
          %5157 = vmatmul.mubr.bf16.gmra.mrb[0].mxu0 %v4884
          %v5158 = vpop.f32.mrb[0].mxu0
          %v5159 = vadd.f32 %v5119, %v5158
          %v5160 = vpop.f32.mrb[0].mxu0
          %v5161 = vpop.f32.mrb[0].mxu0
          %v5162 = vpop.f32.mrb[0].mxu0
          %5163 = vdwg.mxu0
          %5164 = vst [vmem:[%s11] sm:$0xff] %v5159
        $region112: #{resnet_classifier_forward.1} parent=63 // pred_fallthru
          _
        // Predicated region
        $region113: #{resnet_classifier_forward.1} parent=63 // pred_check
          %p5165 = pneg %p284
        $region114: #{resnet_classifier_forward.1} parent=63 // pred_check_branch
          %5167 = sbr.rel (%p5165) target = $region116
        $region115: #{resnet_classifier_forward.1} parent=63 // pred_region
          _
        $region116: #{resnet_classifier_forward.1} parent=63 // pred_fallthru
          _
        // Predicated region
        $region117: #{resnet_classifier_forward.1} parent=63 // pred_check
          %p5168 = pneg %p284
        $region118: #{resnet_classifier_forward.1} parent=63 // pred_check_branch
          %5170 = sbr.rel (%p5168) target = $region120
        $region119: #{resnet_classifier_forward.1} parent=63 // pred_region
          _
        $region120: #{resnet_classifier_forward.1} parent=63 // pred_fallthru
          _
      $region64: #{resnet_classifier_forward.1} parent=5 // pred_fallthru
        _
      %p5171 = scmp.le.s32.totalorder 2, %s25
      // Predicated region
      $region121: #{resnet_classifier_forward.1} parent=5 // pred_check
        %p5172 = pneg %p5171
      $region122: #{resnet_classifier_forward.1} parent=5 // pred_check_branch
        %5174 = sbr.rel (%p5172) target = $region124
      $region123: #{resnet_classifier_forward.1} parent=5 // pred_region
        %s5175 = ssub.s32 %s25, 2
      $region124: #{resnet_classifier_forward.1} parent=5 // pred_fallthru
        _
    $region6: #{resnet_classifier_forward.1} parent=1 // loop_footer
      %s29 = sadd.s32 1, %s25
    $region7: #{resnet_classifier_forward.1} parent=1 // loop_footer_branch
      %24 = sbr.rel target = $region3
    $region8: #{resnet_classifier_forward.1} parent=1 // loop_exit
      _
    %5176 = vsyncpa [#allocation4], 1
    %s5177 = scalar_lea.sflag [#allocation4], 1
    %5178 = vsyncpa %s5177, 1
    %5179 = vsyncpa [#allocation6], 1
    %5180 = vsyncpa [#allocation9], 1
    %5181 = vsyncpa [#allocation12], 1
    %5182 = vsyncpa [#allocation15], 1
    %5183 = vsyncpa [#allocation18], 1

</llo_original>
